<compile_context>
chip_gen: v6e
topology: v6e:2x2x1
jax: 0.10.0
libtpu: 0.0.40
codegen_flags: <defaults>
</compile_context>

<pallas_src>
import functools
import math

import jax
import jax.numpy as jnp
from jax.experimental import pallas as pl
from jax.experimental.pallas import tpu as pltpu

# ----- small BERT-like config (synthetic, deterministic weights) -----
VOCAB = 100
TYPE_VOCAB = 2
MAX_POS = 16
HIDDEN = 32
N_HEADS = 2
HEAD_DIM = HIDDEN // N_HEADS
INTER = 64
N_LAYERS = 2
LN_EPS = 1e-12
NEG_INF = -1e9


def _layernorm(x, g, b):
    mean = jnp.mean(x, axis=-1, keepdims=True)
    var = jnp.mean(jnp.square(x - mean), axis=-1, keepdims=True)
    return (x - mean) * jax.lax.rsqrt(var + LN_EPS) * g + b


def _gelu_tanh(x):
    # tanh-approx GELU (HF "gelu_new"); tanh goes to the EUP.
    return 0.5 * x * (1.0 + jnp.tanh(0.7978845608028654 * (x + 0.044715 * x * x * x)))


def _encoder_kernel(inp_ids_ref, tok_type_ids_ref,              # SMEM (B*S,) int32
                    attn_mask_ref,                               # VMEM (B*S, B*S) additive
                    word_emb_ref, pos_emb_ref, type_emb_ref,     # embedding tables
                    emb_ln_g_ref, emb_ln_b_ref,
                    qkv_w_ref, qkv_b_ref, o_w_ref, o_b_ref,
                    ln1_g_ref, ln1_b_ref,
                    f1_w_ref, f1_b_ref, f2_w_ref, f2_b_ref,
                    ln2_g_ref, ln2_b_ref,
                    pooler_w_ref, pooler_b_ref,
                    hid_ref, pool_ref,
                    *, batch, seq, n_heads, head_dim, n_layers):
    hidden = n_heads * head_dim
    bs = batch * seq

    # --- in-kernel embedding gather (word + position + type), staged in hid_ref ---
    for r in range(bs):
        s = r % seq                                   # static position index
        wid = inp_ids_ref[r]                          # dynamic scalar from SMEM
        tid = tok_type_ids_ref[r]
        row = (word_emb_ref[pl.ds(wid, 1), :]
               + pos_emb_ref[s:s + 1, :]
               + type_emb_ref[pl.ds(tid, 1), :])
        hid_ref[r:r + 1, :] = row

    # --- embedding LayerNorm (no zero residual) ---
    h = _layernorm(hid_ref[...], emb_ln_g_ref[...], emb_ln_b_ref[...])   # (B*S, H)

    # Block-diagonal additive mask (cross-batch = -1e9, padding folded in),
    # already score-shaped: hoisted once, reused by every head & layer.
    full_mask = attn_mask_ref[...]                                        # (B*S, B*S)

    # --- transformer layers (static unroll; everything stays in VMEM) ---
    for l in range(n_layers):
        # fused QKV projection: one matmul -> (B*S, 3H); 1/sqrt(dH) is already
        # folded into the Q columns of the weight.
        qkv = jnp.dot(h, qkv_w_ref[l],
                      preferred_element_type=jnp.float32) + qkv_b_ref[l]
        o_w_l = o_w_ref[l]                                                # (H, H)

        attn = None
        for hd in range(n_heads):
            c0 = hd * head_dim
            # NOTE: 16-lane intra-vreg slices are unavoidable at HIDDEN=32 /
            # head_dim=16 (everything sits inside a single 128-lane vreg).
            q = qkv[:, c0:c0 + head_dim]                                  # (B*S, dH)
            k = qkv[:, hidden + c0:hidden + c0 + head_dim]
            v = qkv[:, 2 * hidden + c0:2 * hidden + c0 + head_dim]

            # scores over the flattened batch axis; cross-batch pairs masked.
            sc = jax.lax.dot_general(
                q, k, (((1,), (1,)), ((), ())),
                preferred_element_type=jnp.float32) + full_mask           # (B*S, B*S)
            sc = sc - jnp.max(sc, axis=-1, keepdims=True)
            p = jnp.exp(sc)
            p = p * pl.reciprocal(jnp.sum(p, axis=-1, keepdims=True), approx=True)
            ctx = jnp.dot(p, v, preferred_element_type=jnp.float32)       # (B*S, dH)

            # per-head output projection == merge_heads(ctx) @ Wo
            part = jnp.dot(ctx, o_w_l[c0:c0 + head_dim, :],
                           preferred_element_type=jnp.float32)            # (B*S, H)
            attn = part if attn is None else attn + part

        h1 = _layernorm(attn + o_b_ref[l] + h, ln1_g_ref[l], ln1_b_ref[l])

        ff = _gelu_tanh(jnp.dot(h1, f1_w_ref[l],
                                preferred_element_type=jnp.float32) + f1_b_ref[l])
        ff2 = jnp.dot(ff, f2_w_ref[l],
                      preferred_element_type=jnp.float32) + f2_b_ref[l]
        h = _layernorm(ff2 + h1, ln2_g_ref[l], ln2_b_ref[l])

    hid_ref[...] = h.astype(hid_ref.dtype)

    # --- vectorized pooler: CLS slab via strided ds, one matmul, one store ---
    cls = hid_ref[pl.ds(0, batch, stride=seq), :]                         # (B, H)
    pooled = jnp.tanh(
        jnp.dot(cls, pooler_w_ref[...], preferred_element_type=jnp.float32)
        + pooler_b_ref[...])
    pool_ref[...] = pooled.astype(pool_ref.dtype)


# ---------------- parameter init (deterministic, synthetic) ----------------
def init_params(key):
    def normal(k, shape):
        return 0.02 * jax.random.normal(k, shape, dtype=jnp.float32)

    keys = iter(jax.random.split(key, 16))
    scale = 1.0 / math.sqrt(HEAD_DIM)

    qkv_w = normal(next(keys), (N_LAYERS, HIDDEN, 3 * HIDDEN))
    qkv_b = jnp.zeros((N_LAYERS, 1, 3 * HIDDEN), jnp.float32)
    # fold the attention 1/sqrt(head_dim) scale into the Q projection
    qkv_w = qkv_w.at[:, :, :HIDDEN].multiply(scale)
    qkv_b = qkv_b.at[:, :, :HIDDEN].multiply(scale)

    return {
        "word_emb": normal(next(keys), (VOCAB, HIDDEN)),
        "pos_emb": normal(next(keys), (MAX_POS, HIDDEN)),
        "type_emb": normal(next(keys), (TYPE_VOCAB, HIDDEN)),
        "emb_ln_g": jnp.ones((1, HIDDEN), jnp.float32),
        "emb_ln_b": jnp.zeros((1, HIDDEN), jnp.float32),
        "qkv_w": qkv_w,
        "qkv_b": qkv_b,
        "o_w": normal(next(keys), (N_LAYERS, HIDDEN, HIDDEN)),
        "o_b": jnp.zeros((N_LAYERS, 1, HIDDEN), jnp.float32),
        "ln1_g": jnp.ones((N_LAYERS, 1, HIDDEN), jnp.float32),
        "ln1_b": jnp.zeros((N_LAYERS, 1, HIDDEN), jnp.float32),
        "f1_w": normal(next(keys), (N_LAYERS, HIDDEN, INTER)),
        "f1_b": jnp.zeros((N_LAYERS, 1, INTER), jnp.float32),
        "f2_w": normal(next(keys), (N_LAYERS, INTER, HIDDEN)),
        "f2_b": jnp.zeros((N_LAYERS, 1, HIDDEN), jnp.float32),
        "ln2_g": jnp.ones((N_LAYERS, 1, HIDDEN), jnp.float32),
        "ln2_b": jnp.zeros((N_LAYERS, 1, HIDDEN), jnp.float32),
        "pooler_w": normal(next(keys), (HIDDEN, HIDDEN)),
        "pooler_b": jnp.zeros((1, HIDDEN), jnp.float32),
    }


# ---------------- forward (mirrors TextEncoder.forward) ----------------
def text_encoder_forward(params, inp_ids, mask, tok_type_ids):
    B, S = inp_ids.shape
    BS = B * S
    H = HIDDEN

    # Block-diagonal-across-batch additive mask with padding folded in,
    # built once at score shape (tiny; everything else runs in the kernel).
    valid = mask.reshape(BS).astype(jnp.float32)
    bid = jnp.repeat(jnp.arange(B, dtype=jnp.int32), S)
    keep = (bid[:, None] == bid[None, :]) & (valid[None, :] > 0.5)
    attn_mask = jnp.where(keep, 0.0, NEG_INF).astype(jnp.float32)        # (BS, BS)

    kernel = functools.partial(
        _encoder_kernel,
        batch=B, seq=S, n_heads=N_HEADS, head_dim=HEAD_DIM, n_layers=N_LAYERS)

    smem = pl.BlockSpec(memory_space=pltpu.MemorySpace.SMEM)
    vmem = pl.BlockSpec(memory_space=pltpu.MemorySpace.VMEM)

    hid, pooled = pl.pallas_call(
        kernel,
        out_shape=(
            jax.ShapeDtypeStruct((BS, H), jnp.float32),
            jax.ShapeDtypeStruct((B, H), jnp.float32),
        ),
        in_specs=[smem, smem] + [vmem] * 20,
        out_specs=(vmem, vmem),
        compiler_params=pltpu.CompilerParams(vmem_limit_bytes=32 * 1024 * 1024),
    )(inp_ids.reshape(BS).astype(jnp.int32),
      tok_type_ids.reshape(BS).astype(jnp.int32),
      attn_mask,
      params["word_emb"], params["pos_emb"], params["type_emb"],
      params["emb_ln_g"], params["emb_ln_b"],
      params["qkv_w"], params["qkv_b"], params["o_w"], params["o_b"],
      params["ln1_g"], params["ln1_b"],
      params["f1_w"], params["f1_b"], params["f2_w"], params["f2_b"],
      params["ln2_g"], params["ln2_b"],
      params["pooler_w"], params["pooler_b"])

    last_hidden_state = hid.reshape(B, S, H)

    # self.dropout(pooler_output): nn.Dropout is identity at inference
    # (encoder is frozen / eval mode), so it is a no-op here.
    # TODO(synk): training-mode dropout would use pltpu.prng_seed + stateful_bernoulli.
    out = pooled
    return out, last_hidden_state


if __name__ == "__main__":
    B, S = 2, 8
    key = jax.random.PRNGKey(0)
    pkey, ikey = jax.random.split(key)

    params = init_params(pkey)
    inp_ids = jax.random.randint(ikey, (B, S), 0, VOCAB, dtype=jnp.int32)
    mask = jnp.array([[1] * S, [1] * (S - 2) + [0, 0]], dtype=jnp.int32)
    tok_type_ids = jnp.zeros((B, S), dtype=jnp.int32)

    fwd = jax.jit(text_encoder_forward)
    out, last_hidden = fwd(params, inp_ids, mask, tok_type_ids)
    jax.block_until_ready((out, last_hidden))

    assert out.shape == (B, HIDDEN)
    assert last_hidden.shape == (B, S, HIDDEN)
    assert bool(jnp.all(jnp.isfinite(out))) and bool(jnp.all(jnp.isfinite(last_hidden)))
    print("KERNEL_OK")
</pallas_src>

<mosaic_0001>
module attributes {stable_mosaic.version = 11 : i64} {
  func.func @_encoder_kernel(%arg0: memref<16xi32, #tpu.memory_space<smem>>, %arg1: memref<16xi32, #tpu.memory_space<smem>>, %arg2: memref<16x16xf32, #tpu.memory_space<vmem>>, %arg3: memref<100x32xf32, #tpu.memory_space<vmem>>, %arg4: memref<16x32xf32, #tpu.memory_space<vmem>>, %arg5: memref<2x32xf32, #tpu.memory_space<vmem>>, %arg6: memref<1x32xf32, #tpu.memory_space<vmem>>, %arg7: memref<1x32xf32, #tpu.memory_space<vmem>>, %arg8: memref<2x32x96xf32, #tpu.memory_space<vmem>>, %arg9: memref<2x1x96xf32, #tpu.memory_space<vmem>>, %arg10: memref<2x32x32xf32, #tpu.memory_space<vmem>>, %arg11: memref<2x1x32xf32, #tpu.memory_space<vmem>>, %arg12: memref<2x1x32xf32, #tpu.memory_space<vmem>>, %arg13: memref<2x1x32xf32, #tpu.memory_space<vmem>>, %arg14: memref<2x32x64xf32, #tpu.memory_space<vmem>>, %arg15: memref<2x1x64xf32, #tpu.memory_space<vmem>>, %arg16: memref<2x64x32xf32, #tpu.memory_space<vmem>>, %arg17: memref<2x1x32xf32, #tpu.memory_space<vmem>>, %arg18: memref<2x1x32xf32, #tpu.memory_space<vmem>>, %arg19: memref<2x1x32xf32, #tpu.memory_space<vmem>>, %arg20: memref<32x32xf32, #tpu.memory_space<vmem>>, %arg21: memref<1x32xf32, #tpu.memory_space<vmem>>, %arg22: memref<16x32xf32, #tpu.memory_space<vmem>>, %arg23: memref<2x32xf32, #tpu.memory_space<vmem>>) attributes {dimension_semantics = [], scalar_prefetch = 0 : i64, scratch_operands = 0 : i64, tpu.core_type = #tpu.core_type<tc>} {
    %c0 = arith.constant 0 : index
    %0 = memref.load %arg0[%c0] : memref<16xi32, #tpu.memory_space<smem>>
    %c0_0 = arith.constant 0 : index
    %1 = memref.load %arg1[%c0_0] : memref<16xi32, #tpu.memory_space<smem>>
    %2 = arith.index_cast %0 : i32 to index
    %c0_1 = arith.constant 0 : index
    %3 = vector.load %arg3[%2, %c0_1] : memref<100x32xf32, #tpu.memory_space<vmem>>, vector<1x32xf32>
    %c0_2 = arith.constant 0 : index
    %c0_3 = arith.constant 0 : index
    %4 = vector.load %arg4[%c0_2, %c0_3] : memref<16x32xf32, #tpu.memory_space<vmem>>, vector<1x32xf32>
    %5 = arith.addf %3, %4 : vector<1x32xf32>
    %6 = arith.index_cast %1 : i32 to index
    %c0_4 = arith.constant 0 : index
    %7 = vector.load %arg5[%6, %c0_4] : memref<2x32xf32, #tpu.memory_space<vmem>>, vector<1x32xf32>
    %8 = arith.addf %5, %7 : vector<1x32xf32>
    %c0_5 = arith.constant 0 : index
    %c0_6 = arith.constant 0 : index
    %9 = vector.load %arg22[%c0_5, %c0_6] : memref<16x32xf32, #tpu.memory_space<vmem>>, vector<1x32xf32>
    tpu.vector_store %arg22[%c0_5, %c0_6], %8 {strides = array<i32>} : memref<16x32xf32, #tpu.memory_space<vmem>>, vector<1x32xf32>,
    %c1 = arith.constant 1 : index
    %10 = memref.load %arg0[%c1] : memref<16xi32, #tpu.memory_space<smem>>
    %c1_7 = arith.constant 1 : index
    %11 = memref.load %arg1[%c1_7] : memref<16xi32, #tpu.memory_space<smem>>
    %12 = arith.index_cast %10 : i32 to index
    %c0_8 = arith.constant 0 : index
    %13 = vector.load %arg3[%12, %c0_8] : memref<100x32xf32, #tpu.memory_space<vmem>>, vector<1x32xf32>
    %c1_9 = arith.constant 1 : index
    %c0_10 = arith.constant 0 : index
    %14 = vector.load %arg4[%c1_9, %c0_10] : memref<16x32xf32, #tpu.memory_space<vmem>>, vector<1x32xf32>
    %15 = arith.addf %13, %14 : vector<1x32xf32>
    %16 = arith.index_cast %11 : i32 to index
    %c0_11 = arith.constant 0 : index
    %17 = vector.load %arg5[%16, %c0_11] : memref<2x32xf32, #tpu.memory_space<vmem>>, vector<1x32xf32>
    %18 = arith.addf %15, %17 : vector<1x32xf32>
    %c1_12 = arith.constant 1 : index
    %c0_13 = arith.constant 0 : index
    %19 = vector.load %arg22[%c1_12, %c0_13] : memref<16x32xf32, #tpu.memory_space<vmem>>, vector<1x32xf32>
    tpu.vector_store %arg22[%c1_12, %c0_13], %18 {strides = array<i32>} : memref<16x32xf32, #tpu.memory_space<vmem>>, vector<1x32xf32>,
    %c2 = arith.constant 2 : index
    %20 = memref.load %arg0[%c2] : memref<16xi32, #tpu.memory_space<smem>>
    %c2_14 = arith.constant 2 : index
    %21 = memref.load %arg1[%c2_14] : memref<16xi32, #tpu.memory_space<smem>>
    %22 = arith.index_cast %20 : i32 to index
    %c0_15 = arith.constant 0 : index
    %23 = vector.load %arg3[%22, %c0_15] : memref<100x32xf32, #tpu.memory_space<vmem>>, vector<1x32xf32>
    %c2_16 = arith.constant 2 : index
    %c0_17 = arith.constant 0 : index
    %24 = vector.load %arg4[%c2_16, %c0_17] : memref<16x32xf32, #tpu.memory_space<vmem>>, vector<1x32xf32>
    %25 = arith.addf %23, %24 : vector<1x32xf32>
    %26 = arith.index_cast %21 : i32 to index
    %c0_18 = arith.constant 0 : index
    %27 = vector.load %arg5[%26, %c0_18] : memref<2x32xf32, #tpu.memory_space<vmem>>, vector<1x32xf32>
    %28 = arith.addf %25, %27 : vector<1x32xf32>
    %c2_19 = arith.constant 2 : index
    %c0_20 = arith.constant 0 : index
    %29 = vector.load %arg22[%c2_19, %c0_20] : memref<16x32xf32, #tpu.memory_space<vmem>>, vector<1x32xf32>
    tpu.vector_store %arg22[%c2_19, %c0_20], %28 {strides = array<i32>} : memref<16x32xf32, #tpu.memory_space<vmem>>, vector<1x32xf32>,
    %c3 = arith.constant 3 : index
    %30 = memref.load %arg0[%c3] : memref<16xi32, #tpu.memory_space<smem>>
    %c3_21 = arith.constant 3 : index
    %31 = memref.load %arg1[%c3_21] : memref<16xi32, #tpu.memory_space<smem>>
    %32 = arith.index_cast %30 : i32 to index
    %c0_22 = arith.constant 0 : index
    %33 = vector.load %arg3[%32, %c0_22] : memref<100x32xf32, #tpu.memory_space<vmem>>, vector<1x32xf32>
    %c3_23 = arith.constant 3 : index
    %c0_24 = arith.constant 0 : index
    %34 = vector.load %arg4[%c3_23, %c0_24] : memref<16x32xf32, #tpu.memory_space<vmem>>, vector<1x32xf32>
    %35 = arith.addf %33, %34 : vector<1x32xf32>
    %36 = arith.index_cast %31 : i32 to index
    %c0_25 = arith.constant 0 : index
    %37 = vector.load %arg5[%36, %c0_25] : memref<2x32xf32, #tpu.memory_space<vmem>>, vector<1x32xf32>
    %38 = arith.addf %35, %37 : vector<1x32xf32>
    %c3_26 = arith.constant 3 : index
    %c0_27 = arith.constant 0 : index
    %39 = vector.load %arg22[%c3_26, %c0_27] : memref<16x32xf32, #tpu.memory_space<vmem>>, vector<1x32xf32>
    tpu.vector_store %arg22[%c3_26, %c0_27], %38 {strides = array<i32>} : memref<16x32xf32, #tpu.memory_space<vmem>>, vector<1x32xf32>,
    %c4 = arith.constant 4 : index
    %40 = memref.load %arg0[%c4] : memref<16xi32, #tpu.memory_space<smem>>
    %c4_28 = arith.constant 4 : index
    %41 = memref.load %arg1[%c4_28] : memref<16xi32, #tpu.memory_space<smem>>
    %42 = arith.index_cast %40 : i32 to index
    %c0_29 = arith.constant 0 : index
    %43 = vector.load %arg3[%42, %c0_29] : memref<100x32xf32, #tpu.memory_space<vmem>>, vector<1x32xf32>
    %c4_30 = arith.constant 4 : index
    %c0_31 = arith.constant 0 : index
    %44 = vector.load %arg4[%c4_30, %c0_31] : memref<16x32xf32, #tpu.memory_space<vmem>>, vector<1x32xf32>
    %45 = arith.addf %43, %44 : vector<1x32xf32>
    %46 = arith.index_cast %41 : i32 to index
    %c0_32 = arith.constant 0 : index
    %47 = vector.load %arg5[%46, %c0_32] : memref<2x32xf32, #tpu.memory_space<vmem>>, vector<1x32xf32>
    %48 = arith.addf %45, %47 : vector<1x32xf32>
    %c4_33 = arith.constant 4 : index
    %c0_34 = arith.constant 0 : index
    %49 = vector.load %arg22[%c4_33, %c0_34] : memref<16x32xf32, #tpu.memory_space<vmem>>, vector<1x32xf32>
    tpu.vector_store %arg22[%c4_33, %c0_34], %48 {strides = array<i32>} : memref<16x32xf32, #tpu.memory_space<vmem>>, vector<1x32xf32>,
    %c5 = arith.constant 5 : index
    %50 = memref.load %arg0[%c5] : memref<16xi32, #tpu.memory_space<smem>>
    %c5_35 = arith.constant 5 : index
    %51 = memref.load %arg1[%c5_35] : memref<16xi32, #tpu.memory_space<smem>>
    %52 = arith.index_cast %50 : i32 to index
    %c0_36 = arith.constant 0 : index
    %53 = vector.load %arg3[%52, %c0_36] : memref<100x32xf32, #tpu.memory_space<vmem>>, vector<1x32xf32>
    %c5_37 = arith.constant 5 : index
    %c0_38 = arith.constant 0 : index
    %54 = vector.load %arg4[%c5_37, %c0_38] : memref<16x32xf32, #tpu.memory_space<vmem>>, vector<1x32xf32>
    %55 = arith.addf %53, %54 : vector<1x32xf32>
    %56 = arith.index_cast %51 : i32 to index
    %c0_39 = arith.constant 0 : index
    %57 = vector.load %arg5[%56, %c0_39] : memref<2x32xf32, #tpu.memory_space<vmem>>, vector<1x32xf32>
    %58 = arith.addf %55, %57 : vector<1x32xf32>
    %c5_40 = arith.constant 5 : index
    %c0_41 = arith.constant 0 : index
    %59 = vector.load %arg22[%c5_40, %c0_41] : memref<16x32xf32, #tpu.memory_space<vmem>>, vector<1x32xf32>
    tpu.vector_store %arg22[%c5_40, %c0_41], %58 {strides = array<i32>} : memref<16x32xf32, #tpu.memory_space<vmem>>, vector<1x32xf32>,
    %c6 = arith.constant 6 : index
    %60 = memref.load %arg0[%c6] : memref<16xi32, #tpu.memory_space<smem>>
    %c6_42 = arith.constant 6 : index
    %61 = memref.load %arg1[%c6_42] : memref<16xi32, #tpu.memory_space<smem>>
    %62 = arith.index_cast %60 : i32 to index
    %c0_43 = arith.constant 0 : index
    %63 = vector.load %arg3[%62, %c0_43] : memref<100x32xf32, #tpu.memory_space<vmem>>, vector<1x32xf32>
    %c6_44 = arith.constant 6 : index
    %c0_45 = arith.constant 0 : index
    %64 = vector.load %arg4[%c6_44, %c0_45] : memref<16x32xf32, #tpu.memory_space<vmem>>, vector<1x32xf32>
    %65 = arith.addf %63, %64 : vector<1x32xf32>
    %66 = arith.index_cast %61 : i32 to index
    %c0_46 = arith.constant 0 : index
    %67 = vector.load %arg5[%66, %c0_46] : memref<2x32xf32, #tpu.memory_space<vmem>>, vector<1x32xf32>
    %68 = arith.addf %65, %67 : vector<1x32xf32>
    %c6_47 = arith.constant 6 : index
    %c0_48 = arith.constant 0 : index
    %69 = vector.load %arg22[%c6_47, %c0_48] : memref<16x32xf32, #tpu.memory_space<vmem>>, vector<1x32xf32>
    tpu.vector_store %arg22[%c6_47, %c0_48], %68 {strides = array<i32>} : memref<16x32xf32, #tpu.memory_space<vmem>>, vector<1x32xf32>,
    %c7 = arith.constant 7 : index
    %70 = memref.load %arg0[%c7] : memref<16xi32, #tpu.memory_space<smem>>
    %c7_49 = arith.constant 7 : index
    %71 = memref.load %arg1[%c7_49] : memref<16xi32, #tpu.memory_space<smem>>
    %72 = arith.index_cast %70 : i32 to index
    %c0_50 = arith.constant 0 : index
    %73 = vector.load %arg3[%72, %c0_50] : memref<100x32xf32, #tpu.memory_space<vmem>>, vector<1x32xf32>
    %c7_51 = arith.constant 7 : index
    %c0_52 = arith.constant 0 : index
    %74 = vector.load %arg4[%c7_51, %c0_52] : memref<16x32xf32, #tpu.memory_space<vmem>>, vector<1x32xf32>
    %75 = arith.addf %73, %74 : vector<1x32xf32>
    %76 = arith.index_cast %71 : i32 to index
    %c0_53 = arith.constant 0 : index
    %77 = vector.load %arg5[%76, %c0_53] : memref<2x32xf32, #tpu.memory_space<vmem>>, vector<1x32xf32>
    %78 = arith.addf %75, %77 : vector<1x32xf32>
    %c7_54 = arith.constant 7 : index
    %c0_55 = arith.constant 0 : index
    %79 = vector.load %arg22[%c7_54, %c0_55] : memref<16x32xf32, #tpu.memory_space<vmem>>, vector<1x32xf32>
    tpu.vector_store %arg22[%c7_54, %c0_55], %78 {strides = array<i32>} : memref<16x32xf32, #tpu.memory_space<vmem>>, vector<1x32xf32>,
    %c8 = arith.constant 8 : index
    %80 = memref.load %arg0[%c8] : memref<16xi32, #tpu.memory_space<smem>>
    %c8_56 = arith.constant 8 : index
    %81 = memref.load %arg1[%c8_56] : memref<16xi32, #tpu.memory_space<smem>>
    %82 = arith.index_cast %80 : i32 to index
    %c0_57 = arith.constant 0 : index
    %83 = vector.load %arg3[%82, %c0_57] : memref<100x32xf32, #tpu.memory_space<vmem>>, vector<1x32xf32>
    %c0_58 = arith.constant 0 : index
    %c0_59 = arith.constant 0 : index
    %84 = vector.load %arg4[%c0_58, %c0_59] : memref<16x32xf32, #tpu.memory_space<vmem>>, vector<1x32xf32>
    %85 = arith.addf %83, %84 : vector<1x32xf32>
    %86 = arith.index_cast %81 : i32 to index
    %c0_60 = arith.constant 0 : index
    %87 = vector.load %arg5[%86, %c0_60] : memref<2x32xf32, #tpu.memory_space<vmem>>, vector<1x32xf32>
    %88 = arith.addf %85, %87 : vector<1x32xf32>
    %c8_61 = arith.constant 8 : index
    %c0_62 = arith.constant 0 : index
    %89 = vector.load %arg22[%c8_61, %c0_62] : memref<16x32xf32, #tpu.memory_space<vmem>>, vector<1x32xf32>
    tpu.vector_store %arg22[%c8_61, %c0_62], %88 {strides = array<i32>} : memref<16x32xf32, #tpu.memory_space<vmem>>, vector<1x32xf32>,
    %c9 = arith.constant 9 : index
    %90 = memref.load %arg0[%c9] : memref<16xi32, #tpu.memory_space<smem>>
    %c9_63 = arith.constant 9 : index
    %91 = memref.load %arg1[%c9_63] : memref<16xi32, #tpu.memory_space<smem>>
    %92 = arith.index_cast %90 : i32 to index
    %c0_64 = arith.constant 0 : index
    %93 = vector.load %arg3[%92, %c0_64] : memref<100x32xf32, #tpu.memory_space<vmem>>, vector<1x32xf32>
    %c1_65 = arith.constant 1 : index
    %c0_66 = arith.constant 0 : index
    %94 = vector.load %arg4[%c1_65, %c0_66] : memref<16x32xf32, #tpu.memory_space<vmem>>, vector<1x32xf32>
    %95 = arith.addf %93, %94 : vector<1x32xf32>
    %96 = arith.index_cast %91 : i32 to index
    %c0_67 = arith.constant 0 : index
    %97 = vector.load %arg5[%96, %c0_67] : memref<2x32xf32, #tpu.memory_space<vmem>>, vector<1x32xf32>
    %98 = arith.addf %95, %97 : vector<1x32xf32>
    %c9_68 = arith.constant 9 : index
    %c0_69 = arith.constant 0 : index
    %99 = vector.load %arg22[%c9_68, %c0_69] : memref<16x32xf32, #tpu.memory_space<vmem>>, vector<1x32xf32>
    tpu.vector_store %arg22[%c9_68, %c0_69], %98 {strides = array<i32>} : memref<16x32xf32, #tpu.memory_space<vmem>>, vector<1x32xf32>,
    %c10 = arith.constant 10 : index
    %100 = memref.load %arg0[%c10] : memref<16xi32, #tpu.memory_space<smem>>
    %c10_70 = arith.constant 10 : index
    %101 = memref.load %arg1[%c10_70] : memref<16xi32, #tpu.memory_space<smem>>
    %102 = arith.index_cast %100 : i32 to index
    %c0_71 = arith.constant 0 : index
    %103 = vector.load %arg3[%102, %c0_71] : memref<100x32xf32, #tpu.memory_space<vmem>>, vector<1x32xf32>
    %c2_72 = arith.constant 2 : index
    %c0_73 = arith.constant 0 : index
    %104 = vector.load %arg4[%c2_72, %c0_73] : memref<16x32xf32, #tpu.memory_space<vmem>>, vector<1x32xf32>
    %105 = arith.addf %103, %104 : vector<1x32xf32>
    %106 = arith.index_cast %101 : i32 to index
    %c0_74 = arith.constant 0 : index
    %107 = vector.load %arg5[%106, %c0_74] : memref<2x32xf32, #tpu.memory_space<vmem>>, vector<1x32xf32>
    %108 = arith.addf %105, %107 : vector<1x32xf32>
    %c10_75 = arith.constant 10 : index
    %c0_76 = arith.constant 0 : index
    %109 = vector.load %arg22[%c10_75, %c0_76] : memref<16x32xf32, #tpu.memory_space<vmem>>, vector<1x32xf32>
    tpu.vector_store %arg22[%c10_75, %c0_76], %108 {strides = array<i32>} : memref<16x32xf32, #tpu.memory_space<vmem>>, vector<1x32xf32>,
    %c11 = arith.constant 11 : index
    %110 = memref.load %arg0[%c11] : memref<16xi32, #tpu.memory_space<smem>>
    %c11_77 = arith.constant 11 : index
    %111 = memref.load %arg1[%c11_77] : memref<16xi32, #tpu.memory_space<smem>>
    %112 = arith.index_cast %110 : i32 to index
    %c0_78 = arith.constant 0 : index
    %113 = vector.load %arg3[%112, %c0_78] : memref<100x32xf32, #tpu.memory_space<vmem>>, vector<1x32xf32>
    %c3_79 = arith.constant 3 : index
    %c0_80 = arith.constant 0 : index
    %114 = vector.load %arg4[%c3_79, %c0_80] : memref<16x32xf32, #tpu.memory_space<vmem>>, vector<1x32xf32>
    %115 = arith.addf %113, %114 : vector<1x32xf32>
    %116 = arith.index_cast %111 : i32 to index
    %c0_81 = arith.constant 0 : index
    %117 = vector.load %arg5[%116, %c0_81] : memref<2x32xf32, #tpu.memory_space<vmem>>, vector<1x32xf32>
    %118 = arith.addf %115, %117 : vector<1x32xf32>
    %c11_82 = arith.constant 11 : index
    %c0_83 = arith.constant 0 : index
    %119 = vector.load %arg22[%c11_82, %c0_83] : memref<16x32xf32, #tpu.memory_space<vmem>>, vector<1x32xf32>
    tpu.vector_store %arg22[%c11_82, %c0_83], %118 {strides = array<i32>} : memref<16x32xf32, #tpu.memory_space<vmem>>, vector<1x32xf32>,
    %c12 = arith.constant 12 : index
    %120 = memref.load %arg0[%c12] : memref<16xi32, #tpu.memory_space<smem>>
    %c12_84 = arith.constant 12 : index
    %121 = memref.load %arg1[%c12_84] : memref<16xi32, #tpu.memory_space<smem>>
    %122 = arith.index_cast %120 : i32 to index
    %c0_85 = arith.constant 0 : index
    %123 = vector.load %arg3[%122, %c0_85] : memref<100x32xf32, #tpu.memory_space<vmem>>, vector<1x32xf32>
    %c4_86 = arith.constant 4 : index
    %c0_87 = arith.constant 0 : index
    %124 = vector.load %arg4[%c4_86, %c0_87] : memref<16x32xf32, #tpu.memory_space<vmem>>, vector<1x32xf32>
    %125 = arith.addf %123, %124 : vector<1x32xf32>
    %126 = arith.index_cast %121 : i32 to index
    %c0_88 = arith.constant 0 : index
    %127 = vector.load %arg5[%126, %c0_88] : memref<2x32xf32, #tpu.memory_space<vmem>>, vector<1x32xf32>
    %128 = arith.addf %125, %127 : vector<1x32xf32>
    %c12_89 = arith.constant 12 : index
    %c0_90 = arith.constant 0 : index
    %129 = vector.load %arg22[%c12_89, %c0_90] : memref<16x32xf32, #tpu.memory_space<vmem>>, vector<1x32xf32>
    tpu.vector_store %arg22[%c12_89, %c0_90], %128 {strides = array<i32>} : memref<16x32xf32, #tpu.memory_space<vmem>>, vector<1x32xf32>,
    %c13 = arith.constant 13 : index
    %130 = memref.load %arg0[%c13] : memref<16xi32, #tpu.memory_space<smem>>
    %c13_91 = arith.constant 13 : index
    %131 = memref.load %arg1[%c13_91] : memref<16xi32, #tpu.memory_space<smem>>
    %132 = arith.index_cast %130 : i32 to index
    %c0_92 = arith.constant 0 : index
    %133 = vector.load %arg3[%132, %c0_92] : memref<100x32xf32, #tpu.memory_space<vmem>>, vector<1x32xf32>
    %c5_93 = arith.constant 5 : index
    %c0_94 = arith.constant 0 : index
    %134 = vector.load %arg4[%c5_93, %c0_94] : memref<16x32xf32, #tpu.memory_space<vmem>>, vector<1x32xf32>
    %135 = arith.addf %133, %134 : vector<1x32xf32>
    %136 = arith.index_cast %131 : i32 to index
    %c0_95 = arith.constant 0 : index
    %137 = vector.load %arg5[%136, %c0_95] : memref<2x32xf32, #tpu.memory_space<vmem>>, vector<1x32xf32>
    %138 = arith.addf %135, %137 : vector<1x32xf32>
    %c13_96 = arith.constant 13 : index
    %c0_97 = arith.constant 0 : index
    %139 = vector.load %arg22[%c13_96, %c0_97] : memref<16x32xf32, #tpu.memory_space<vmem>>, vector<1x32xf32>
    tpu.vector_store %arg22[%c13_96, %c0_97], %138 {strides = array<i32>} : memref<16x32xf32, #tpu.memory_space<vmem>>, vector<1x32xf32>,
    %c14 = arith.constant 14 : index
    %140 = memref.load %arg0[%c14] : memref<16xi32, #tpu.memory_space<smem>>
    %c14_98 = arith.constant 14 : index
    %141 = memref.load %arg1[%c14_98] : memref<16xi32, #tpu.memory_space<smem>>
    %142 = arith.index_cast %140 : i32 to index
    %c0_99 = arith.constant 0 : index
    %143 = vector.load %arg3[%142, %c0_99] : memref<100x32xf32, #tpu.memory_space<vmem>>, vector<1x32xf32>
    %c6_100 = arith.constant 6 : index
    %c0_101 = arith.constant 0 : index
    %144 = vector.load %arg4[%c6_100, %c0_101] : memref<16x32xf32, #tpu.memory_space<vmem>>, vector<1x32xf32>
    %145 = arith.addf %143, %144 : vector<1x32xf32>
    %146 = arith.index_cast %141 : i32 to index
    %c0_102 = arith.constant 0 : index
    %147 = vector.load %arg5[%146, %c0_102] : memref<2x32xf32, #tpu.memory_space<vmem>>, vector<1x32xf32>
    %148 = arith.addf %145, %147 : vector<1x32xf32>
    %c14_103 = arith.constant 14 : index
    %c0_104 = arith.constant 0 : index
    %149 = vector.load %arg22[%c14_103, %c0_104] : memref<16x32xf32, #tpu.memory_space<vmem>>, vector<1x32xf32>
    tpu.vector_store %arg22[%c14_103, %c0_104], %148 {strides = array<i32>} : memref<16x32xf32, #tpu.memory_space<vmem>>, vector<1x32xf32>,
    %c15 = arith.constant 15 : index
    %150 = memref.load %arg0[%c15] : memref<16xi32, #tpu.memory_space<smem>>
    %c15_105 = arith.constant 15 : index
    %151 = memref.load %arg1[%c15_105] : memref<16xi32, #tpu.memory_space<smem>>
    %152 = arith.index_cast %150 : i32 to index
    %c0_106 = arith.constant 0 : index
    %153 = vector.load %arg3[%152, %c0_106] : memref<100x32xf32, #tpu.memory_space<vmem>>, vector<1x32xf32>
    %c7_107 = arith.constant 7 : index
    %c0_108 = arith.constant 0 : index
    %154 = vector.load %arg4[%c7_107, %c0_108] : memref<16x32xf32, #tpu.memory_space<vmem>>, vector<1x32xf32>
    %155 = arith.addf %153, %154 : vector<1x32xf32>
    %156 = arith.index_cast %151 : i32 to index
    %c0_109 = arith.constant 0 : index
    %157 = vector.load %arg5[%156, %c0_109] : memref<2x32xf32, #tpu.memory_space<vmem>>, vector<1x32xf32>
    %158 = arith.addf %155, %157 : vector<1x32xf32>
    %c15_110 = arith.constant 15 : index
    %c0_111 = arith.constant 0 : index
    %159 = vector.load %arg22[%c15_110, %c0_111] : memref<16x32xf32, #tpu.memory_space<vmem>>, vector<1x32xf32>
    tpu.vector_store %arg22[%c15_110, %c0_111], %158 {strides = array<i32>} : memref<16x32xf32, #tpu.memory_space<vmem>>, vector<1x32xf32>,
    %c0_112 = arith.constant 0 : index
    %c0_113 = arith.constant 0 : index
    %160 = vector.load %arg22[%c0_112, %c0_113] : memref<16x32xf32, #tpu.memory_space<vmem>>, vector<16x32xf32>
    %c0_114 = arith.constant 0 : index
    %c0_115 = arith.constant 0 : index
    %161 = vector.load %arg6[%c0_114, %c0_115] : memref<1x32xf32, #tpu.memory_space<vmem>>, vector<1x32xf32>
    %c0_116 = arith.constant 0 : index
    %c0_117 = arith.constant 0 : index
    %162 = vector.load %arg7[%c0_116, %c0_117] : memref<1x32xf32, #tpu.memory_space<vmem>>, vector<1x32xf32>
    %cst = arith.constant dense<0.000000e+00> : vector<16xf32>
    %163 = vector.multi_reduction <add>, %160, %cst [1] : vector<16x32xf32> to vector<16xf32>
    %164 = vector.shape_cast %163 : vector<16xf32> to vector<16x1xf32>
    %cst_118 = arith.constant 3.200000e+01 : f32
    %165 = vector.broadcast %cst_118 : f32 to vector<16x1xf32>
    %166 = arith.divf %164, %165 : vector<16x1xf32>
    %167 = vector.broadcast %166 : vector<16x1xf32> to vector<16x32xf32>
    %168 = arith.subf %160, %167 : vector<16x32xf32>
    %169 = arith.mulf %168, %168 : vector<16x32xf32>
    %cst_119 = arith.constant dense<0.000000e+00> : vector<16xf32>
    %170 = vector.multi_reduction <add>, %169, %cst_119 [1] : vector<16x32xf32> to vector<16xf32>
    %171 = vector.shape_cast %170 : vector<16xf32> to vector<16x1xf32>
    %cst_120 = arith.constant 3.200000e+01 : f32
    %172 = vector.broadcast %cst_120 : f32 to vector<16x1xf32>
    %173 = arith.divf %171, %172 : vector<16x1xf32>
    %174 = vector.broadcast %166 : vector<16x1xf32> to vector<16x32xf32>
    %175 = arith.subf %160, %174 : vector<16x32xf32>
    %cst_121 = arith.constant 9.99999996E-13 : f32
    %176 = vector.broadcast %cst_121 : f32 to vector<16x1xf32>
    %177 = arith.addf %173, %176 : vector<16x1xf32>
    %178 = math.rsqrt %177 : vector<16x1xf32>
    %179 = vector.broadcast %178 : vector<16x1xf32> to vector<16x32xf32>
    %180 = arith.mulf %175, %179 : vector<16x32xf32>
    %181 = vector.broadcast %161 : vector<1x32xf32> to vector<16x32xf32>
    %182 = arith.mulf %180, %181 : vector<16x32xf32>
    %183 = vector.broadcast %162 : vector<1x32xf32> to vector<16x32xf32>
    %184 = arith.addf %182, %183 : vector<16x32xf32>
    %c0_122 = arith.constant 0 : index
    %c0_123 = arith.constant 0 : index
    %185 = vector.load %arg2[%c0_122, %c0_123] : memref<16x16xf32, #tpu.memory_space<vmem>>, vector<16x16xf32>
    %c0_124 = arith.constant 0 : index
    %c0_125 = arith.constant 0 : index
    %c0_126 = arith.constant 0 : index
    %186 = vector.load %arg8[%c0_124, %c0_125, %c0_126] : memref<2x32x96xf32, #tpu.memory_space<vmem>>, vector<1x32x96xf32>
    %187 = vector.shape_cast %186 : vector<1x32x96xf32> to vector<32x96xf32>
    %cst_127 = arith.constant dense<0.000000e+00> : vector<16x96xf32>
    %188 = tpu.matmul %184, %187, %cst_127 {dimension_numbers = #tpu.dot_dimension_numbers<[1], [0], [0], [1], [0, 0, 1, 1], [], []>} : vector<16x32xf32>, vector<32x96xf32>, vector<16x96xf32> -> vector<16x96xf32>
    %c0_128 = arith.constant 0 : index
    %c0_129 = arith.constant 0 : index
    %c0_130 = arith.constant 0 : index
    %189 = vector.load %arg9[%c0_128, %c0_129, %c0_130] : memref<2x1x96xf32, #tpu.memory_space<vmem>>, vector<1x1x96xf32>
    %190 = vector.shape_cast %189 : vector<1x1x96xf32> to vector<1x96xf32>
    %191 = vector.broadcast %190 : vector<1x96xf32> to vector<16x96xf32>
    %192 = arith.addf %188, %191 : vector<16x96xf32>
    %c0_131 = arith.constant 0 : index
    %c0_132 = arith.constant 0 : index
    %c0_133 = arith.constant 0 : index
    %193 = vector.load %arg10[%c0_131, %c0_132, %c0_133] : memref<2x32x32xf32, #tpu.memory_space<vmem>>, vector<1x32x32xf32>
    %194 = vector.shape_cast %193 : vector<1x32x32xf32> to vector<32x32xf32>
    %195 = vector.extract_strided_slice %192 {offsets = [0, 0], sizes = [16, 16], strides = [1, 1]} : vector<16x96xf32> to vector<16x16xf32>
    %196 = vector.extract_strided_slice %192 {offsets = [0, 32], sizes = [16, 16], strides = [1, 1]} : vector<16x96xf32> to vector<16x16xf32>
    %197 = vector.extract_strided_slice %192 {offsets = [0, 64], sizes = [16, 16], strides = [1, 1]} : vector<16x96xf32> to vector<16x16xf32>
    %cst_134 = arith.constant dense<0.000000e+00> : vector<16x16xf32>
    %198 = tpu.matmul %195, %196, %cst_134 {dimension_numbers = #tpu.dot_dimension_numbers<[1], [1], [0], [0], [0, 0, 1, 0], [], []>} : vector<16x16xf32>, vector<16x16xf32>, vector<16x16xf32> -> vector<16x16xf32>
    %199 = arith.addf %198, %185 : vector<16x16xf32>
    %cst_135 = arith.constant dense<0xFF800000> : vector<16xf32>
    %200 = vector.multi_reduction <maximumf>, %199, %cst_135 [1] : vector<16x16xf32> to vector<16xf32>
    %201 = vector.shape_cast %200 : vector<16xf32> to vector<16x1xf32>
    %202 = vector.broadcast %201 : vector<16x1xf32> to vector<16x16xf32>
    %203 = arith.subf %199, %202 : vector<16x16xf32>
    %204 = math.exp %203 : vector<16x16xf32>
    %cst_136 = arith.constant dense<0.000000e+00> : vector<16xf32>
    %205 = vector.multi_reduction <add>, %204, %cst_136 [1] : vector<16x16xf32> to vector<16xf32>
    %206 = vector.shape_cast %205 : vector<16xf32> to vector<16x1xf32>
    %207 = tpu.reciprocal %206 {approx = true} : vector<16x1xf32> -> vector<16x1xf32>
    %208 = vector.broadcast %207 : vector<16x1xf32> to vector<16x16xf32>
    %209 = arith.mulf %204, %208 : vector<16x16xf32>
    %cst_137 = arith.constant dense<0.000000e+00> : vector<16x16xf32>
    %210 = tpu.matmul %209, %197, %cst_137 {dimension_numbers = #tpu.dot_dimension_numbers<[1], [0], [0], [1], [0, 0, 1, 1], [], []>} : vector<16x16xf32>, vector<16x16xf32>, vector<16x16xf32> -> vector<16x16xf32>
    %211 = vector.extract_strided_slice %194 {offsets = [0, 0], sizes = [16, 32], strides = [1, 1]} : vector<32x32xf32> to vector<16x32xf32>
    %cst_138 = arith.constant dense<0.000000e+00> : vector<16x32xf32>
    %212 = tpu.matmul %210, %211, %cst_138 {dimension_numbers = #tpu.dot_dimension_numbers<[1], [0], [0], [1], [0, 0, 1, 1], [], []>} : vector<16x16xf32>, vector<16x32xf32>, vector<16x32xf32> -> vector<16x32xf32>
    %213 = vector.extract_strided_slice %192 {offsets = [0, 16], sizes = [16, 16], strides = [1, 1]} : vector<16x96xf32> to vector<16x16xf32>
    %214 = vector.extract_strided_slice %192 {offsets = [0, 48], sizes = [16, 16], strides = [1, 1]} : vector<16x96xf32> to vector<16x16xf32>
    %215 = vector.extract_strided_slice %192 {offsets = [0, 80], sizes = [16, 16], strides = [1, 1]} : vector<16x96xf32> to vector<16x16xf32>
    %cst_139 = arith.constant dense<0.000000e+00> : vector<16x16xf32>
    %216 = tpu.matmul %213, %214, %cst_139 {dimension_numbers = #tpu.dot_dimension_numbers<[1], [1], [0], [0], [0, 0, 1, 0], [], []>} : vector<16x16xf32>, vector<16x16xf32>, vector<16x16xf32> -> vector<16x16xf32>
    %217 = arith.addf %216, %185 : vector<16x16xf32>
    %cst_140 = arith.constant dense<0xFF800000> : vector<16xf32>
    %218 = vector.multi_reduction <maximumf>, %217, %cst_140 [1] : vector<16x16xf32> to vector<16xf32>
    %219 = vector.shape_cast %218 : vector<16xf32> to vector<16x1xf32>
    %220 = vector.broadcast %219 : vector<16x1xf32> to vector<16x16xf32>
    %221 = arith.subf %217, %220 : vector<16x16xf32>
    %222 = math.exp %221 : vector<16x16xf32>
    %cst_141 = arith.constant dense<0.000000e+00> : vector<16xf32>
    %223 = vector.multi_reduction <add>, %222, %cst_141 [1] : vector<16x16xf32> to vector<16xf32>
    %224 = vector.shape_cast %223 : vector<16xf32> to vector<16x1xf32>
    %225 = tpu.reciprocal %224 {approx = true} : vector<16x1xf32> -> vector<16x1xf32>
    %226 = vector.broadcast %225 : vector<16x1xf32> to vector<16x16xf32>
    %227 = arith.mulf %222, %226 : vector<16x16xf32>
    %cst_142 = arith.constant dense<0.000000e+00> : vector<16x16xf32>
    %228 = tpu.matmul %227, %215, %cst_142 {dimension_numbers = #tpu.dot_dimension_numbers<[1], [0], [0], [1], [0, 0, 1, 1], [], []>} : vector<16x16xf32>, vector<16x16xf32>, vector<16x16xf32> -> vector<16x16xf32>
    %229 = vector.extract_strided_slice %194 {offsets = [16, 0], sizes = [16, 32], strides = [1, 1]} : vector<32x32xf32> to vector<16x32xf32>
    %cst_143 = arith.constant dense<0.000000e+00> : vector<16x32xf32>
    %230 = tpu.matmul %228, %229, %cst_143 {dimension_numbers = #tpu.dot_dimension_numbers<[1], [0], [0], [1], [0, 0, 1, 1], [], []>} : vector<16x16xf32>, vector<16x32xf32>, vector<16x32xf32> -> vector<16x32xf32>
    %231 = arith.addf %212, %230 : vector<16x32xf32>
    %c0_144 = arith.constant 0 : index
    %c0_145 = arith.constant 0 : index
    %c0_146 = arith.constant 0 : index
    %232 = vector.load %arg11[%c0_144, %c0_145, %c0_146] : memref<2x1x32xf32, #tpu.memory_space<vmem>>, vector<1x1x32xf32>
    %233 = vector.shape_cast %232 : vector<1x1x32xf32> to vector<1x32xf32>
    %234 = vector.broadcast %233 : vector<1x32xf32> to vector<16x32xf32>
    %235 = arith.addf %231, %234 : vector<16x32xf32>
    %236 = arith.addf %235, %184 : vector<16x32xf32>
    %c0_147 = arith.constant 0 : index
    %c0_148 = arith.constant 0 : index
    %c0_149 = arith.constant 0 : index
    %237 = vector.load %arg12[%c0_147, %c0_148, %c0_149] : memref<2x1x32xf32, #tpu.memory_space<vmem>>, vector<1x1x32xf32>
    %238 = vector.shape_cast %237 : vector<1x1x32xf32> to vector<1x32xf32>
    %c0_150 = arith.constant 0 : index
    %c0_151 = arith.constant 0 : index
    %c0_152 = arith.constant 0 : index
    %239 = vector.load %arg13[%c0_150, %c0_151, %c0_152] : memref<2x1x32xf32, #tpu.memory_space<vmem>>, vector<1x1x32xf32>
    %240 = vector.shape_cast %239 : vector<1x1x32xf32> to vector<1x32xf32>
    %cst_153 = arith.constant dense<0.000000e+00> : vector<16xf32>
    %241 = vector.multi_reduction <add>, %236, %cst_153 [1] : vector<16x32xf32> to vector<16xf32>
    %242 = vector.shape_cast %241 : vector<16xf32> to vector<16x1xf32>
    %cst_154 = arith.constant 3.200000e+01 : f32
    %243 = vector.broadcast %cst_154 : f32 to vector<16x1xf32>
    %244 = arith.divf %242, %243 : vector<16x1xf32>
    %245 = vector.broadcast %244 : vector<16x1xf32> to vector<16x32xf32>
    %246 = arith.subf %236, %245 : vector<16x32xf32>
    %247 = arith.mulf %246, %246 : vector<16x32xf32>
    %cst_155 = arith.constant dense<0.000000e+00> : vector<16xf32>
    %248 = vector.multi_reduction <add>, %247, %cst_155 [1] : vector<16x32xf32> to vector<16xf32>
    %249 = vector.shape_cast %248 : vector<16xf32> to vector<16x1xf32>
    %cst_156 = arith.constant 3.200000e+01 : f32
    %250 = vector.broadcast %cst_156 : f32 to vector<16x1xf32>
    %251 = arith.divf %249, %250 : vector<16x1xf32>
    %252 = vector.broadcast %244 : vector<16x1xf32> to vector<16x32xf32>
    %253 = arith.subf %236, %252 : vector<16x32xf32>
    %cst_157 = arith.constant 9.99999996E-13 : f32
    %254 = vector.broadcast %cst_157 : f32 to vector<16x1xf32>
    %255 = arith.addf %251, %254 : vector<16x1xf32>
    %256 = math.rsqrt %255 : vector<16x1xf32>
    %257 = vector.broadcast %256 : vector<16x1xf32> to vector<16x32xf32>
    %258 = arith.mulf %253, %257 : vector<16x32xf32>
    %259 = vector.broadcast %238 : vector<1x32xf32> to vector<16x32xf32>
    %260 = arith.mulf %258, %259 : vector<16x32xf32>
    %261 = vector.broadcast %240 : vector<1x32xf32> to vector<16x32xf32>
    %262 = arith.addf %260, %261 : vector<16x32xf32>
    %c0_158 = arith.constant 0 : index
    %c0_159 = arith.constant 0 : index
    %c0_160 = arith.constant 0 : index
    %263 = vector.load %arg14[%c0_158, %c0_159, %c0_160] : memref<2x32x64xf32, #tpu.memory_space<vmem>>, vector<1x32x64xf32>
    %264 = vector.shape_cast %263 : vector<1x32x64xf32> to vector<32x64xf32>
    %cst_161 = arith.constant dense<0.000000e+00> : vector<16x64xf32>
    %265 = tpu.matmul %262, %264, %cst_161 {dimension_numbers = #tpu.dot_dimension_numbers<[1], [0], [0], [1], [0, 0, 1, 1], [], []>} : vector<16x32xf32>, vector<32x64xf32>, vector<16x64xf32> -> vector<16x64xf32>
    %c0_162 = arith.constant 0 : index
    %c0_163 = arith.constant 0 : index
    %c0_164 = arith.constant 0 : index
    %266 = vector.load %arg15[%c0_162, %c0_163, %c0_164] : memref<2x1x64xf32, #tpu.memory_space<vmem>>, vector<1x1x64xf32>
    %267 = vector.shape_cast %266 : vector<1x1x64xf32> to vector<1x64xf32>
    %268 = vector.broadcast %267 : vector<1x64xf32> to vector<16x64xf32>
    %269 = arith.addf %265, %268 : vector<16x64xf32>
    %cst_165 = arith.constant 5.000000e-01 : f32
    %270 = vector.broadcast %cst_165 : f32 to vector<16x64xf32>
    %271 = arith.mulf %270, %269 : vector<16x64xf32>
    %cst_166 = arith.constant 4.471500e-02 : f32
    %272 = vector.broadcast %cst_166 : f32 to vector<16x64xf32>
    %273 = arith.mulf %272, %269 : vector<16x64xf32>
    %274 = arith.mulf %273, %269 : vector<16x64xf32>
    %275 = arith.mulf %274, %269 : vector<16x64xf32>
    %276 = arith.addf %269, %275 : vector<16x64xf32>
    %cst_167 = arith.constant 0.797884583 : f32
    %277 = vector.broadcast %cst_167 : f32 to vector<16x64xf32>
    %278 = arith.mulf %277, %276 : vector<16x64xf32>
    %279 = math.tanh %278 : vector<16x64xf32>
    %cst_168 = arith.constant 1.000000e+00 : f32
    %280 = vector.broadcast %cst_168 : f32 to vector<16x64xf32>
    %281 = arith.addf %280, %279 : vector<16x64xf32>
    %282 = arith.mulf %271, %281 : vector<16x64xf32>
    %c0_169 = arith.constant 0 : index
    %c0_170 = arith.constant 0 : index
    %c0_171 = arith.constant 0 : index
    %283 = vector.load %arg16[%c0_169, %c0_170, %c0_171] : memref<2x64x32xf32, #tpu.memory_space<vmem>>, vector<1x64x32xf32>
    %284 = vector.shape_cast %283 : vector<1x64x32xf32> to vector<64x32xf32>
    %cst_172 = arith.constant dense<0.000000e+00> : vector<16x32xf32>
    %285 = tpu.matmul %282, %284, %cst_172 {dimension_numbers = #tpu.dot_dimension_numbers<[1], [0], [0], [1], [0, 0, 1, 1], [], []>} : vector<16x64xf32>, vector<64x32xf32>, vector<16x32xf32> -> vector<16x32xf32>
    %c0_173 = arith.constant 0 : index
    %c0_174 = arith.constant 0 : index
    %c0_175 = arith.constant 0 : index
    %286 = vector.load %arg17[%c0_173, %c0_174, %c0_175] : memref<2x1x32xf32, #tpu.memory_space<vmem>>, vector<1x1x32xf32>
    %287 = vector.shape_cast %286 : vector<1x1x32xf32> to vector<1x32xf32>
    %288 = vector.broadcast %287 : vector<1x32xf32> to vector<16x32xf32>
    %289 = arith.addf %285, %288 : vector<16x32xf32>
    %290 = arith.addf %289, %262 : vector<16x32xf32>
    %c0_176 = arith.constant 0 : index
    %c0_177 = arith.constant 0 : index
    %c0_178 = arith.constant 0 : index
    %291 = vector.load %arg18[%c0_176, %c0_177, %c0_178] : memref<2x1x32xf32, #tpu.memory_space<vmem>>, vector<1x1x32xf32>
    %292 = vector.shape_cast %291 : vector<1x1x32xf32> to vector<1x32xf32>
    %c0_179 = arith.constant 0 : index
    %c0_180 = arith.constant 0 : index
    %c0_181 = arith.constant 0 : index
    %293 = vector.load %arg19[%c0_179, %c0_180, %c0_181] : memref<2x1x32xf32, #tpu.memory_space<vmem>>, vector<1x1x32xf32>
    %294 = vector.shape_cast %293 : vector<1x1x32xf32> to vector<1x32xf32>
    %cst_182 = arith.constant dense<0.000000e+00> : vector<16xf32>
    %295 = vector.multi_reduction <add>, %290, %cst_182 [1] : vector<16x32xf32> to vector<16xf32>
    %296 = vector.shape_cast %295 : vector<16xf32> to vector<16x1xf32>
    %cst_183 = arith.constant 3.200000e+01 : f32
    %297 = vector.broadcast %cst_183 : f32 to vector<16x1xf32>
    %298 = arith.divf %296, %297 : vector<16x1xf32>
    %299 = vector.broadcast %298 : vector<16x1xf32> to vector<16x32xf32>
    %300 = arith.subf %290, %299 : vector<16x32xf32>
    %301 = arith.mulf %300, %300 : vector<16x32xf32>
    %cst_184 = arith.constant dense<0.000000e+00> : vector<16xf32>
    %302 = vector.multi_reduction <add>, %301, %cst_184 [1] : vector<16x32xf32> to vector<16xf32>
    %303 = vector.shape_cast %302 : vector<16xf32> to vector<16x1xf32>
    %cst_185 = arith.constant 3.200000e+01 : f32
    %304 = vector.broadcast %cst_185 : f32 to vector<16x1xf32>
    %305 = arith.divf %303, %304 : vector<16x1xf32>
    %306 = vector.broadcast %298 : vector<16x1xf32> to vector<16x32xf32>
    %307 = arith.subf %290, %306 : vector<16x32xf32>
    %cst_186 = arith.constant 9.99999996E-13 : f32
    %308 = vector.broadcast %cst_186 : f32 to vector<16x1xf32>
    %309 = arith.addf %305, %308 : vector<16x1xf32>
    %310 = math.rsqrt %309 : vector<16x1xf32>
    %311 = vector.broadcast %310 : vector<16x1xf32> to vector<16x32xf32>
    %312 = arith.mulf %307, %311 : vector<16x32xf32>
    %313 = vector.broadcast %292 : vector<1x32xf32> to vector<16x32xf32>
    %314 = arith.mulf %312, %313 : vector<16x32xf32>
    %315 = vector.broadcast %294 : vector<1x32xf32> to vector<16x32xf32>
    %316 = arith.addf %314, %315 : vector<16x32xf32>
    %c1_187 = arith.constant 1 : index
    %c0_188 = arith.constant 0 : index
    %c0_189 = arith.constant 0 : index
    %317 = vector.load %arg8[%c1_187, %c0_188, %c0_189] : memref<2x32x96xf32, #tpu.memory_space<vmem>>, vector<1x32x96xf32>
    %318 = vector.shape_cast %317 : vector<1x32x96xf32> to vector<32x96xf32>
    %cst_190 = arith.constant dense<0.000000e+00> : vector<16x96xf32>
    %319 = tpu.matmul %316, %318, %cst_190 {dimension_numbers = #tpu.dot_dimension_numbers<[1], [0], [0], [1], [0, 0, 1, 1], [], []>} : vector<16x32xf32>, vector<32x96xf32>, vector<16x96xf32> -> vector<16x96xf32>
    %c1_191 = arith.constant 1 : index
    %c0_192 = arith.constant 0 : index
    %c0_193 = arith.constant 0 : index
    %320 = vector.load %arg9[%c1_191, %c0_192, %c0_193] : memref<2x1x96xf32, #tpu.memory_space<vmem>>, vector<1x1x96xf32>
    %321 = vector.shape_cast %320 : vector<1x1x96xf32> to vector<1x96xf32>
    %322 = vector.broadcast %321 : vector<1x96xf32> to vector<16x96xf32>
    %323 = arith.addf %319, %322 : vector<16x96xf32>
    %c1_194 = arith.constant 1 : index
    %c0_195 = arith.constant 0 : index
    %c0_196 = arith.constant 0 : index
    %324 = vector.load %arg10[%c1_194, %c0_195, %c0_196] : memref<2x32x32xf32, #tpu.memory_space<vmem>>, vector<1x32x32xf32>
    %325 = vector.shape_cast %324 : vector<1x32x32xf32> to vector<32x32xf32>
    %326 = vector.extract_strided_slice %323 {offsets = [0, 0], sizes = [16, 16], strides = [1, 1]} : vector<16x96xf32> to vector<16x16xf32>
    %327 = vector.extract_strided_slice %323 {offsets = [0, 32], sizes = [16, 16], strides = [1, 1]} : vector<16x96xf32> to vector<16x16xf32>
    %328 = vector.extract_strided_slice %323 {offsets = [0, 64], sizes = [16, 16], strides = [1, 1]} : vector<16x96xf32> to vector<16x16xf32>
    %cst_197 = arith.constant dense<0.000000e+00> : vector<16x16xf32>
    %329 = tpu.matmul %326, %327, %cst_197 {dimension_numbers = #tpu.dot_dimension_numbers<[1], [1], [0], [0], [0, 0, 1, 0], [], []>} : vector<16x16xf32>, vector<16x16xf32>, vector<16x16xf32> -> vector<16x16xf32>
    %330 = arith.addf %329, %185 : vector<16x16xf32>
    %cst_198 = arith.constant dense<0xFF800000> : vector<16xf32>
    %331 = vector.multi_reduction <maximumf>, %330, %cst_198 [1] : vector<16x16xf32> to vector<16xf32>
    %332 = vector.shape_cast %331 : vector<16xf32> to vector<16x1xf32>
    %333 = vector.broadcast %332 : vector<16x1xf32> to vector<16x16xf32>
    %334 = arith.subf %330, %333 : vector<16x16xf32>
    %335 = math.exp %334 : vector<16x16xf32>
    %cst_199 = arith.constant dense<0.000000e+00> : vector<16xf32>
    %336 = vector.multi_reduction <add>, %335, %cst_199 [1] : vector<16x16xf32> to vector<16xf32>
    %337 = vector.shape_cast %336 : vector<16xf32> to vector<16x1xf32>
    %338 = tpu.reciprocal %337 {approx = true} : vector<16x1xf32> -> vector<16x1xf32>
    %339 = vector.broadcast %338 : vector<16x1xf32> to vector<16x16xf32>
    %340 = arith.mulf %335, %339 : vector<16x16xf32>
    %cst_200 = arith.constant dense<0.000000e+00> : vector<16x16xf32>
    %341 = tpu.matmul %340, %328, %cst_200 {dimension_numbers = #tpu.dot_dimension_numbers<[1], [0], [0], [1], [0, 0, 1, 1], [], []>} : vector<16x16xf32>, vector<16x16xf32>, vector<16x16xf32> -> vector<16x16xf32>
    %342 = vector.extract_strided_slice %325 {offsets = [0, 0], sizes = [16, 32], strides = [1, 1]} : vector<32x32xf32> to vector<16x32xf32>
    %cst_201 = arith.constant dense<0.000000e+00> : vector<16x32xf32>
    %343 = tpu.matmul %341, %342, %cst_201 {dimension_numbers = #tpu.dot_dimension_numbers<[1], [0], [0], [1], [0, 0, 1, 1], [], []>} : vector<16x16xf32>, vector<16x32xf32>, vector<16x32xf32> -> vector<16x32xf32>
    %344 = vector.extract_strided_slice %323 {offsets = [0, 16], sizes = [16, 16], strides = [1, 1]} : vector<16x96xf32> to vector<16x16xf32>
    %345 = vector.extract_strided_slice %323 {offsets = [0, 48], sizes = [16, 16], strides = [1, 1]} : vector<16x96xf32> to vector<16x16xf32>
    %346 = vector.extract_strided_slice %323 {offsets = [0, 80], sizes = [16, 16], strides = [1, 1]} : vector<16x96xf32> to vector<16x16xf32>
    %cst_202 = arith.constant dense<0.000000e+00> : vector<16x16xf32>
    %347 = tpu.matmul %344, %345, %cst_202 {dimension_numbers = #tpu.dot_dimension_numbers<[1], [1], [0], [0], [0, 0, 1, 0], [], []>} : vector<16x16xf32>, vector<16x16xf32>, vector<16x16xf32> -> vector<16x16xf32>
    %348 = arith.addf %347, %185 : vector<16x16xf32>
    %cst_203 = arith.constant dense<0xFF800000> : vector<16xf32>
    %349 = vector.multi_reduction <maximumf>, %348, %cst_203 [1] : vector<16x16xf32> to vector<16xf32>
    %350 = vector.shape_cast %349 : vector<16xf32> to vector<16x1xf32>
    %351 = vector.broadcast %350 : vector<16x1xf32> to vector<16x16xf32>
    %352 = arith.subf %348, %351 : vector<16x16xf32>
    %353 = math.exp %352 : vector<16x16xf32>
    %cst_204 = arith.constant dense<0.000000e+00> : vector<16xf32>
    %354 = vector.multi_reduction <add>, %353, %cst_204 [1] : vector<16x16xf32> to vector<16xf32>
    %355 = vector.shape_cast %354 : vector<16xf32> to vector<16x1xf32>
    %356 = tpu.reciprocal %355 {approx = true} : vector<16x1xf32> -> vector<16x1xf32>
    %357 = vector.broadcast %356 : vector<16x1xf32> to vector<16x16xf32>
    %358 = arith.mulf %353, %357 : vector<16x16xf32>
    %cst_205 = arith.constant dense<0.000000e+00> : vector<16x16xf32>
    %359 = tpu.matmul %358, %346, %cst_205 {dimension_numbers = #tpu.dot_dimension_numbers<[1], [0], [0], [1], [0, 0, 1, 1], [], []>} : vector<16x16xf32>, vector<16x16xf32>, vector<16x16xf32> -> vector<16x16xf32>
    %360 = vector.extract_strided_slice %325 {offsets = [16, 0], sizes = [16, 32], strides = [1, 1]} : vector<32x32xf32> to vector<16x32xf32>
    %cst_206 = arith.constant dense<0.000000e+00> : vector<16x32xf32>
    %361 = tpu.matmul %359, %360, %cst_206 {dimension_numbers = #tpu.dot_dimension_numbers<[1], [0], [0], [1], [0, 0, 1, 1], [], []>} : vector<16x16xf32>, vector<16x32xf32>, vector<16x32xf32> -> vector<16x32xf32>
    %362 = arith.addf %343, %361 : vector<16x32xf32>
    %c1_207 = arith.constant 1 : index
    %c0_208 = arith.constant 0 : index
    %c0_209 = arith.constant 0 : index
    %363 = vector.load %arg11[%c1_207, %c0_208, %c0_209] : memref<2x1x32xf32, #tpu.memory_space<vmem>>, vector<1x1x32xf32>
    %364 = vector.shape_cast %363 : vector<1x1x32xf32> to vector<1x32xf32>
    %365 = vector.broadcast %364 : vector<1x32xf32> to vector<16x32xf32>
    %366 = arith.addf %362, %365 : vector<16x32xf32>
    %367 = arith.addf %366, %316 : vector<16x32xf32>
    %c1_210 = arith.constant 1 : index
    %c0_211 = arith.constant 0 : index
    %c0_212 = arith.constant 0 : index
    %368 = vector.load %arg12[%c1_210, %c0_211, %c0_212] : memref<2x1x32xf32, #tpu.memory_space<vmem>>, vector<1x1x32xf32>
    %369 = vector.shape_cast %368 : vector<1x1x32xf32> to vector<1x32xf32>
    %c1_213 = arith.constant 1 : index
    %c0_214 = arith.constant 0 : index
    %c0_215 = arith.constant 0 : index
    %370 = vector.load %arg13[%c1_213, %c0_214, %c0_215] : memref<2x1x32xf32, #tpu.memory_space<vmem>>, vector<1x1x32xf32>
    %371 = vector.shape_cast %370 : vector<1x1x32xf32> to vector<1x32xf32>
    %cst_216 = arith.constant dense<0.000000e+00> : vector<16xf32>
    %372 = vector.multi_reduction <add>, %367, %cst_216 [1] : vector<16x32xf32> to vector<16xf32>
    %373 = vector.shape_cast %372 : vector<16xf32> to vector<16x1xf32>
    %cst_217 = arith.constant 3.200000e+01 : f32
    %374 = vector.broadcast %cst_217 : f32 to vector<16x1xf32>
    %375 = arith.divf %373, %374 : vector<16x1xf32>
    %376 = vector.broadcast %375 : vector<16x1xf32> to vector<16x32xf32>
    %377 = arith.subf %367, %376 : vector<16x32xf32>
    %378 = arith.mulf %377, %377 : vector<16x32xf32>
    %cst_218 = arith.constant dense<0.000000e+00> : vector<16xf32>
    %379 = vector.multi_reduction <add>, %378, %cst_218 [1] : vector<16x32xf32> to vector<16xf32>
    %380 = vector.shape_cast %379 : vector<16xf32> to vector<16x1xf32>
    %cst_219 = arith.constant 3.200000e+01 : f32
    %381 = vector.broadcast %cst_219 : f32 to vector<16x1xf32>
    %382 = arith.divf %380, %381 : vector<16x1xf32>
    %383 = vector.broadcast %375 : vector<16x1xf32> to vector<16x32xf32>
    %384 = arith.subf %367, %383 : vector<16x32xf32>
    %cst_220 = arith.constant 9.99999996E-13 : f32
    %385 = vector.broadcast %cst_220 : f32 to vector<16x1xf32>
    %386 = arith.addf %382, %385 : vector<16x1xf32>
    %387 = math.rsqrt %386 : vector<16x1xf32>
    %388 = vector.broadcast %387 : vector<16x1xf32> to vector<16x32xf32>
    %389 = arith.mulf %384, %388 : vector<16x32xf32>
    %390 = vector.broadcast %369 : vector<1x32xf32> to vector<16x32xf32>
    %391 = arith.mulf %389, %390 : vector<16x32xf32>
    %392 = vector.broadcast %371 : vector<1x32xf32> to vector<16x32xf32>
    %393 = arith.addf %391, %392 : vector<16x32xf32>
    %c1_221 = arith.constant 1 : index
    %c0_222 = arith.constant 0 : index
    %c0_223 = arith.constant 0 : index
    %394 = vector.load %arg14[%c1_221, %c0_222, %c0_223] : memref<2x32x64xf32, #tpu.memory_space<vmem>>, vector<1x32x64xf32>
    %395 = vector.shape_cast %394 : vector<1x32x64xf32> to vector<32x64xf32>
    %cst_224 = arith.constant dense<0.000000e+00> : vector<16x64xf32>
    %396 = tpu.matmul %393, %395, %cst_224 {dimension_numbers = #tpu.dot_dimension_numbers<[1], [0], [0], [1], [0, 0, 1, 1], [], []>} : vector<16x32xf32>, vector<32x64xf32>, vector<16x64xf32> -> vector<16x64xf32>
    %c1_225 = arith.constant 1 : index
    %c0_226 = arith.constant 0 : index
    %c0_227 = arith.constant 0 : index
    %397 = vector.load %arg15[%c1_225, %c0_226, %c0_227] : memref<2x1x64xf32, #tpu.memory_space<vmem>>, vector<1x1x64xf32>
    %398 = vector.shape_cast %397 : vector<1x1x64xf32> to vector<1x64xf32>
    %399 = vector.broadcast %398 : vector<1x64xf32> to vector<16x64xf32>
    %400 = arith.addf %396, %399 : vector<16x64xf32>
    %cst_228 = arith.constant 5.000000e-01 : f32
    %401 = vector.broadcast %cst_228 : f32 to vector<16x64xf32>
    %402 = arith.mulf %401, %400 : vector<16x64xf32>
    %cst_229 = arith.constant 4.471500e-02 : f32
    %403 = vector.broadcast %cst_229 : f32 to vector<16x64xf32>
    %404 = arith.mulf %403, %400 : vector<16x64xf32>
    %405 = arith.mulf %404, %400 : vector<16x64xf32>
    %406 = arith.mulf %405, %400 : vector<16x64xf32>
    %407 = arith.addf %400, %406 : vector<16x64xf32>
    %cst_230 = arith.constant 0.797884583 : f32
    %408 = vector.broadcast %cst_230 : f32 to vector<16x64xf32>
    %409 = arith.mulf %408, %407 : vector<16x64xf32>
    %410 = math.tanh %409 : vector<16x64xf32>
    %cst_231 = arith.constant 1.000000e+00 : f32
    %411 = vector.broadcast %cst_231 : f32 to vector<16x64xf32>
    %412 = arith.addf %411, %410 : vector<16x64xf32>
    %413 = arith.mulf %402, %412 : vector<16x64xf32>
    %c1_232 = arith.constant 1 : index
    %c0_233 = arith.constant 0 : index
    %c0_234 = arith.constant 0 : index
    %414 = vector.load %arg16[%c1_232, %c0_233, %c0_234] : memref<2x64x32xf32, #tpu.memory_space<vmem>>, vector<1x64x32xf32>
    %415 = vector.shape_cast %414 : vector<1x64x32xf32> to vector<64x32xf32>
    %cst_235 = arith.constant dense<0.000000e+00> : vector<16x32xf32>
    %416 = tpu.matmul %413, %415, %cst_235 {dimension_numbers = #tpu.dot_dimension_numbers<[1], [0], [0], [1], [0, 0, 1, 1], [], []>} : vector<16x64xf32>, vector<64x32xf32>, vector<16x32xf32> -> vector<16x32xf32>
    %c1_236 = arith.constant 1 : index
    %c0_237 = arith.constant 0 : index
    %c0_238 = arith.constant 0 : index
    %417 = vector.load %arg17[%c1_236, %c0_237, %c0_238] : memref<2x1x32xf32, #tpu.memory_space<vmem>>, vector<1x1x32xf32>
    %418 = vector.shape_cast %417 : vector<1x1x32xf32> to vector<1x32xf32>
    %419 = vector.broadcast %418 : vector<1x32xf32> to vector<16x32xf32>
    %420 = arith.addf %416, %419 : vector<16x32xf32>
    %421 = arith.addf %420, %393 : vector<16x32xf32>
    %c1_239 = arith.constant 1 : index
    %c0_240 = arith.constant 0 : index
    %c0_241 = arith.constant 0 : index
    %422 = vector.load %arg18[%c1_239, %c0_240, %c0_241] : memref<2x1x32xf32, #tpu.memory_space<vmem>>, vector<1x1x32xf32>
    %423 = vector.shape_cast %422 : vector<1x1x32xf32> to vector<1x32xf32>
    %c1_242 = arith.constant 1 : index
    %c0_243 = arith.constant 0 : index
    %c0_244 = arith.constant 0 : index
    %424 = vector.load %arg19[%c1_242, %c0_243, %c0_244] : memref<2x1x32xf32, #tpu.memory_space<vmem>>, vector<1x1x32xf32>
    %425 = vector.shape_cast %424 : vector<1x1x32xf32> to vector<1x32xf32>
    %cst_245 = arith.constant dense<0.000000e+00> : vector<16xf32>
    %426 = vector.multi_reduction <add>, %421, %cst_245 [1] : vector<16x32xf32> to vector<16xf32>
    %427 = vector.shape_cast %426 : vector<16xf32> to vector<16x1xf32>
    %cst_246 = arith.constant 3.200000e+01 : f32
    %428 = vector.broadcast %cst_246 : f32 to vector<16x1xf32>
    %429 = arith.divf %427, %428 : vector<16x1xf32>
    %430 = vector.broadcast %429 : vector<16x1xf32> to vector<16x32xf32>
    %431 = arith.subf %421, %430 : vector<16x32xf32>
    %432 = arith.mulf %431, %431 : vector<16x32xf32>
    %cst_247 = arith.constant dense<0.000000e+00> : vector<16xf32>
    %433 = vector.multi_reduction <add>, %432, %cst_247 [1] : vector<16x32xf32> to vector<16xf32>
    %434 = vector.shape_cast %433 : vector<16xf32> to vector<16x1xf32>
    %cst_248 = arith.constant 3.200000e+01 : f32
    %435 = vector.broadcast %cst_248 : f32 to vector<16x1xf32>
    %436 = arith.divf %434, %435 : vector<16x1xf32>
    %437 = vector.broadcast %429 : vector<16x1xf32> to vector<16x32xf32>
    %438 = arith.subf %421, %437 : vector<16x32xf32>
    %cst_249 = arith.constant 9.99999996E-13 : f32
    %439 = vector.broadcast %cst_249 : f32 to vector<16x1xf32>
    %440 = arith.addf %436, %439 : vector<16x1xf32>
    %441 = math.rsqrt %440 : vector<16x1xf32>
    %442 = vector.broadcast %441 : vector<16x1xf32> to vector<16x32xf32>
    %443 = arith.mulf %438, %442 : vector<16x32xf32>
    %444 = vector.broadcast %423 : vector<1x32xf32> to vector<16x32xf32>
    %445 = arith.mulf %443, %444 : vector<16x32xf32>
    %446 = vector.broadcast %425 : vector<1x32xf32> to vector<16x32xf32>
    %447 = arith.addf %445, %446 : vector<16x32xf32>
    %c0_250 = arith.constant 0 : index
    %c0_251 = arith.constant 0 : index
    %448 = vector.load %arg22[%c0_250, %c0_251] : memref<16x32xf32, #tpu.memory_space<vmem>>, vector<16x32xf32>
    tpu.vector_store %arg22[%c0_250, %c0_251], %447 {strides = array<i32>} : memref<16x32xf32, #tpu.memory_space<vmem>>, vector<16x32xf32>,
    %c0_252 = arith.constant 0 : index
    %c0_253 = arith.constant 0 : index
    %449 = tpu.strided_load %arg22[%c0_252, %c0_253] {strides = array<i32: 8, 1>} : memref<16x32xf32, #tpu.memory_space<vmem>>, vector<2x32xf32>
    %c0_254 = arith.constant 0 : index
    %c0_255 = arith.constant 0 : index
    %450 = vector.load %arg20[%c0_254, %c0_255] : memref<32x32xf32, #tpu.memory_space<vmem>>, vector<32x32xf32>
    %cst_256 = arith.constant dense<0.000000e+00> : vector<2x32xf32>
    %451 = tpu.matmul %449, %450, %cst_256 {dimension_numbers = #tpu.dot_dimension_numbers<[1], [0], [0], [1], [0, 0, 1, 1], [], []>} : vector<2x32xf32>, vector<32x32xf32>, vector<2x32xf32> -> vector<2x32xf32>
    %c0_257 = arith.constant 0 : index
    %c0_258 = arith.constant 0 : index
    %452 = vector.load %arg21[%c0_257, %c0_258] : memref<1x32xf32, #tpu.memory_space<vmem>>, vector<1x32xf32>
    %453 = vector.broadcast %452 : vector<1x32xf32> to vector<2x32xf32>
    %454 = arith.addf %451, %453 : vector<2x32xf32>
    %455 = math.tanh %454 : vector<2x32xf32>
    %c0_259 = arith.constant 0 : index
    %c0_260 = arith.constant 0 : index
    %456 = vector.load %arg23[%c0_259, %c0_260] : memref<2x32xf32, #tpu.memory_space<vmem>>, vector<2x32xf32>
    tpu.vector_store %arg23[%c0_259, %c0_260], %455 {strides = array<i32>} : memref<2x32xf32, #tpu.memory_space<vmem>>, vector<2x32xf32>,
    return
  }
}

</mosaic_0001>

<llo_original>
// kernel: text_encoder_forward.1
$region0: #{text_encoder_forward.1}
  #allocation0 [shape = 'u32[]', space=smem, size = 0x4, offset = 0x4, fixed_abs, tag = 'smem constant byte address 0x4 - core index']
  #allocation1 [shape = 'u32[144,128]{1,0:T(1,128)}', space=vmem, size = 0x12000, scoped, tag = 'internal scratch']
  %s0 = inlined_call_operand.vmem [shape: s32[16], index: 0, kind: input, shape index: {}]
  %s1 = inlined_call_operand.vmem [shape: s32[16], index: 1, kind: input, shape index: {}]
  %s2 = inlined_call_operand.vmem [shape: f32[16,16], index: 2, kind: input, shape index: {}]
  %s3 = inlined_call_operand.vmem [shape: f32[100,32], index: 3, kind: input, shape index: {}]
  %s4 = inlined_call_operand.vmem [shape: f32[16,32], index: 4, kind: input, shape index: {}]
  %s5 = inlined_call_operand.vmem [shape: f32[2,32], index: 5, kind: input, shape index: {}]
  %s6 = inlined_call_operand.vmem [shape: f32[1,32], index: 6, kind: input, shape index: {}]
  %s7 = inlined_call_operand.vmem [shape: f32[1,32], index: 7, kind: input, shape index: {}]
  %s8 = inlined_call_operand.vmem [shape: f32[2,32,96], index: 8, kind: input, shape index: {}]
  %s9 = inlined_call_operand.vmem [shape: f32[2,1,96], index: 9, kind: input, shape index: {}]
  %s10 = inlined_call_operand.vmem [shape: f32[2,32,32], index: 10, kind: input, shape index: {}]
  %s11 = inlined_call_operand.vmem [shape: f32[2,1,32], index: 11, kind: input, shape index: {}]
  %s12 = inlined_call_operand.vmem [shape: f32[2,1,32], index: 12, kind: input, shape index: {}]
  %s13 = inlined_call_operand.vmem [shape: f32[2,1,32], index: 13, kind: input, shape index: {}]
  %s14 = inlined_call_operand.vmem [shape: f32[2,32,64], index: 14, kind: input, shape index: {}]
  %s15 = inlined_call_operand.vmem [shape: f32[2,1,64], index: 15, kind: input, shape index: {}]
  %s16 = inlined_call_operand.vmem [shape: f32[2,64,32], index: 16, kind: input, shape index: {}]
  %s17 = inlined_call_operand.vmem [shape: f32[2,1,32], index: 17, kind: input, shape index: {}]
  %s18 = inlined_call_operand.vmem [shape: f32[2,1,32], index: 18, kind: input, shape index: {}]
  %s19 = inlined_call_operand.vmem [shape: f32[2,1,32], index: 19, kind: input, shape index: {}]
  %s20 = inlined_call_operand.vmem [shape: f32[32,32], index: 20, kind: input, shape index: {}]
  %s21 = inlined_call_operand.vmem [shape: f32[1,32], index: 21, kind: input, shape index: {}]
  %s22 = inlined_call_operand.hbm [shape: f32[16,32], index: 22, kind: output, shape index: {0}]
  %s23 = inlined_call_operand.hbm [shape: f32[2,32], index: 23, kind: output, shape index: {1}]
  %24 = xla_tuple %s22, %s23
  %s25 = sld [smem:[#allocation0]]
  $region114: #{text_encoder_forward.1} parent=0
    _
  %s27 = ssub.s32 1, %s25
  %s28 = scalar_select 0, %s27, %s25
  $region1: #{text_encoder_forward.1} parent=0
    #allocation2 [shape = 'u8[512]{0}', space=smem, size = 0x200, scoped, tag = 'input window, operand 0, single buffered']
    #allocation3 [shape = 's32[1]{0}', space=sflag, size = 0x4, scoped, tag = 'scoped memory for text_encoder_forward.1']
    #allocation4 [shape = 's32[1]{0}', space=sflag, size = 0x4, scoped, tag = 'scoped memory for text_encoder_forward.1']
    #allocation5 [shape = 'u8[512]{0}', space=smem, size = 0x200, scoped, tag = 'input window, operand 1, single buffered']
    #allocation6 [shape = 's32[1]{0}', space=sflag, size = 0x4, scoped, tag = 'scoped memory for text_encoder_forward.1']
    #allocation7 [shape = 'u8[8192]{0}', space=vmem, size = 0x2000, scoped, tag = 'output window, operand 0, single buffered']
    #allocation8 [shape = 'u8[1024]{0}', space=vmem, size = 0x400, scoped, tag = 'output window, operand 1, single buffered']
    #allocation9 [shape = 's32[1]{0}', space=sflag, size = 0x4, scoped, tag = 'scoped memory for text_encoder_forward.1']
    %29 = vsyncpa [#allocation4], 0
    %30 = vsyncpa [#allocation6], 0
    %31 = vsyncpa [#allocation3], 0
    %32 = vsyncpa [#allocation9], 0
    // Predicated region
    $region2: #{text_encoder_forward.1} parent=1 // pred_check
      _
    $region3: #{text_encoder_forward.1} parent=1 // pred_check_branch
      %34 = sbr.rel (0) target = $region5
    $region4: #{text_encoder_forward.1} parent=1 // pred_region
      %s36 = ssub.s32 16, 16
      %37 = vsyncadd [#allocation4], %s36
      %s39 = sshll.u32 %s0, 4
      %s40 = int_to_ptr.vmem [resolvable:$true] %s39
      %42 = dma.vmem_to_smem %s40, 16, [#allocation2], [#allocation4]
    $region5: #{text_encoder_forward.1} parent=1 // pred_fallthru
      _
    // Predicated region
    $region6: #{text_encoder_forward.1} parent=1 // pred_check
      _
    $region7: #{text_encoder_forward.1} parent=1 // pred_check_branch
      %44 = sbr.rel (0) target = $region9
    $region8: #{text_encoder_forward.1} parent=1 // pred_region
      %s46 = ssub.s32 16, 16
      %47 = vsyncadd [#allocation6], %s46
      %s49 = sshll.u32 %s1, 4
      %s50 = int_to_ptr.vmem [resolvable:$true] %s49
      %52 = dma.vmem_to_smem %s50, 16, [#allocation5], [#allocation6]
    $region9: #{text_encoder_forward.1} parent=1 // pred_fallthru
      _
    // Predicated region
    $region10: #{text_encoder_forward.1} parent=1 // pred_check
      _
    $region11: #{text_encoder_forward.1} parent=1 // pred_check_branch
      %54 = sbr.rel (0) target = $region13
    $region12: #{text_encoder_forward.1} parent=1 // pred_region
      _
    $region13: #{text_encoder_forward.1} parent=1 // pred_fallthru
      _
    // Predicated region
    $region14: #{text_encoder_forward.1} parent=1 // pred_check
      _
    $region15: #{text_encoder_forward.1} parent=1 // pred_check_branch
      %56 = sbr.rel (0) target = $region17
    $region16: #{text_encoder_forward.1} parent=1 // pred_region
      _
    $region17: #{text_encoder_forward.1} parent=1 // pred_fallthru
      _
    // Predicated region
    $region18: #{text_encoder_forward.1} parent=1 // pred_check
      _
    $region19: #{text_encoder_forward.1} parent=1 // pred_check_branch
      %58 = sbr.rel (0) target = $region21
    $region20: #{text_encoder_forward.1} parent=1 // pred_region
      _
    $region21: #{text_encoder_forward.1} parent=1 // pred_fallthru
      _
    // Predicated region
    $region22: #{text_encoder_forward.1} parent=1 // pred_check
      _
    $region23: #{text_encoder_forward.1} parent=1 // pred_check_branch
      %60 = sbr.rel (0) target = $region25
    $region24: #{text_encoder_forward.1} parent=1 // pred_region
      _
    $region25: #{text_encoder_forward.1} parent=1 // pred_fallthru
      _
    // Predicated region
    $region26: #{text_encoder_forward.1} parent=1 // pred_check
      _
    $region27: #{text_encoder_forward.1} parent=1 // pred_check_branch
      %62 = sbr.rel (0) target = $region29
    $region28: #{text_encoder_forward.1} parent=1 // pred_region
      _
    $region29: #{text_encoder_forward.1} parent=1 // pred_fallthru
      _
    // Predicated region
    $region30: #{text_encoder_forward.1} parent=1 // pred_check
      _
    $region31: #{text_encoder_forward.1} parent=1 // pred_check_branch
      %64 = sbr.rel (0) target = $region33
    $region32: #{text_encoder_forward.1} parent=1 // pred_region
      _
    $region33: #{text_encoder_forward.1} parent=1 // pred_fallthru
      _
    // Predicated region
    $region34: #{text_encoder_forward.1} parent=1 // pred_check
      _
    $region35: #{text_encoder_forward.1} parent=1 // pred_check_branch
      %66 = sbr.rel (0) target = $region37
    $region36: #{text_encoder_forward.1} parent=1 // pred_region
      _
    $region37: #{text_encoder_forward.1} parent=1 // pred_fallthru
      _
    // Predicated region
    $region38: #{text_encoder_forward.1} parent=1 // pred_check
      _
    $region39: #{text_encoder_forward.1} parent=1 // pred_check_branch
      %68 = sbr.rel (0) target = $region41
    $region40: #{text_encoder_forward.1} parent=1 // pred_region
      _
    $region41: #{text_encoder_forward.1} parent=1 // pred_fallthru
      _
    // Predicated region
    $region42: #{text_encoder_forward.1} parent=1 // pred_check
      _
    $region43: #{text_encoder_forward.1} parent=1 // pred_check_branch
      %70 = sbr.rel (0) target = $region45
    $region44: #{text_encoder_forward.1} parent=1 // pred_region
      _
    $region45: #{text_encoder_forward.1} parent=1 // pred_fallthru
      _
    // Predicated region
    $region46: #{text_encoder_forward.1} parent=1 // pred_check
      _
    $region47: #{text_encoder_forward.1} parent=1 // pred_check_branch
      %72 = sbr.rel (0) target = $region49
    $region48: #{text_encoder_forward.1} parent=1 // pred_region
      _
    $region49: #{text_encoder_forward.1} parent=1 // pred_fallthru
      _
    // Predicated region
    $region50: #{text_encoder_forward.1} parent=1 // pred_check
      _
    $region51: #{text_encoder_forward.1} parent=1 // pred_check_branch
      %74 = sbr.rel (0) target = $region53
    $region52: #{text_encoder_forward.1} parent=1 // pred_region
      _
    $region53: #{text_encoder_forward.1} parent=1 // pred_fallthru
      _
    // Predicated region
    $region54: #{text_encoder_forward.1} parent=1 // pred_check
      _
    $region55: #{text_encoder_forward.1} parent=1 // pred_check_branch
      %76 = sbr.rel (0) target = $region57
    $region56: #{text_encoder_forward.1} parent=1 // pred_region
      _
    $region57: #{text_encoder_forward.1} parent=1 // pred_fallthru
      _
    // Predicated region
    $region58: #{text_encoder_forward.1} parent=1 // pred_check
      _
    $region59: #{text_encoder_forward.1} parent=1 // pred_check_branch
      %78 = sbr.rel (0) target = $region61
    $region60: #{text_encoder_forward.1} parent=1 // pred_region
      _
    $region61: #{text_encoder_forward.1} parent=1 // pred_fallthru
      _
    // Predicated region
    $region62: #{text_encoder_forward.1} parent=1 // pred_check
      _
    $region63: #{text_encoder_forward.1} parent=1 // pred_check_branch
      %80 = sbr.rel (0) target = $region65
    $region64: #{text_encoder_forward.1} parent=1 // pred_region
      _
    $region65: #{text_encoder_forward.1} parent=1 // pred_fallthru
      _
    // Predicated region
    $region66: #{text_encoder_forward.1} parent=1 // pred_check
      _
    $region67: #{text_encoder_forward.1} parent=1 // pred_check_branch
      %82 = sbr.rel (0) target = $region69
    $region68: #{text_encoder_forward.1} parent=1 // pred_region
      _
    $region69: #{text_encoder_forward.1} parent=1 // pred_fallthru
      _
    // Predicated region
    $region70: #{text_encoder_forward.1} parent=1 // pred_check
      _
    $region71: #{text_encoder_forward.1} parent=1 // pred_check_branch
      %84 = sbr.rel (0) target = $region73
    $region72: #{text_encoder_forward.1} parent=1 // pred_region
      _
    $region73: #{text_encoder_forward.1} parent=1 // pred_fallthru
      _
    // Predicated region
    $region74: #{text_encoder_forward.1} parent=1 // pred_check
      _
    $region75: #{text_encoder_forward.1} parent=1 // pred_check_branch
      %86 = sbr.rel (0) target = $region77
    $region76: #{text_encoder_forward.1} parent=1 // pred_region
      _
    $region77: #{text_encoder_forward.1} parent=1 // pred_fallthru
      _
    // Predicated region
    $region78: #{text_encoder_forward.1} parent=1 // pred_check
      _
    $region79: #{text_encoder_forward.1} parent=1 // pred_check_branch
      %88 = sbr.rel (0) target = $region81
    $region80: #{text_encoder_forward.1} parent=1 // pred_region
      _
    $region81: #{text_encoder_forward.1} parent=1 // pred_fallthru
      _
    // Predicated region
    $region82: #{text_encoder_forward.1} parent=1 // pred_check
      _
    $region83: #{text_encoder_forward.1} parent=1 // pred_check_branch
      %90 = sbr.rel (0) target = $region85
    $region84: #{text_encoder_forward.1} parent=1 // pred_region
      _
    $region85: #{text_encoder_forward.1} parent=1 // pred_fallthru
      _
    // Predicated region
    $region86: #{text_encoder_forward.1} parent=1 // pred_check
      _
    $region87: #{text_encoder_forward.1} parent=1 // pred_check_branch
      %92 = sbr.rel (0) target = $region89
    $region88: #{text_encoder_forward.1} parent=1 // pred_region
      _
    $region89: #{text_encoder_forward.1} parent=1 // pred_fallthru
      _
    // Predicated region
    $region90: #{text_encoder_forward.1} parent=1 // pred_check
      _
    $region91: #{text_encoder_forward.1} parent=1 // pred_check_branch
      %94 = sbr.rel (0) target = $region93
    $region92: #{text_encoder_forward.1} parent=1 // pred_region
      %95 = dma.done [#allocation4], 16
    $region93: #{text_encoder_forward.1} parent=1 // pred_fallthru
      _
    // Predicated region
    $region94: #{text_encoder_forward.1} parent=1 // pred_check
      _
    $region95: #{text_encoder_forward.1} parent=1 // pred_check_branch
      %97 = sbr.rel (0) target = $region97
    $region96: #{text_encoder_forward.1} parent=1 // pred_region
      %98 = dma.done [#allocation6], 16
    $region97: #{text_encoder_forward.1} parent=1 // pred_fallthru
      _
    %99 = sfence
    %s100 = sld [smem:[#allocation2]]
    %s101 = sld [smem:[#allocation5]]
    %s102 = scalar_lea.vmem %s3, %s100
    %v103 = vld [vmem:[%s102] sm:$0x1]
    %v104 = vld [vmem:[%s4] sm:$0x1]
    %v105 = vadd.f32 %v103, %v104
    %s106 = scalar_lea.vmem %s5, %s101
    %v107 = vld [vmem:[%s106] sm:$0x1]
    %v108 = vadd.f32 %v105, %v107
    %vm109 = vcmask 253952
    %110 = vst.msk [vmem:[#allocation7] sm:$0x1] %vm109, %v108
    %s111 = sld [smem:[#allocation2 + $0x1]]
    %s112 = sld [smem:[#allocation5 + $0x1]]
    %s113 = scalar_lea.vmem %s3, %s111
    %v114 = vld [vmem:[%s113] sm:$0x1]
    %v115 = vld [vmem:[%s4 + $0x1] sm:$0x1]
    %v116 = vadd.f32 %v114, %v115
    %s117 = scalar_lea.vmem %s5, %s112
    %v118 = vld [vmem:[%s117] sm:$0x1]
    %v119 = vadd.f32 %v116, %v118
    %120 = vst.msk [vmem:[#allocation7 + $0x1] sm:$0x1] %vm109, %v119
    %s121 = sld [smem:[#allocation2 + $0x2]]
    %s122 = sld [smem:[#allocation5 + $0x2]]
    %s123 = scalar_lea.vmem %s3, %s121
    %v124 = vld [vmem:[%s123] sm:$0x1]
    %v125 = vld [vmem:[%s4 + $0x2] sm:$0x1]
    %v126 = vadd.f32 %v124, %v125
    %s127 = scalar_lea.vmem %s5, %s122
    %v128 = vld [vmem:[%s127] sm:$0x1]
    %v129 = vadd.f32 %v126, %v128
    %130 = vst.msk [vmem:[#allocation7 + $0x2] sm:$0x1] %vm109, %v129
    %s131 = sld [smem:[#allocation2 + $0x3]]
    %s132 = sld [smem:[#allocation5 + $0x3]]
    %s133 = scalar_lea.vmem %s3, %s131
    %v134 = vld [vmem:[%s133] sm:$0x1]
    %v135 = vld [vmem:[%s4 + $0x3] sm:$0x1]
    %v136 = vadd.f32 %v134, %v135
    %s137 = scalar_lea.vmem %s5, %s132
    %v138 = vld [vmem:[%s137] sm:$0x1]
    %v139 = vadd.f32 %v136, %v138
    %140 = vst.msk [vmem:[#allocation7 + $0x3] sm:$0x1] %vm109, %v139
    %s141 = sld [smem:[#allocation2 + $0x4]]
    %s142 = sld [smem:[#allocation5 + $0x4]]
    %s143 = scalar_lea.vmem %s3, %s141
    %v144 = vld [vmem:[%s143] sm:$0x1]
    %v145 = vld [vmem:[%s4 + $0x4] sm:$0x1]
    %v146 = vadd.f32 %v144, %v145
    %s147 = scalar_lea.vmem %s5, %s142
    %v148 = vld [vmem:[%s147] sm:$0x1]
    %v149 = vadd.f32 %v146, %v148
    %150 = vst.msk [vmem:[#allocation7 + $0x4] sm:$0x1] %vm109, %v149
    %s151 = sld [smem:[#allocation2 + $0x5]]
    %s152 = sld [smem:[#allocation5 + $0x5]]
    %s153 = scalar_lea.vmem %s3, %s151
    %v154 = vld [vmem:[%s153] sm:$0x1]
    %v155 = vld [vmem:[%s4 + $0x5] sm:$0x1]
    %v156 = vadd.f32 %v154, %v155
    %s157 = scalar_lea.vmem %s5, %s152
    %v158 = vld [vmem:[%s157] sm:$0x1]
    %v159 = vadd.f32 %v156, %v158
    %160 = vst.msk [vmem:[#allocation7 + $0x5] sm:$0x1] %vm109, %v159
    %s161 = sld [smem:[#allocation2 + $0x6]]
    %s162 = sld [smem:[#allocation5 + $0x6]]
    %s163 = scalar_lea.vmem %s3, %s161
    %v164 = vld [vmem:[%s163] sm:$0x1]
    %v165 = vld [vmem:[%s4 + $0x6] sm:$0x1]
    %v166 = vadd.f32 %v164, %v165
    %s167 = scalar_lea.vmem %s5, %s162
    %v168 = vld [vmem:[%s167] sm:$0x1]
    %v169 = vadd.f32 %v166, %v168
    %170 = vst.msk [vmem:[#allocation7 + $0x6] sm:$0x1] %vm109, %v169
    %s171 = sld [smem:[#allocation2 + $0x7]]
    %s172 = sld [smem:[#allocation5 + $0x7]]
    %s173 = scalar_lea.vmem %s3, %s171
    %v174 = vld [vmem:[%s173] sm:$0x1]
    %v175 = vld [vmem:[%s4 + $0x7] sm:$0x1]
    %v176 = vadd.f32 %v174, %v175
    %s177 = scalar_lea.vmem %s5, %s172
    %v178 = vld [vmem:[%s177] sm:$0x1]
    %v179 = vadd.f32 %v176, %v178
    %180 = vst.msk [vmem:[#allocation7 + $0x7] sm:$0x1] %vm109, %v179
    %s181 = sld [smem:[#allocation2 + $0x8]]
    %s182 = sld [smem:[#allocation5 + $0x8]]
    %s183 = scalar_lea.vmem %s3, %s181
    %v184 = vld [vmem:[%s183] sm:$0x1]
    %v185 = vld [vmem:[%s4] sm:$0x1]
    %v186 = vadd.f32 %v184, %v185
    %s187 = scalar_lea.vmem %s5, %s182
    %v188 = vld [vmem:[%s187] sm:$0x1]
    %v189 = vadd.f32 %v186, %v188
    %190 = vst.msk [vmem:[#allocation7 + $0x8] sm:$0x1] %vm109, %v189
    %s191 = sld [smem:[#allocation2 + $0x9]]
    %s192 = sld [smem:[#allocation5 + $0x9]]
    %s193 = scalar_lea.vmem %s3, %s191
    %v194 = vld [vmem:[%s193] sm:$0x1]
    %v195 = vld [vmem:[%s4 + $0x1] sm:$0x1]
    %v196 = vadd.f32 %v194, %v195
    %s197 = scalar_lea.vmem %s5, %s192
    %v198 = vld [vmem:[%s197] sm:$0x1]
    %v199 = vadd.f32 %v196, %v198
    %200 = vst.msk [vmem:[#allocation7 + $0x9] sm:$0x1] %vm109, %v199
    %s201 = sld [smem:[#allocation2 + $0xa]]
    %s202 = sld [smem:[#allocation5 + $0xa]]
    %s203 = scalar_lea.vmem %s3, %s201
    %v204 = vld [vmem:[%s203] sm:$0x1]
    %v205 = vld [vmem:[%s4 + $0x2] sm:$0x1]
    %v206 = vadd.f32 %v204, %v205
    %s207 = scalar_lea.vmem %s5, %s202
    %v208 = vld [vmem:[%s207] sm:$0x1]
    %v209 = vadd.f32 %v206, %v208
    %210 = vst.msk [vmem:[#allocation7 + $0xa] sm:$0x1] %vm109, %v209
    %s211 = sld [smem:[#allocation2 + $0xb]]
    %s212 = sld [smem:[#allocation5 + $0xb]]
    %s213 = scalar_lea.vmem %s3, %s211
    %v214 = vld [vmem:[%s213] sm:$0x1]
    %v215 = vld [vmem:[%s4 + $0x3] sm:$0x1]
    %v216 = vadd.f32 %v214, %v215
    %s217 = scalar_lea.vmem %s5, %s212
    %v218 = vld [vmem:[%s217] sm:$0x1]
    %v219 = vadd.f32 %v216, %v218
    %220 = vst.msk [vmem:[#allocation7 + $0xb] sm:$0x1] %vm109, %v219
    %s221 = sld [smem:[#allocation2 + $0xc]]
    %s222 = sld [smem:[#allocation5 + $0xc]]
    %s223 = scalar_lea.vmem %s3, %s221
    %v224 = vld [vmem:[%s223] sm:$0x1]
    %v225 = vld [vmem:[%s4 + $0x4] sm:$0x1]
    %v226 = vadd.f32 %v224, %v225
    %s227 = scalar_lea.vmem %s5, %s222
    %v228 = vld [vmem:[%s227] sm:$0x1]
    %v229 = vadd.f32 %v226, %v228
    %230 = vst.msk [vmem:[#allocation7 + $0xc] sm:$0x1] %vm109, %v229
    %s231 = sld [smem:[#allocation2 + $0xd]]
    %s232 = sld [smem:[#allocation5 + $0xd]]
    %s233 = scalar_lea.vmem %s3, %s231
    %v234 = vld [vmem:[%s233] sm:$0x1]
    %v235 = vld [vmem:[%s4 + $0x5] sm:$0x1]
    %v236 = vadd.f32 %v234, %v235
    %s237 = scalar_lea.vmem %s5, %s232
    %v238 = vld [vmem:[%s237] sm:$0x1]
    %v239 = vadd.f32 %v236, %v238
    %240 = vst.msk [vmem:[#allocation7 + $0xd] sm:$0x1] %vm109, %v239
    %s241 = sld [smem:[#allocation2 + $0xe]]
    %s242 = sld [smem:[#allocation5 + $0xe]]
    %s243 = scalar_lea.vmem %s3, %s241
    %v244 = vld [vmem:[%s243] sm:$0x1]
    %v245 = vld [vmem:[%s4 + $0x6] sm:$0x1]
    %v246 = vadd.f32 %v244, %v245
    %s247 = scalar_lea.vmem %s5, %s242
    %v248 = vld [vmem:[%s247] sm:$0x1]
    %v249 = vadd.f32 %v246, %v248
    %250 = vst.msk [vmem:[#allocation7 + $0xe] sm:$0x1] %vm109, %v249
    %s251 = sld [smem:[#allocation2 + $0xf]]
    %s252 = sld [smem:[#allocation5 + $0xf]]
    %s253 = scalar_lea.vmem %s3, %s251
    %v254 = vld [vmem:[%s253] sm:$0x1]
    %v255 = vld [vmem:[%s4 + $0x7] sm:$0x1]
    %v256 = vadd.f32 %v254, %v255
    %s257 = scalar_lea.vmem %s5, %s252
    %v258 = vld [vmem:[%s257] sm:$0x1]
    %v259 = vadd.f32 %v256, %v258
    %260 = vst.msk [vmem:[#allocation7 + $0xf] sm:$0x1] %vm109, %v259
    %v261 = vld [vmem:[#allocation7] sm:$0xff]
    %v262 = vld [vmem:[#allocation7 + $0x8] sm:$0xff]
    %v263 = vld [vmem:[%s6] sm:$0x1]
    %v264 = vld [vmem:[%s7] sm:$0x1]
    %vm265 = vcmask 261120
    %v266 = vsel %vm265, %v261, 0.0
    %267 = vadd.xlane.f32.xlu0 %v266
    %v268 = vpop.xlane.xlu0 %267
    %v269 = vsel %vm265, %v262, 0.0
    %270 = vadd.xlane.f32.xlu0 %v269
    %v271 = vpop.xlane.xlu0 %270
    %v272 = vrcp.pop 32.0
    %v273 = vmul.f32 %v268, %v272
    %v274 = vmul.f32 %v271, %v272
    %v275 = vsub.f32 %v261, %v273
    %v276 = vsub.f32 %v262, %v274
    %v277 = vmul.f32 %v275, %v275
    %v278 = vmul.f32 %v276, %v276
    %v279 = vsel %vm265, %v277, 0.0
    %280 = vadd.xlane.f32.xlu0 %v279
    %v281 = vpop.xlane.xlu0 %280
    %v282 = vsel %vm265, %v278, 0.0
    %283 = vadd.xlane.f32.xlu0 %v282
    %v284 = vpop.xlane.xlu0 %283
    %v285 = vmul.f32 %v281, %v272
    %v286 = vmul.f32 %v284, %v272
    %v287 = vadd.f32 %v285, 1e-12
    %v288 = vadd.f32 %v286, 1e-12
    %v289 = vrsqrt.pop %v287
    %v290 = vrsqrt.pop %v288
    %v291 = vmul.f32 %v275, %v289
    %v292 = vmul.f32 %v276, %v290
    %v294 = vlaneseq
    %v295 = vshrl.u32 %v294, 7
    %v296 = vsub.s32 0, %v295
    %v297 = vrot.slane %v263, %v296
    %v299 = vmul.f32 %v291, %v297
    %v300 = vmul.f32 %v292, %v297
    %v302 = vlaneseq
    %v303 = vshrl.u32 %v302, 7
    %v304 = vsub.s32 0, %v303
    %v305 = vrot.slane %v264, %v304
    %v307 = vadd.f32 %v299, %v305
    %v308 = vadd.f32 %v300, %v305
    %v309 = vld [vmem:[%s2] sm:$0xff]
    %v310 = vld [vmem:[%s2 + $0x8] sm:$0xff]
    %v311 = vld [vmem:[%s8] sm:$0xff]
    %v312 = vld [vmem:[%s8 + $0x8] sm:$0xff]
    %v313 = vld [vmem:[%s8 + $0x10] sm:$0xff]
    %v314 = vld [vmem:[%s8 + $0x18] sm:$0xff]
    %v315 = vld [vmem:[%s9] sm:$0x1]
    %v317 = vlaneseq
    %v318 = vshrl.u32 %v317, 7
    %v319 = vsub.s32 0, %v318
    %v320 = vrot.slane %v315, %v319
    %v323 = vsel %vm265, %v307, 0
    %v326 = vsel %vm265, %v308, 0
    %328 = vmatprep.subr.mxu0 0.0
    %329 = vmatpush1.msra.mxu0 0.0
    %330 = vmatprep.subr.mxu0 0.0
    %331 = vmatpush1.msra.mxu0 0.0
    %332 = vmatprep.subr.mxu0 0.0
    %333 = vmatpush1.msra.mxu0 0.0
    %334 = vmatprep.subr.mxu0 0.0
    %335 = vmatpush1.msra.mxu0 0.0
    %336 = vmatprep.subr.mxu0 0.0
    %337 = vmatpush1.msra.mxu0 0.0
    %338 = vmatprep.subr.mxu0 0.0
    %339 = vmatpush1.msra.mxu0 0.0
    %340 = vmatprep.subr.mxu0 0.0
    %341 = vmatpush1.msra.mxu0 0.0
    %342 = vmatprep.subr.mxu0 0.0
    %343 = vmatpush1.msra.mxu0 0.0
    %344 = vmatprep.subr.mxu0 0.0
    %345 = vmatpush1.msra.mxu0 0.0
    %346 = vmatprep.subr.mxu0 0.0
    %347 = vmatpush1.msra.mxu0 0.0
    %348 = vmatprep.subr.mxu0 0.0
    %349 = vmatpush1.msra.mxu0 0.0
    %350 = vmatprep.subr.mxu0 0.0
    %351 = vmatpush1.msra.mxu0 0.0
    %352 = vmatprep.subr.mxu0 0.0
    %353 = vmatpush1.msra.mxu0 %v314
    %354 = vmatprep.subr.mxu0 0.0
    %355 = vmatpush1.msra.mxu0 %v313
    %356 = vmatprep.subr.mxu0 0.0
    %357 = vmatpush1.msra.mxu0 %v312
    %358 = vmatprep.subr.mxu0 0.0
    %359 = vmatpush1.msra.mxu0 %v311
    %360 = vmatprep.subr.mxu0 0.0
    %361 = vmatpush2.msra.mxu0 0.0
    %362 = vmatprep.subr.mxu0 0.0
    %363 = vmatpush2.msra.mxu0 0.0
    %364 = vmatprep.subr.mxu0 0.0
    %365 = vmatpush2.msra.mxu0 0.0
    %366 = vmatprep.subr.mxu0 0.0
    %367 = vmatpush2.msra.mxu0 0.0
    %368 = vmatprep.subr.mxu0 0.0
    %369 = vmatpush2.msra.mxu0 0.0
    %370 = vmatprep.subr.mxu0 0.0
    %371 = vmatpush2.msra.mxu0 0.0
    %372 = vmatprep.subr.mxu0 0.0
    %373 = vmatpush2.msra.mxu0 0.0
    %374 = vmatprep.subr.mxu0 0.0
    %375 = vmatpush2.msra.mxu0 0.0
    %376 = vmatprep.subr.mxu0 0.0
    %377 = vmatpush2.msra.mxu0 0.0
    %378 = vmatprep.subr.mxu0 0.0
    %379 = vmatpush2.msra.mxu0 0.0
    %380 = vmatprep.subr.mxu0 0.0
    %381 = vmatpush2.msra.mxu0 0.0
    %382 = vmatprep.subr.mxu0 0.0
    %383 = vmatpush2.msra.mxu0 0.0
    %384 = vmatprep.subr.mxu0 0.0
    %385 = vmatpush2.msra.mxu0 0.0
    %386 = vmatprep.subr.mxu0 0.0
    %387 = vmatpush2.msra.mxu0 0.0
    %388 = vmatprep.subr.mxu0 0.0
    %389 = vmatpush2.msra.mxu0 0.0
    %390 = vmatprep.subr.mxu0 0.0
    %391 = vmatpush2.msra.mxu0 0.0
    %392 = vmatprep.mubr.f32.mxu0 0.0
    %393 = vmatmul.mubr.f32.gmra.mxu0 %v323
    %v394 = vpop.f32.mrf.mxu0
    %v395 = vadd.f32 %v320, %v394
    %v396 = vpop.f32.mrf.mxu0
    %397 = vmatprep.mubr.f32.mxu0 0.0
    %398 = vmatmul.mubr.f32.gmra.mxu0 %v326
    %v399 = vpop.f32.mrf.mxu0
    %v400 = vadd.f32 %v320, %v399
    %v401 = vpop.f32.mrf.mxu0
    %402 = vdwg.mxu0
    %v403 = vld [vmem:[%s10] sm:$0xff]
    %v404 = vld [vmem:[%s10 + $0x8] sm:$0xff]
    %v405 = vld [vmem:[%s10 + $0x10] sm:$0xff]
    %v406 = vld [vmem:[%s10 + $0x18] sm:$0xff]
    %409 = vrot.lane.b32.xlu0 %v395, 96
    %v410 = vpop.permute.xlu0 %409
    %411 = vrot.lane.b32.xlu0 %v400, 96
    %v412 = vpop.permute.xlu0 %411
    %vm413 = vcmask 130048
    %v414 = vsel %vm413, %v395, 0
    %v416 = vsel %vm413, %v400, 0
    %v418 = vsel %vm413, %v410, 0
    %v420 = vsel %vm413, %v412, 0
    %422 = vmatprep.subr.mxu0 0.0
    %423 = vmatpush1.xpose.msra.mxu0 0.0
    %424 = vmatprep.subr.mxu0 0.0
    %425 = vmatpush1.xpose.msra.mxu0 0.0
    %426 = vmatprep.subr.mxu0 0.0
    %427 = vmatpush1.xpose.msra.mxu0 0.0
    %428 = vmatprep.subr.mxu0 0.0
    %429 = vmatpush1.xpose.msra.mxu0 0.0
    %430 = vmatprep.subr.mxu0 0.0
    %431 = vmatpush1.xpose.msra.mxu0 0.0
    %432 = vmatprep.subr.mxu0 0.0
    %433 = vmatpush1.xpose.msra.mxu0 0.0
    %434 = vmatprep.subr.mxu0 0.0
    %435 = vmatpush1.xpose.msra.mxu0 0.0
    %436 = vmatprep.subr.mxu0 0.0
    %437 = vmatpush1.xpose.msra.mxu0 0.0
    %438 = vmatprep.subr.mxu0 0.0
    %439 = vmatpush1.xpose.msra.mxu0 0.0
    %440 = vmatprep.subr.mxu0 0.0
    %441 = vmatpush1.xpose.msra.mxu0 0.0
    %442 = vmatprep.subr.mxu0 0.0
    %443 = vmatpush1.xpose.msra.mxu0 0.0
    %444 = vmatprep.subr.mxu0 0.0
    %445 = vmatpush1.xpose.msra.mxu0 0.0
    %446 = vmatprep.subr.mxu0 0.0
    %447 = vmatpush1.xpose.msra.mxu0 0.0
    %448 = vmatprep.subr.mxu0 0.0
    %449 = vmatpush1.xpose.msra.mxu0 0.0
    %450 = vmatprep.subr.mxu0 0.0
    %451 = vmatpush1.xpose.msra.mxu0 %v420
    %452 = vmatprep.subr.mxu0 0.0
    %453 = vmatpush1.xpose.msra.mxu0 %v418
    %454 = vmatprep.subr.mxu0 0.0
    %455 = vmatpush2.xpose.msra.mxu0 0.0
    %456 = vmatprep.subr.mxu0 0.0
    %457 = vmatpush2.xpose.msra.mxu0 0.0
    %458 = vmatprep.subr.mxu0 0.0
    %459 = vmatpush2.xpose.msra.mxu0 0.0
    %460 = vmatprep.subr.mxu0 0.0
    %461 = vmatpush2.xpose.msra.mxu0 0.0
    %462 = vmatprep.subr.mxu0 0.0
    %463 = vmatpush2.xpose.msra.mxu0 0.0
    %464 = vmatprep.subr.mxu0 0.0
    %465 = vmatpush2.xpose.msra.mxu0 0.0
    %466 = vmatprep.subr.mxu0 0.0
    %467 = vmatpush2.xpose.msra.mxu0 0.0
    %468 = vmatprep.subr.mxu0 0.0
    %469 = vmatpush2.xpose.msra.mxu0 0.0
    %470 = vmatprep.subr.mxu0 0.0
    %471 = vmatpush2.xpose.msra.mxu0 0.0
    %472 = vmatprep.subr.mxu0 0.0
    %473 = vmatpush2.xpose.msra.mxu0 0.0
    %474 = vmatprep.subr.mxu0 0.0
    %475 = vmatpush2.xpose.msra.mxu0 0.0
    %476 = vmatprep.subr.mxu0 0.0
    %477 = vmatpush2.xpose.msra.mxu0 0.0
    %478 = vmatprep.subr.mxu0 0.0
    %479 = vmatpush2.xpose.msra.mxu0 0.0
    %480 = vmatprep.subr.mxu0 0.0
    %481 = vmatpush2.xpose.msra.mxu0 0.0
    %482 = vmatprep.subr.mxu0 0.0
    %483 = vmatpush2.xpose.msra.mxu0 0.0
    %484 = vmatprep.subr.mxu0 0.0
    %485 = vmatpush2.xpose.msra.mxu0 0.0
    %486 = vmatprep.mubr.f32.mxu0 0.0
    %487 = vmatmul.mubr.f32.gmra.mxu0 %v414
    %v488 = vpop.f32.mrf.mxu0
    %v489 = vadd.f32 %v309, %v488
    %v490 = vpop.f32.mrf.mxu0
    %491 = vmatprep.mubr.f32.mxu0 0.0
    %492 = vmatmul.mubr.f32.gmra.mxu0 %v416
    %v493 = vpop.f32.mrf.mxu0
    %v494 = vadd.f32 %v310, %v493
    %v495 = vpop.f32.mrf.mxu0
    %496 = vdwg.mxu0
    %v497 = vsel %vm413, %v489, -inf
    %498 = vmax.xlane.f32.xlu0 %v497
    %v499 = vpop.xlane.xlu0 %498
    %v500 = vsel %vm413, %v494, -inf
    %501 = vmax.xlane.f32.xlu0 %v500
    %v502 = vpop.xlane.xlu0 %501
    %v503 = vsub.f32 %v489, %v499
    %v504 = vsub.f32 %v494, %v502
    %v505 = vmul.f32 %v503, 1.442695
    %v506 = vpow.pop %v505
    %v507 = vmul.f32 %v504, 1.442695
    %v508 = vpow.pop %v507
    %v509 = vsel %vm413, %v506, 0.0
    %510 = vadd.xlane.f32.xlu0 %v509
    %v511 = vpop.xlane.xlu0 %510
    %v512 = vsel %vm413, %v508, 0.0
    %513 = vadd.xlane.f32.xlu0 %v512
    %v514 = vpop.xlane.xlu0 %513
    %v515 = vrcp.pop %v511
    %v516 = vrcp.pop %v514
    %v517 = vmul.f32 %v506, %v515
    %v518 = vmul.f32 %v508, %v516
    %519 = vrot.lane.b32.xlu0 %v395, 64
    %v520 = vpop.permute.xlu0 %519
    %521 = vrot.lane.b32.xlu0 %v400, 64
    %v522 = vpop.permute.xlu0 %521
    %v526 = vsel %vm413, %v517, 0
    %v529 = vsel %vm413, %v518, 0
    %531 = vmatprep.subr.mxu0 0.0
    %532 = vmatpush1.msra.mxu0 0.0
    %533 = vmatprep.subr.mxu0 0.0
    %534 = vmatpush1.msra.mxu0 0.0
    %535 = vmatprep.subr.mxu0 0.0
    %536 = vmatpush1.msra.mxu0 0.0
    %537 = vmatprep.subr.mxu0 0.0
    %538 = vmatpush1.msra.mxu0 0.0
    %539 = vmatprep.subr.mxu0 0.0
    %540 = vmatpush1.msra.mxu0 0.0
    %541 = vmatprep.subr.mxu0 0.0
    %542 = vmatpush1.msra.mxu0 0.0
    %543 = vmatprep.subr.mxu0 0.0
    %544 = vmatpush1.msra.mxu0 0.0
    %545 = vmatprep.subr.mxu0 0.0
    %546 = vmatpush1.msra.mxu0 0.0
    %547 = vmatprep.subr.mxu0 0.0
    %548 = vmatpush1.msra.mxu0 0.0
    %549 = vmatprep.subr.mxu0 0.0
    %550 = vmatpush1.msra.mxu0 0.0
    %551 = vmatprep.subr.mxu0 0.0
    %552 = vmatpush1.msra.mxu0 0.0
    %553 = vmatprep.subr.mxu0 0.0
    %554 = vmatpush1.msra.mxu0 0.0
    %555 = vmatprep.subr.mxu0 0.0
    %556 = vmatpush1.msra.mxu0 0.0
    %557 = vmatprep.subr.mxu0 0.0
    %558 = vmatpush1.msra.mxu0 0.0
    %559 = vmatprep.subr.mxu0 0.0
    %560 = vmatpush1.msra.mxu0 %v522
    %561 = vmatprep.subr.mxu0 0.0
    %562 = vmatpush1.msra.mxu0 %v520
    %563 = vmatprep.subr.mxu0 0.0
    %564 = vmatpush2.msra.mxu0 0.0
    %565 = vmatprep.subr.mxu0 0.0
    %566 = vmatpush2.msra.mxu0 0.0
    %567 = vmatprep.subr.mxu0 0.0
    %568 = vmatpush2.msra.mxu0 0.0
    %569 = vmatprep.subr.mxu0 0.0
    %570 = vmatpush2.msra.mxu0 0.0
    %571 = vmatprep.subr.mxu0 0.0
    %572 = vmatpush2.msra.mxu0 0.0
    %573 = vmatprep.subr.mxu0 0.0
    %574 = vmatpush2.msra.mxu0 0.0
    %575 = vmatprep.subr.mxu0 0.0
    %576 = vmatpush2.msra.mxu0 0.0
    %577 = vmatprep.subr.mxu0 0.0
    %578 = vmatpush2.msra.mxu0 0.0
    %579 = vmatprep.subr.mxu0 0.0
    %580 = vmatpush2.msra.mxu0 0.0
    %581 = vmatprep.subr.mxu0 0.0
    %582 = vmatpush2.msra.mxu0 0.0
    %583 = vmatprep.subr.mxu0 0.0
    %584 = vmatpush2.msra.mxu0 0.0
    %585 = vmatprep.subr.mxu0 0.0
    %586 = vmatpush2.msra.mxu0 0.0
    %587 = vmatprep.subr.mxu0 0.0
    %588 = vmatpush2.msra.mxu0 0.0
    %589 = vmatprep.subr.mxu0 0.0
    %590 = vmatpush2.msra.mxu0 0.0
    %591 = vmatprep.subr.mxu0 0.0
    %592 = vmatpush2.msra.mxu0 0.0
    %593 = vmatprep.subr.mxu0 0.0
    %594 = vmatpush2.msra.mxu0 0.0
    %595 = vmatprep.mubr.f32.mxu0 0.0
    %596 = vmatmul.mubr.f32.gmra.mxu0 %v526
    %v597 = vpop.f32.mrf.mxu0
    %v598 = vadd.f32 0.0, %v597
    %v599 = vpop.f32.mrf.mxu0
    %600 = vmatprep.mubr.f32.mxu0 0.0
    %601 = vmatmul.mubr.f32.gmra.mxu0 %v529
    %v602 = vpop.f32.mrf.mxu0
    %v603 = vadd.f32 0.0, %v602
    %v604 = vpop.f32.mrf.mxu0
    %605 = vdwg.mxu0
    %606 = vrot.lane.b32.xlu0 %v395, 112
    %v607 = vpop.permute.xlu0 %606
    %608 = vrot.lane.b32.xlu0 %v400, 112
    %v609 = vpop.permute.xlu0 %608
    %610 = vrot.lane.b32.xlu0 %v395, 80
    %v611 = vpop.permute.xlu0 %610
    %612 = vrot.lane.b32.xlu0 %v400, 80
    %v613 = vpop.permute.xlu0 %612
    %v614 = vsel %vm413, %v607, 0
    %v616 = vsel %vm413, %v609, 0
    %v618 = vsel %vm413, %v611, 0
    %v620 = vsel %vm413, %v613, 0
    %622 = vmatprep.subr.mxu0 0.0
    %623 = vmatpush1.xpose.msra.mxu0 0.0
    %624 = vmatprep.subr.mxu0 0.0
    %625 = vmatpush1.xpose.msra.mxu0 0.0
    %626 = vmatprep.subr.mxu0 0.0
    %627 = vmatpush1.xpose.msra.mxu0 0.0
    %628 = vmatprep.subr.mxu0 0.0
    %629 = vmatpush1.xpose.msra.mxu0 0.0
    %630 = vmatprep.subr.mxu0 0.0
    %631 = vmatpush1.xpose.msra.mxu0 0.0
    %632 = vmatprep.subr.mxu0 0.0
    %633 = vmatpush1.xpose.msra.mxu0 0.0
    %634 = vmatprep.subr.mxu0 0.0
    %635 = vmatpush1.xpose.msra.mxu0 0.0
    %636 = vmatprep.subr.mxu0 0.0
    %637 = vmatpush1.xpose.msra.mxu0 0.0
    %638 = vmatprep.subr.mxu0 0.0
    %639 = vmatpush1.xpose.msra.mxu0 0.0
    %640 = vmatprep.subr.mxu0 0.0
    %641 = vmatpush1.xpose.msra.mxu0 0.0
    %642 = vmatprep.subr.mxu0 0.0
    %643 = vmatpush1.xpose.msra.mxu0 0.0
    %644 = vmatprep.subr.mxu0 0.0
    %645 = vmatpush1.xpose.msra.mxu0 0.0
    %646 = vmatprep.subr.mxu0 0.0
    %647 = vmatpush1.xpose.msra.mxu0 0.0
    %648 = vmatprep.subr.mxu0 0.0
    %649 = vmatpush1.xpose.msra.mxu0 0.0
    %650 = vmatprep.subr.mxu0 0.0
    %651 = vmatpush1.xpose.msra.mxu0 %v620
    %652 = vmatprep.subr.mxu0 0.0
    %653 = vmatpush1.xpose.msra.mxu0 %v618
    %654 = vmatprep.subr.mxu0 0.0
    %655 = vmatpush2.xpose.msra.mxu0 0.0
    %656 = vmatprep.subr.mxu0 0.0
    %657 = vmatpush2.xpose.msra.mxu0 0.0
    %658 = vmatprep.subr.mxu0 0.0
    %659 = vmatpush2.xpose.msra.mxu0 0.0
    %660 = vmatprep.subr.mxu0 0.0
    %661 = vmatpush2.xpose.msra.mxu0 0.0
    %662 = vmatprep.subr.mxu0 0.0
    %663 = vmatpush2.xpose.msra.mxu0 0.0
    %664 = vmatprep.subr.mxu0 0.0
    %665 = vmatpush2.xpose.msra.mxu0 0.0
    %666 = vmatprep.subr.mxu0 0.0
    %667 = vmatpush2.xpose.msra.mxu0 0.0
    %668 = vmatprep.subr.mxu0 0.0
    %669 = vmatpush2.xpose.msra.mxu0 0.0
    %670 = vmatprep.subr.mxu0 0.0
    %671 = vmatpush2.xpose.msra.mxu0 0.0
    %672 = vmatprep.subr.mxu0 0.0
    %673 = vmatpush2.xpose.msra.mxu0 0.0
    %674 = vmatprep.subr.mxu0 0.0
    %675 = vmatpush2.xpose.msra.mxu0 0.0
    %676 = vmatprep.subr.mxu0 0.0
    %677 = vmatpush2.xpose.msra.mxu0 0.0
    %678 = vmatprep.subr.mxu0 0.0
    %679 = vmatpush2.xpose.msra.mxu0 0.0
    %680 = vmatprep.subr.mxu0 0.0
    %681 = vmatpush2.xpose.msra.mxu0 0.0
    %682 = vmatprep.subr.mxu0 0.0
    %683 = vmatpush2.xpose.msra.mxu0 0.0
    %684 = vmatprep.subr.mxu0 0.0
    %685 = vmatpush2.xpose.msra.mxu0 0.0
    %686 = vmatprep.mubr.f32.mxu0 0.0
    %687 = vmatmul.mubr.f32.gmra.mxu0 %v614
    %v688 = vpop.f32.mrf.mxu0
    %v689 = vadd.f32 %v309, %v688
    %v690 = vpop.f32.mrf.mxu0
    %691 = vmatprep.mubr.f32.mxu0 0.0
    %692 = vmatmul.mubr.f32.gmra.mxu0 %v616
    %v693 = vpop.f32.mrf.mxu0
    %v694 = vadd.f32 %v310, %v693
    %v695 = vpop.f32.mrf.mxu0
    %696 = vdwg.mxu0
    %v697 = vsel %vm413, %v689, -inf
    %698 = vmax.xlane.f32.xlu0 %v697
    %v699 = vpop.xlane.xlu0 %698
    %v700 = vsel %vm413, %v694, -inf
    %701 = vmax.xlane.f32.xlu0 %v700
    %v702 = vpop.xlane.xlu0 %701
    %v703 = vsub.f32 %v689, %v699
    %v704 = vsub.f32 %v694, %v702
    %v705 = vmul.f32 %v703, 1.442695
    %v706 = vpow.pop %v705
    %v707 = vmul.f32 %v704, 1.442695
    %v708 = vpow.pop %v707
    %v709 = vsel %vm413, %v706, 0.0
    %710 = vadd.xlane.f32.xlu0 %v709
    %v711 = vpop.xlane.xlu0 %710
    %v712 = vsel %vm413, %v708, 0.0
    %713 = vadd.xlane.f32.xlu0 %v712
    %v714 = vpop.xlane.xlu0 %713
    %v715 = vrcp.pop %v711
    %v716 = vrcp.pop %v714
    %v717 = vmul.f32 %v706, %v715
    %v718 = vmul.f32 %v708, %v716
    %719 = vrot.lane.b32.xlu0 %v395, 48
    %v720 = vpop.permute.xlu0 %719
    %721 = vrot.lane.b32.xlu0 %v400, 48
    %v722 = vpop.permute.xlu0 %721
    %v726 = vsel %vm413, %v717, 0
    %v729 = vsel %vm413, %v718, 0
    %731 = vmatprep.subr.mxu0 0.0
    %732 = vmatpush1.msra.mxu0 0.0
    %733 = vmatprep.subr.mxu0 0.0
    %734 = vmatpush1.msra.mxu0 0.0
    %735 = vmatprep.subr.mxu0 0.0
    %736 = vmatpush1.msra.mxu0 0.0
    %737 = vmatprep.subr.mxu0 0.0
    %738 = vmatpush1.msra.mxu0 0.0
    %739 = vmatprep.subr.mxu0 0.0
    %740 = vmatpush1.msra.mxu0 0.0
    %741 = vmatprep.subr.mxu0 0.0
    %742 = vmatpush1.msra.mxu0 0.0
    %743 = vmatprep.subr.mxu0 0.0
    %744 = vmatpush1.msra.mxu0 0.0
    %745 = vmatprep.subr.mxu0 0.0
    %746 = vmatpush1.msra.mxu0 0.0
    %747 = vmatprep.subr.mxu0 0.0
    %748 = vmatpush1.msra.mxu0 0.0
    %749 = vmatprep.subr.mxu0 0.0
    %750 = vmatpush1.msra.mxu0 0.0
    %751 = vmatprep.subr.mxu0 0.0
    %752 = vmatpush1.msra.mxu0 0.0
    %753 = vmatprep.subr.mxu0 0.0
    %754 = vmatpush1.msra.mxu0 0.0
    %755 = vmatprep.subr.mxu0 0.0
    %756 = vmatpush1.msra.mxu0 0.0
    %757 = vmatprep.subr.mxu0 0.0
    %758 = vmatpush1.msra.mxu0 0.0
    %759 = vmatprep.subr.mxu0 0.0
    %760 = vmatpush1.msra.mxu0 %v722
    %761 = vmatprep.subr.mxu0 0.0
    %762 = vmatpush1.msra.mxu0 %v720
    %763 = vmatprep.subr.mxu0 0.0
    %764 = vmatpush2.msra.mxu0 0.0
    %765 = vmatprep.subr.mxu0 0.0
    %766 = vmatpush2.msra.mxu0 0.0
    %767 = vmatprep.subr.mxu0 0.0
    %768 = vmatpush2.msra.mxu0 0.0
    %769 = vmatprep.subr.mxu0 0.0
    %770 = vmatpush2.msra.mxu0 0.0
    %771 = vmatprep.subr.mxu0 0.0
    %772 = vmatpush2.msra.mxu0 0.0
    %773 = vmatprep.subr.mxu0 0.0
    %774 = vmatpush2.msra.mxu0 0.0
    %775 = vmatprep.subr.mxu0 0.0
    %776 = vmatpush2.msra.mxu0 0.0
    %777 = vmatprep.subr.mxu0 0.0
    %778 = vmatpush2.msra.mxu0 0.0
    %779 = vmatprep.subr.mxu0 0.0
    %780 = vmatpush2.msra.mxu0 0.0
    %781 = vmatprep.subr.mxu0 0.0
    %782 = vmatpush2.msra.mxu0 0.0
    %783 = vmatprep.subr.mxu0 0.0
    %784 = vmatpush2.msra.mxu0 0.0
    %785 = vmatprep.subr.mxu0 0.0
    %786 = vmatpush2.msra.mxu0 0.0
    %787 = vmatprep.subr.mxu0 0.0
    %788 = vmatpush2.msra.mxu0 0.0
    %789 = vmatprep.subr.mxu0 0.0
    %790 = vmatpush2.msra.mxu0 0.0
    %791 = vmatprep.subr.mxu0 0.0
    %792 = vmatpush2.msra.mxu0 0.0
    %793 = vmatprep.subr.mxu0 0.0
    %794 = vmatpush2.msra.mxu0 0.0
    %795 = vmatprep.mubr.f32.mxu0 0.0
    %796 = vmatmul.mubr.f32.gmra.mxu0 %v726
    %v797 = vpop.f32.mrf.mxu0
    %v798 = vadd.f32 0.0, %v797
    %v799 = vpop.f32.mrf.mxu0
    %800 = vmatprep.mubr.f32.mxu0 0.0
    %801 = vmatmul.mubr.f32.gmra.mxu0 %v729
    %v802 = vpop.f32.mrf.mxu0
    %v803 = vadd.f32 0.0, %v802
    %v804 = vpop.f32.mrf.mxu0
    %805 = vdwg.mxu0
    %v807 = vsel %vm413, %v798, 0
    %v810 = vsel %vm413, %v803, 0
    %812 = vmatprep.subr.mxu0 0.0
    %813 = vmatpush1.msra.mxu0 0.0
    %814 = vmatprep.subr.mxu0 0.0
    %815 = vmatpush1.msra.mxu0 0.0
    %816 = vmatprep.subr.mxu0 0.0
    %817 = vmatpush1.msra.mxu0 0.0
    %818 = vmatprep.subr.mxu0 0.0
    %819 = vmatpush1.msra.mxu0 0.0
    %820 = vmatprep.subr.mxu0 0.0
    %821 = vmatpush1.msra.mxu0 0.0
    %822 = vmatprep.subr.mxu0 0.0
    %823 = vmatpush1.msra.mxu0 0.0
    %824 = vmatprep.subr.mxu0 0.0
    %825 = vmatpush1.msra.mxu0 0.0
    %826 = vmatprep.subr.mxu0 0.0
    %827 = vmatpush1.msra.mxu0 0.0
    %828 = vmatprep.subr.mxu0 0.0
    %829 = vmatpush1.msra.mxu0 0.0
    %830 = vmatprep.subr.mxu0 0.0
    %831 = vmatpush1.msra.mxu0 0.0
    %832 = vmatprep.subr.mxu0 0.0
    %833 = vmatpush1.msra.mxu0 0.0
    %834 = vmatprep.subr.mxu0 0.0
    %835 = vmatpush1.msra.mxu0 0.0
    %836 = vmatprep.subr.mxu0 0.0
    %837 = vmatpush1.msra.mxu0 0.0
    %838 = vmatprep.subr.mxu0 0.0
    %839 = vmatpush1.msra.mxu0 0.0
    %840 = vmatprep.subr.mxu0 0.0
    %841 = vmatpush1.msra.mxu0 %v406
    %842 = vmatprep.subr.mxu0 0.0
    %843 = vmatpush1.msra.mxu0 %v405
    %844 = vmatprep.subr.mxu0 0.0
    %845 = vmatpush2.msra.mxu0 0.0
    %846 = vmatprep.subr.mxu0 0.0
    %847 = vmatpush2.msra.mxu0 0.0
    %848 = vmatprep.subr.mxu0 0.0
    %849 = vmatpush2.msra.mxu0 0.0
    %850 = vmatprep.subr.mxu0 0.0
    %851 = vmatpush2.msra.mxu0 0.0
    %852 = vmatprep.subr.mxu0 0.0
    %853 = vmatpush2.msra.mxu0 0.0
    %854 = vmatprep.subr.mxu0 0.0
    %855 = vmatpush2.msra.mxu0 0.0
    %856 = vmatprep.subr.mxu0 0.0
    %857 = vmatpush2.msra.mxu0 0.0
    %858 = vmatprep.subr.mxu0 0.0
    %859 = vmatpush2.msra.mxu0 0.0
    %860 = vmatprep.subr.mxu0 0.0
    %861 = vmatpush2.msra.mxu0 0.0
    %862 = vmatprep.subr.mxu0 0.0
    %863 = vmatpush2.msra.mxu0 0.0
    %864 = vmatprep.subr.mxu0 0.0
    %865 = vmatpush2.msra.mxu0 0.0
    %866 = vmatprep.subr.mxu0 0.0
    %867 = vmatpush2.msra.mxu0 0.0
    %868 = vmatprep.subr.mxu0 0.0
    %869 = vmatpush2.msra.mxu0 0.0
    %870 = vmatprep.subr.mxu0 0.0
    %871 = vmatpush2.msra.mxu0 0.0
    %872 = vmatprep.subr.mxu0 0.0
    %873 = vmatpush2.msra.mxu0 0.0
    %874 = vmatprep.subr.mxu0 0.0
    %875 = vmatpush2.msra.mxu0 0.0
    %876 = vmatprep.mubr.f32.mxu0 0.0
    %877 = vmatmul.mubr.f32.gmra.mxu0 %v807
    %v878 = vpop.f32.mrf.mxu0
    %v879 = vadd.f32 0.0, %v878
    %v880 = vpop.f32.mrf.mxu0
    %881 = vmatprep.mubr.f32.mxu0 0.0
    %882 = vmatmul.mubr.f32.gmra.mxu0 %v810
    %v883 = vpop.f32.mrf.mxu0
    %v884 = vadd.f32 0.0, %v883
    %v885 = vpop.f32.mrf.mxu0
    %886 = vdwg.mxu0
    %v888 = vsel %vm413, %v598, 0
    %v891 = vsel %vm413, %v603, 0
    %893 = vmatprep.subr.mxu0 0.0
    %894 = vmatpush1.msra.mxu0 0.0
    %895 = vmatprep.subr.mxu0 0.0
    %896 = vmatpush1.msra.mxu0 0.0
    %897 = vmatprep.subr.mxu0 0.0
    %898 = vmatpush1.msra.mxu0 0.0
    %899 = vmatprep.subr.mxu0 0.0
    %900 = vmatpush1.msra.mxu0 0.0
    %901 = vmatprep.subr.mxu0 0.0
    %902 = vmatpush1.msra.mxu0 0.0
    %903 = vmatprep.subr.mxu0 0.0
    %904 = vmatpush1.msra.mxu0 0.0
    %905 = vmatprep.subr.mxu0 0.0
    %906 = vmatpush1.msra.mxu0 0.0
    %907 = vmatprep.subr.mxu0 0.0
    %908 = vmatpush1.msra.mxu0 0.0
    %909 = vmatprep.subr.mxu0 0.0
    %910 = vmatpush1.msra.mxu0 0.0
    %911 = vmatprep.subr.mxu0 0.0
    %912 = vmatpush1.msra.mxu0 0.0
    %913 = vmatprep.subr.mxu0 0.0
    %914 = vmatpush1.msra.mxu0 0.0
    %915 = vmatprep.subr.mxu0 0.0
    %916 = vmatpush1.msra.mxu0 0.0
    %917 = vmatprep.subr.mxu0 0.0
    %918 = vmatpush1.msra.mxu0 0.0
    %919 = vmatprep.subr.mxu0 0.0
    %920 = vmatpush1.msra.mxu0 0.0
    %921 = vmatprep.subr.mxu0 0.0
    %922 = vmatpush1.msra.mxu0 %v404
    %923 = vmatprep.subr.mxu0 0.0
    %924 = vmatpush1.msra.mxu0 %v403
    %925 = vmatprep.subr.mxu0 0.0
    %926 = vmatpush2.msra.mxu0 0.0
    %927 = vmatprep.subr.mxu0 0.0
    %928 = vmatpush2.msra.mxu0 0.0
    %929 = vmatprep.subr.mxu0 0.0
    %930 = vmatpush2.msra.mxu0 0.0
    %931 = vmatprep.subr.mxu0 0.0
    %932 = vmatpush2.msra.mxu0 0.0
    %933 = vmatprep.subr.mxu0 0.0
    %934 = vmatpush2.msra.mxu0 0.0
    %935 = vmatprep.subr.mxu0 0.0
    %936 = vmatpush2.msra.mxu0 0.0
    %937 = vmatprep.subr.mxu0 0.0
    %938 = vmatpush2.msra.mxu0 0.0
    %939 = vmatprep.subr.mxu0 0.0
    %940 = vmatpush2.msra.mxu0 0.0
    %941 = vmatprep.subr.mxu0 0.0
    %942 = vmatpush2.msra.mxu0 0.0
    %943 = vmatprep.subr.mxu0 0.0
    %944 = vmatpush2.msra.mxu0 0.0
    %945 = vmatprep.subr.mxu0 0.0
    %946 = vmatpush2.msra.mxu0 0.0
    %947 = vmatprep.subr.mxu0 0.0
    %948 = vmatpush2.msra.mxu0 0.0
    %949 = vmatprep.subr.mxu0 0.0
    %950 = vmatpush2.msra.mxu0 0.0
    %951 = vmatprep.subr.mxu0 0.0
    %952 = vmatpush2.msra.mxu0 0.0
    %953 = vmatprep.subr.mxu0 0.0
    %954 = vmatpush2.msra.mxu0 0.0
    %955 = vmatprep.subr.mxu0 0.0
    %956 = vmatpush2.msra.mxu0 0.0
    %957 = vmatprep.mubr.f32.mxu0 0.0
    %958 = vmatmul.mubr.f32.gmra.mxu0 %v888
    %v959 = vpop.f32.mrf.mxu0
    %v960 = vadd.f32 %v879, %v959
    %v961 = vpop.f32.mrf.mxu0
    %962 = vmatprep.mubr.f32.mxu0 0.0
    %963 = vmatmul.mubr.f32.gmra.mxu0 %v891
    %v964 = vpop.f32.mrf.mxu0
    %v965 = vadd.f32 %v884, %v964
    %v966 = vpop.f32.mrf.mxu0
    %967 = vdwg.mxu0
    %v968 = vld [vmem:[%s11] sm:$0x1]
    %v970 = vlaneseq
    %v971 = vshrl.u32 %v970, 7
    %v972 = vsub.s32 0, %v971
    %v973 = vrot.slane %v968, %v972
    %v975 = vadd.f32 %v960, %v973
    %v976 = vadd.f32 %v965, %v973
    %v977 = vadd.f32 %v975, %v307
    %v978 = vadd.f32 %v976, %v308
    %v979 = vld [vmem:[%s12] sm:$0x1]
    %v980 = vld [vmem:[%s13] sm:$0x1]
    %v981 = vsel %vm265, %v977, 0.0
    %982 = vadd.xlane.f32.xlu0 %v981
    %v983 = vpop.xlane.xlu0 %982
    %v984 = vsel %vm265, %v978, 0.0
    %985 = vadd.xlane.f32.xlu0 %v984
    %v986 = vpop.xlane.xlu0 %985
    %v987 = vmul.f32 %v983, %v272
    %v988 = vmul.f32 %v986, %v272
    %v989 = vsub.f32 %v977, %v987
    %v990 = vsub.f32 %v978, %v988
    %v991 = vmul.f32 %v989, %v989
    %v992 = vmul.f32 %v990, %v990
    %v993 = vsel %vm265, %v991, 0.0
    %994 = vadd.xlane.f32.xlu0 %v993
    %v995 = vpop.xlane.xlu0 %994
    %v996 = vsel %vm265, %v992, 0.0
    %997 = vadd.xlane.f32.xlu0 %v996
    %v998 = vpop.xlane.xlu0 %997
    %v999 = vmul.f32 %v995, %v272
    %v1000 = vmul.f32 %v998, %v272
    %v1001 = vadd.f32 %v999, 1e-12
    %v1002 = vadd.f32 %v1000, 1e-12
    %v1003 = vrsqrt.pop %v1001
    %v1004 = vrsqrt.pop %v1002
    %v1005 = vmul.f32 %v989, %v1003
    %v1006 = vmul.f32 %v990, %v1004
    %v1008 = vlaneseq
    %v1009 = vshrl.u32 %v1008, 7
    %v1010 = vsub.s32 0, %v1009
    %v1011 = vrot.slane %v979, %v1010
    %v1013 = vmul.f32 %v1005, %v1011
    %v1014 = vmul.f32 %v1006, %v1011
    %v1016 = vlaneseq
    %v1017 = vshrl.u32 %v1016, 7
    %v1018 = vsub.s32 0, %v1017
    %v1019 = vrot.slane %v980, %v1018
    %v1021 = vadd.f32 %v1013, %v1019
    %v1022 = vadd.f32 %v1014, %v1019
    %v1023 = vld [vmem:[%s14] sm:$0xff]
    %v1024 = vld [vmem:[%s14 + $0x8] sm:$0xff]
    %v1025 = vld [vmem:[%s14 + $0x10] sm:$0xff]
    %v1026 = vld [vmem:[%s14 + $0x18] sm:$0xff]
    %v1027 = vld [vmem:[%s15] sm:$0x1]
    %v1029 = vlaneseq
    %v1030 = vshrl.u32 %v1029, 7
    %v1031 = vsub.s32 0, %v1030
    %v1032 = vrot.slane %v1027, %v1031
    %v1035 = vsel %vm265, %v1021, 0
    %v1038 = vsel %vm265, %v1022, 0
    %1040 = vmatprep.subr.mxu0 0.0
    %1041 = vmatpush1.msra.mxu0 0.0
    %1042 = vmatprep.subr.mxu0 0.0
    %1043 = vmatpush1.msra.mxu0 0.0
    %1044 = vmatprep.subr.mxu0 0.0
    %1045 = vmatpush1.msra.mxu0 0.0
    %1046 = vmatprep.subr.mxu0 0.0
    %1047 = vmatpush1.msra.mxu0 0.0
    %1048 = vmatprep.subr.mxu0 0.0
    %1049 = vmatpush1.msra.mxu0 0.0
    %1050 = vmatprep.subr.mxu0 0.0
    %1051 = vmatpush1.msra.mxu0 0.0
    %1052 = vmatprep.subr.mxu0 0.0
    %1053 = vmatpush1.msra.mxu0 0.0
    %1054 = vmatprep.subr.mxu0 0.0
    %1055 = vmatpush1.msra.mxu0 0.0
    %1056 = vmatprep.subr.mxu0 0.0
    %1057 = vmatpush1.msra.mxu0 0.0
    %1058 = vmatprep.subr.mxu0 0.0
    %1059 = vmatpush1.msra.mxu0 0.0
    %1060 = vmatprep.subr.mxu0 0.0
    %1061 = vmatpush1.msra.mxu0 0.0
    %1062 = vmatprep.subr.mxu0 0.0
    %1063 = vmatpush1.msra.mxu0 0.0
    %1064 = vmatprep.subr.mxu0 0.0
    %1065 = vmatpush1.msra.mxu0 %v1026
    %1066 = vmatprep.subr.mxu0 0.0
    %1067 = vmatpush1.msra.mxu0 %v1025
    %1068 = vmatprep.subr.mxu0 0.0
    %1069 = vmatpush1.msra.mxu0 %v1024
    %1070 = vmatprep.subr.mxu0 0.0
    %1071 = vmatpush1.msra.mxu0 %v1023
    %1072 = vmatprep.subr.mxu0 0.0
    %1073 = vmatpush2.msra.mxu0 0.0
    %1074 = vmatprep.subr.mxu0 0.0
    %1075 = vmatpush2.msra.mxu0 0.0
    %1076 = vmatprep.subr.mxu0 0.0
    %1077 = vmatpush2.msra.mxu0 0.0
    %1078 = vmatprep.subr.mxu0 0.0
    %1079 = vmatpush2.msra.mxu0 0.0
    %1080 = vmatprep.subr.mxu0 0.0
    %1081 = vmatpush2.msra.mxu0 0.0
    %1082 = vmatprep.subr.mxu0 0.0
    %1083 = vmatpush2.msra.mxu0 0.0
    %1084 = vmatprep.subr.mxu0 0.0
    %1085 = vmatpush2.msra.mxu0 0.0
    %1086 = vmatprep.subr.mxu0 0.0
    %1087 = vmatpush2.msra.mxu0 0.0
    %1088 = vmatprep.subr.mxu0 0.0
    %1089 = vmatpush2.msra.mxu0 0.0
    %1090 = vmatprep.subr.mxu0 0.0
    %1091 = vmatpush2.msra.mxu0 0.0
    %1092 = vmatprep.subr.mxu0 0.0
    %1093 = vmatpush2.msra.mxu0 0.0
    %1094 = vmatprep.subr.mxu0 0.0
    %1095 = vmatpush2.msra.mxu0 0.0
    %1096 = vmatprep.subr.mxu0 0.0
    %1097 = vmatpush2.msra.mxu0 0.0
    %1098 = vmatprep.subr.mxu0 0.0
    %1099 = vmatpush2.msra.mxu0 0.0
    %1100 = vmatprep.subr.mxu0 0.0
    %1101 = vmatpush2.msra.mxu0 0.0
    %1102 = vmatprep.subr.mxu0 0.0
    %1103 = vmatpush2.msra.mxu0 0.0
    %1104 = vmatprep.mubr.f32.mxu0 0.0
    %1105 = vmatmul.mubr.f32.gmra.mxu0 %v1035
    %v1106 = vpop.f32.mrf.mxu0
    %v1107 = vadd.f32 %v1032, %v1106
    %v1108 = vpop.f32.mrf.mxu0
    %1109 = vmatprep.mubr.f32.mxu0 0.0
    %1110 = vmatmul.mubr.f32.gmra.mxu0 %v1038
    %v1111 = vpop.f32.mrf.mxu0
    %v1112 = vadd.f32 %v1032, %v1111
    %v1113 = vpop.f32.mrf.mxu0
    %1114 = vdwg.mxu0
    %v1115 = vmul.f32 %v1107, 0.5
    %v1116 = vmul.f32 %v1112, 0.5
    %v1117 = vmul.f32 %v1107, 0.044715
    %v1118 = vmul.f32 %v1112, 0.044715
    %v1119 = vmul.f32 %v1117, %v1107
    %v1120 = vmul.f32 %v1118, %v1112
    %v1121 = vmul.f32 %v1119, %v1107
    %v1122 = vmul.f32 %v1120, %v1112
    %v1123 = vadd.f32 %v1107, %v1121
    %v1124 = vadd.f32 %v1112, %v1122
    %v1125 = vmul.f32 %v1123, 0.7978846
    %v1126 = vmul.f32 %v1124, 0.7978846
    %v1127 = vtanh.pop %v1125
    %v1128 = vtanh.pop %v1126
    %v1129 = vadd.f32 %v1127, 1.0
    %v1130 = vadd.f32 %v1128, 1.0
    %v1131 = vmul.f32 %v1115, %v1129
    %v1132 = vmul.f32 %v1116, %v1130
    %v1133 = vld [vmem:[%s16] sm:$0xff]
    %v1134 = vld [vmem:[%s16 + $0x8] sm:$0xff]
    %v1135 = vld [vmem:[%s16 + $0x10] sm:$0xff]
    %v1136 = vld [vmem:[%s16 + $0x18] sm:$0xff]
    %v1137 = vld [vmem:[%s16 + $0x20] sm:$0xff]
    %v1138 = vld [vmem:[%s16 + $0x28] sm:$0xff]
    %v1139 = vld [vmem:[%s16 + $0x30] sm:$0xff]
    %v1140 = vld [vmem:[%s16 + $0x38] sm:$0xff]
    %v1141 = vld [vmem:[%s17] sm:$0x1]
    %v1143 = vlaneseq
    %v1144 = vshrl.u32 %v1143, 7
    %v1145 = vsub.s32 0, %v1144
    %v1146 = vrot.slane %v1141, %v1145
    %vm1148 = vcmask 523264
    %v1150 = vsel %vm1148, %v1131, 0
    %v1153 = vsel %vm1148, %v1132, 0
    %1155 = vmatprep.subr.mxu0 0.0
    %1156 = vmatpush1.msra.mxu0 0.0
    %1157 = vmatprep.subr.mxu0 0.0
    %1158 = vmatpush1.msra.mxu0 0.0
    %1159 = vmatprep.subr.mxu0 0.0
    %1160 = vmatpush1.msra.mxu0 0.0
    %1161 = vmatprep.subr.mxu0 0.0
    %1162 = vmatpush1.msra.mxu0 0.0
    %1163 = vmatprep.subr.mxu0 0.0
    %1164 = vmatpush1.msra.mxu0 0.0
    %1165 = vmatprep.subr.mxu0 0.0
    %1166 = vmatpush1.msra.mxu0 0.0
    %1167 = vmatprep.subr.mxu0 0.0
    %1168 = vmatpush1.msra.mxu0 0.0
    %1169 = vmatprep.subr.mxu0 0.0
    %1170 = vmatpush1.msra.mxu0 0.0
    %1171 = vmatprep.subr.mxu0 0.0
    %1172 = vmatpush1.msra.mxu0 %v1140
    %1173 = vmatprep.subr.mxu0 0.0
    %1174 = vmatpush1.msra.mxu0 %v1139
    %1175 = vmatprep.subr.mxu0 0.0
    %1176 = vmatpush1.msra.mxu0 %v1138
    %1177 = vmatprep.subr.mxu0 0.0
    %1178 = vmatpush1.msra.mxu0 %v1137
    %1179 = vmatprep.subr.mxu0 0.0
    %1180 = vmatpush1.msra.mxu0 %v1136
    %1181 = vmatprep.subr.mxu0 0.0
    %1182 = vmatpush1.msra.mxu0 %v1135
    %1183 = vmatprep.subr.mxu0 0.0
    %1184 = vmatpush1.msra.mxu0 %v1134
    %1185 = vmatprep.subr.mxu0 0.0
    %1186 = vmatpush1.msra.mxu0 %v1133
    %1187 = vmatprep.subr.mxu0 0.0
    %1188 = vmatpush2.msra.mxu0 0.0
    %1189 = vmatprep.subr.mxu0 0.0
    %1190 = vmatpush2.msra.mxu0 0.0
    %1191 = vmatprep.subr.mxu0 0.0
    %1192 = vmatpush2.msra.mxu0 0.0
    %1193 = vmatprep.subr.mxu0 0.0
    %1194 = vmatpush2.msra.mxu0 0.0
    %1195 = vmatprep.subr.mxu0 0.0
    %1196 = vmatpush2.msra.mxu0 0.0
    %1197 = vmatprep.subr.mxu0 0.0
    %1198 = vmatpush2.msra.mxu0 0.0
    %1199 = vmatprep.subr.mxu0 0.0
    %1200 = vmatpush2.msra.mxu0 0.0
    %1201 = vmatprep.subr.mxu0 0.0
    %1202 = vmatpush2.msra.mxu0 0.0
    %1203 = vmatprep.subr.mxu0 0.0
    %1204 = vmatpush2.msra.mxu0 0.0
    %1205 = vmatprep.subr.mxu0 0.0
    %1206 = vmatpush2.msra.mxu0 0.0
    %1207 = vmatprep.subr.mxu0 0.0
    %1208 = vmatpush2.msra.mxu0 0.0
    %1209 = vmatprep.subr.mxu0 0.0
    %1210 = vmatpush2.msra.mxu0 0.0
    %1211 = vmatprep.subr.mxu0 0.0
    %1212 = vmatpush2.msra.mxu0 0.0
    %1213 = vmatprep.subr.mxu0 0.0
    %1214 = vmatpush2.msra.mxu0 0.0
    %1215 = vmatprep.subr.mxu0 0.0
    %1216 = vmatpush2.msra.mxu0 0.0
    %1217 = vmatprep.subr.mxu0 0.0
    %1218 = vmatpush2.msra.mxu0 0.0
    %1219 = vmatprep.mubr.f32.mxu0 0.0
    %1220 = vmatmul.mubr.f32.gmra.mxu0 %v1150
    %v1221 = vpop.f32.mrf.mxu0
    %v1222 = vadd.f32 %v1146, %v1221
    %v1223 = vpop.f32.mrf.mxu0
    %1224 = vmatprep.mubr.f32.mxu0 0.0
    %1225 = vmatmul.mubr.f32.gmra.mxu0 %v1153
    %v1226 = vpop.f32.mrf.mxu0
    %v1227 = vadd.f32 %v1146, %v1226
    %v1228 = vpop.f32.mrf.mxu0
    %1229 = vdwg.mxu0
    %v1230 = vadd.f32 %v1222, %v1021
    %v1231 = vadd.f32 %v1227, %v1022
    %v1232 = vld [vmem:[%s18] sm:$0x1]
    %v1233 = vld [vmem:[%s19] sm:$0x1]
    %v1234 = vsel %vm265, %v1230, 0.0
    %1235 = vadd.xlane.f32.xlu0 %v1234
    %v1236 = vpop.xlane.xlu0 %1235
    %v1237 = vsel %vm265, %v1231, 0.0
    %1238 = vadd.xlane.f32.xlu0 %v1237
    %v1239 = vpop.xlane.xlu0 %1238
    %v1240 = vmul.f32 %v1236, %v272
    %v1241 = vmul.f32 %v1239, %v272
    %v1242 = vsub.f32 %v1230, %v1240
    %v1243 = vsub.f32 %v1231, %v1241
    %v1244 = vmul.f32 %v1242, %v1242
    %v1245 = vmul.f32 %v1243, %v1243
    %v1246 = vsel %vm265, %v1244, 0.0
    %1247 = vadd.xlane.f32.xlu0 %v1246
    %v1248 = vpop.xlane.xlu0 %1247
    %v1249 = vsel %vm265, %v1245, 0.0
    %1250 = vadd.xlane.f32.xlu0 %v1249
    %v1251 = vpop.xlane.xlu0 %1250
    %v1252 = vmul.f32 %v1248, %v272
    %v1253 = vmul.f32 %v1251, %v272
    %v1254 = vadd.f32 %v1252, 1e-12
    %v1255 = vadd.f32 %v1253, 1e-12
    %v1256 = vrsqrt.pop %v1254
    %v1257 = vrsqrt.pop %v1255
    %v1258 = vmul.f32 %v1242, %v1256
    %v1259 = vmul.f32 %v1243, %v1257
    %v1261 = vlaneseq
    %v1262 = vshrl.u32 %v1261, 7
    %v1263 = vsub.s32 0, %v1262
    %v1264 = vrot.slane %v1232, %v1263
    %v1266 = vmul.f32 %v1258, %v1264
    %v1267 = vmul.f32 %v1259, %v1264
    %v1269 = vlaneseq
    %v1270 = vshrl.u32 %v1269, 7
    %v1271 = vsub.s32 0, %v1270
    %v1272 = vrot.slane %v1233, %v1271
    %v1274 = vadd.f32 %v1266, %v1272
    %v1275 = vadd.f32 %v1267, %v1272
    %s1276 = scalar_lea.vmem %s8, 32
    %v1277 = vld [vmem:[%s1276] sm:$0xff]
    %v1278 = vld [vmem:[%s1276 + $0x8] sm:$0xff]
    %v1279 = vld [vmem:[%s1276 + $0x10] sm:$0xff]
    %v1280 = vld [vmem:[%s1276 + $0x18] sm:$0xff]
    %s1281 = scalar_lea.vmem %s9, 1
    %v1282 = vld [vmem:[%s1281] sm:$0x1]
    %v1284 = vlaneseq
    %v1285 = vshrl.u32 %v1284, 7
    %v1286 = vsub.s32 0, %v1285
    %v1287 = vrot.slane %v1282, %v1286
    %v1290 = vsel %vm265, %v1274, 0
    %v1293 = vsel %vm265, %v1275, 0
    %1295 = vmatprep.subr.mxu0 0.0
    %1296 = vmatpush1.msra.mxu0 0.0
    %1297 = vmatprep.subr.mxu0 0.0
    %1298 = vmatpush1.msra.mxu0 0.0
    %1299 = vmatprep.subr.mxu0 0.0
    %1300 = vmatpush1.msra.mxu0 0.0
    %1301 = vmatprep.subr.mxu0 0.0
    %1302 = vmatpush1.msra.mxu0 0.0
    %1303 = vmatprep.subr.mxu0 0.0
    %1304 = vmatpush1.msra.mxu0 0.0
    %1305 = vmatprep.subr.mxu0 0.0
    %1306 = vmatpush1.msra.mxu0 0.0
    %1307 = vmatprep.subr.mxu0 0.0
    %1308 = vmatpush1.msra.mxu0 0.0
    %1309 = vmatprep.subr.mxu0 0.0
    %1310 = vmatpush1.msra.mxu0 0.0
    %1311 = vmatprep.subr.mxu0 0.0
    %1312 = vmatpush1.msra.mxu0 0.0
    %1313 = vmatprep.subr.mxu0 0.0
    %1314 = vmatpush1.msra.mxu0 0.0
    %1315 = vmatprep.subr.mxu0 0.0
    %1316 = vmatpush1.msra.mxu0 0.0
    %1317 = vmatprep.subr.mxu0 0.0
    %1318 = vmatpush1.msra.mxu0 0.0
    %1319 = vmatprep.subr.mxu0 0.0
    %1320 = vmatpush1.msra.mxu0 %v1280
    %1321 = vmatprep.subr.mxu0 0.0
    %1322 = vmatpush1.msra.mxu0 %v1279
    %1323 = vmatprep.subr.mxu0 0.0
    %1324 = vmatpush1.msra.mxu0 %v1278
    %1325 = vmatprep.subr.mxu0 0.0
    %1326 = vmatpush1.msra.mxu0 %v1277
    %1327 = vmatprep.subr.mxu0 0.0
    %1328 = vmatpush2.msra.mxu0 0.0
    %1329 = vmatprep.subr.mxu0 0.0
    %1330 = vmatpush2.msra.mxu0 0.0
    %1331 = vmatprep.subr.mxu0 0.0
    %1332 = vmatpush2.msra.mxu0 0.0
    %1333 = vmatprep.subr.mxu0 0.0
    %1334 = vmatpush2.msra.mxu0 0.0
    %1335 = vmatprep.subr.mxu0 0.0
    %1336 = vmatpush2.msra.mxu0 0.0
    %1337 = vmatprep.subr.mxu0 0.0
    %1338 = vmatpush2.msra.mxu0 0.0
    %1339 = vmatprep.subr.mxu0 0.0
    %1340 = vmatpush2.msra.mxu0 0.0
    %1341 = vmatprep.subr.mxu0 0.0
    %1342 = vmatpush2.msra.mxu0 0.0
    %1343 = vmatprep.subr.mxu0 0.0
    %1344 = vmatpush2.msra.mxu0 0.0
    %1345 = vmatprep.subr.mxu0 0.0
    %1346 = vmatpush2.msra.mxu0 0.0
    %1347 = vmatprep.subr.mxu0 0.0
    %1348 = vmatpush2.msra.mxu0 0.0
    %1349 = vmatprep.subr.mxu0 0.0
    %1350 = vmatpush2.msra.mxu0 0.0
    %1351 = vmatprep.subr.mxu0 0.0
    %1352 = vmatpush2.msra.mxu0 0.0
    %1353 = vmatprep.subr.mxu0 0.0
    %1354 = vmatpush2.msra.mxu0 0.0
    %1355 = vmatprep.subr.mxu0 0.0
    %1356 = vmatpush2.msra.mxu0 0.0
    %1357 = vmatprep.subr.mxu0 0.0
    %1358 = vmatpush2.msra.mxu0 0.0
    %1359 = vmatprep.mubr.f32.mxu0 0.0
    %1360 = vmatmul.mubr.f32.gmra.mxu0 %v1290
    %v1361 = vpop.f32.mrf.mxu0
    %v1362 = vadd.f32 %v1287, %v1361
    %v1363 = vpop.f32.mrf.mxu0
    %1364 = vmatprep.mubr.f32.mxu0 0.0
    %1365 = vmatmul.mubr.f32.gmra.mxu0 %v1293
    %v1366 = vpop.f32.mrf.mxu0
    %v1367 = vadd.f32 %v1287, %v1366
    %v1368 = vpop.f32.mrf.mxu0
    %1369 = vdwg.mxu0
    %s1370 = scalar_lea.vmem %s10, 32
    %v1371 = vld [vmem:[%s1370] sm:$0xff]
    %v1372 = vld [vmem:[%s1370 + $0x8] sm:$0xff]
    %v1373 = vld [vmem:[%s1370 + $0x10] sm:$0xff]
    %v1374 = vld [vmem:[%s1370 + $0x18] sm:$0xff]
    %1377 = vrot.lane.b32.xlu0 %v1362, 96
    %v1378 = vpop.permute.xlu0 %1377
    %1379 = vrot.lane.b32.xlu0 %v1367, 96
    %v1380 = vpop.permute.xlu0 %1379
    %v1381 = vsel %vm413, %v1362, 0
    %v1383 = vsel %vm413, %v1367, 0
    %v1385 = vsel %vm413, %v1378, 0
    %v1387 = vsel %vm413, %v1380, 0
    %1389 = vmatprep.subr.mxu0 0.0
    %1390 = vmatpush1.xpose.msra.mxu0 0.0
    %1391 = vmatprep.subr.mxu0 0.0
    %1392 = vmatpush1.xpose.msra.mxu0 0.0
    %1393 = vmatprep.subr.mxu0 0.0
    %1394 = vmatpush1.xpose.msra.mxu0 0.0
    %1395 = vmatprep.subr.mxu0 0.0
    %1396 = vmatpush1.xpose.msra.mxu0 0.0
    %1397 = vmatprep.subr.mxu0 0.0
    %1398 = vmatpush1.xpose.msra.mxu0 0.0
    %1399 = vmatprep.subr.mxu0 0.0
    %1400 = vmatpush1.xpose.msra.mxu0 0.0
    %1401 = vmatprep.subr.mxu0 0.0
    %1402 = vmatpush1.xpose.msra.mxu0 0.0
    %1403 = vmatprep.subr.mxu0 0.0
    %1404 = vmatpush1.xpose.msra.mxu0 0.0
    %1405 = vmatprep.subr.mxu0 0.0
    %1406 = vmatpush1.xpose.msra.mxu0 0.0
    %1407 = vmatprep.subr.mxu0 0.0
    %1408 = vmatpush1.xpose.msra.mxu0 0.0
    %1409 = vmatprep.subr.mxu0 0.0
    %1410 = vmatpush1.xpose.msra.mxu0 0.0
    %1411 = vmatprep.subr.mxu0 0.0
    %1412 = vmatpush1.xpose.msra.mxu0 0.0
    %1413 = vmatprep.subr.mxu0 0.0
    %1414 = vmatpush1.xpose.msra.mxu0 0.0
    %1415 = vmatprep.subr.mxu0 0.0
    %1416 = vmatpush1.xpose.msra.mxu0 0.0
    %1417 = vmatprep.subr.mxu0 0.0
    %1418 = vmatpush1.xpose.msra.mxu0 %v1387
    %1419 = vmatprep.subr.mxu0 0.0
    %1420 = vmatpush1.xpose.msra.mxu0 %v1385
    %1421 = vmatprep.subr.mxu0 0.0
    %1422 = vmatpush2.xpose.msra.mxu0 0.0
    %1423 = vmatprep.subr.mxu0 0.0
    %1424 = vmatpush2.xpose.msra.mxu0 0.0
    %1425 = vmatprep.subr.mxu0 0.0
    %1426 = vmatpush2.xpose.msra.mxu0 0.0
    %1427 = vmatprep.subr.mxu0 0.0
    %1428 = vmatpush2.xpose.msra.mxu0 0.0
    %1429 = vmatprep.subr.mxu0 0.0
    %1430 = vmatpush2.xpose.msra.mxu0 0.0
    %1431 = vmatprep.subr.mxu0 0.0
    %1432 = vmatpush2.xpose.msra.mxu0 0.0
    %1433 = vmatprep.subr.mxu0 0.0
    %1434 = vmatpush2.xpose.msra.mxu0 0.0
    %1435 = vmatprep.subr.mxu0 0.0
    %1436 = vmatpush2.xpose.msra.mxu0 0.0
    %1437 = vmatprep.subr.mxu0 0.0
    %1438 = vmatpush2.xpose.msra.mxu0 0.0
    %1439 = vmatprep.subr.mxu0 0.0
    %1440 = vmatpush2.xpose.msra.mxu0 0.0
    %1441 = vmatprep.subr.mxu0 0.0
    %1442 = vmatpush2.xpose.msra.mxu0 0.0
    %1443 = vmatprep.subr.mxu0 0.0
    %1444 = vmatpush2.xpose.msra.mxu0 0.0
    %1445 = vmatprep.subr.mxu0 0.0
    %1446 = vmatpush2.xpose.msra.mxu0 0.0
    %1447 = vmatprep.subr.mxu0 0.0
    %1448 = vmatpush2.xpose.msra.mxu0 0.0
    %1449 = vmatprep.subr.mxu0 0.0
    %1450 = vmatpush2.xpose.msra.mxu0 0.0
    %1451 = vmatprep.subr.mxu0 0.0
    %1452 = vmatpush2.xpose.msra.mxu0 0.0
    %1453 = vmatprep.mubr.f32.mxu0 0.0
    %1454 = vmatmul.mubr.f32.gmra.mxu0 %v1381
    %v1455 = vpop.f32.mrf.mxu0
    %v1456 = vadd.f32 %v309, %v1455
    %v1457 = vpop.f32.mrf.mxu0
    %1458 = vmatprep.mubr.f32.mxu0 0.0
    %1459 = vmatmul.mubr.f32.gmra.mxu0 %v1383
    %v1460 = vpop.f32.mrf.mxu0
    %v1461 = vadd.f32 %v310, %v1460
    %v1462 = vpop.f32.mrf.mxu0
    %1463 = vdwg.mxu0
    %v1464 = vsel %vm413, %v1456, -inf
    %1465 = vmax.xlane.f32.xlu0 %v1464
    %v1466 = vpop.xlane.xlu0 %1465
    %v1467 = vsel %vm413, %v1461, -inf
    %1468 = vmax.xlane.f32.xlu0 %v1467
    %v1469 = vpop.xlane.xlu0 %1468
    %v1470 = vsub.f32 %v1456, %v1466
    %v1471 = vsub.f32 %v1461, %v1469
    %v1472 = vmul.f32 %v1470, 1.442695
    %v1473 = vpow.pop %v1472
    %v1474 = vmul.f32 %v1471, 1.442695
    %v1475 = vpow.pop %v1474
    %v1476 = vsel %vm413, %v1473, 0.0
    %1477 = vadd.xlane.f32.xlu0 %v1476
    %v1478 = vpop.xlane.xlu0 %1477
    %v1479 = vsel %vm413, %v1475, 0.0
    %1480 = vadd.xlane.f32.xlu0 %v1479
    %v1481 = vpop.xlane.xlu0 %1480
    %v1482 = vrcp.pop %v1478
    %v1483 = vrcp.pop %v1481
    %v1484 = vmul.f32 %v1473, %v1482
    %v1485 = vmul.f32 %v1475, %v1483
    %1486 = vrot.lane.b32.xlu0 %v1362, 64
    %v1487 = vpop.permute.xlu0 %1486
    %1488 = vrot.lane.b32.xlu0 %v1367, 64
    %v1489 = vpop.permute.xlu0 %1488
    %v1493 = vsel %vm413, %v1484, 0
    %v1496 = vsel %vm413, %v1485, 0
    %1498 = vmatprep.subr.mxu0 0.0
    %1499 = vmatpush1.msra.mxu0 0.0
    %1500 = vmatprep.subr.mxu0 0.0
    %1501 = vmatpush1.msra.mxu0 0.0
    %1502 = vmatprep.subr.mxu0 0.0
    %1503 = vmatpush1.msra.mxu0 0.0
    %1504 = vmatprep.subr.mxu0 0.0
    %1505 = vmatpush1.msra.mxu0 0.0
    %1506 = vmatprep.subr.mxu0 0.0
    %1507 = vmatpush1.msra.mxu0 0.0
    %1508 = vmatprep.subr.mxu0 0.0
    %1509 = vmatpush1.msra.mxu0 0.0
    %1510 = vmatprep.subr.mxu0 0.0
    %1511 = vmatpush1.msra.mxu0 0.0
    %1512 = vmatprep.subr.mxu0 0.0
    %1513 = vmatpush1.msra.mxu0 0.0
    %1514 = vmatprep.subr.mxu0 0.0
    %1515 = vmatpush1.msra.mxu0 0.0
    %1516 = vmatprep.subr.mxu0 0.0
    %1517 = vmatpush1.msra.mxu0 0.0
    %1518 = vmatprep.subr.mxu0 0.0
    %1519 = vmatpush1.msra.mxu0 0.0
    %1520 = vmatprep.subr.mxu0 0.0
    %1521 = vmatpush1.msra.mxu0 0.0
    %1522 = vmatprep.subr.mxu0 0.0
    %1523 = vmatpush1.msra.mxu0 0.0
    %1524 = vmatprep.subr.mxu0 0.0
    %1525 = vmatpush1.msra.mxu0 0.0
    %1526 = vmatprep.subr.mxu0 0.0
    %1527 = vmatpush1.msra.mxu0 %v1489
    %1528 = vmatprep.subr.mxu0 0.0
    %1529 = vmatpush1.msra.mxu0 %v1487
    %1530 = vmatprep.subr.mxu0 0.0
    %1531 = vmatpush2.msra.mxu0 0.0
    %1532 = vmatprep.subr.mxu0 0.0
    %1533 = vmatpush2.msra.mxu0 0.0
    %1534 = vmatprep.subr.mxu0 0.0
    %1535 = vmatpush2.msra.mxu0 0.0
    %1536 = vmatprep.subr.mxu0 0.0
    %1537 = vmatpush2.msra.mxu0 0.0
    %1538 = vmatprep.subr.mxu0 0.0
    %1539 = vmatpush2.msra.mxu0 0.0
    %1540 = vmatprep.subr.mxu0 0.0
    %1541 = vmatpush2.msra.mxu0 0.0
    %1542 = vmatprep.subr.mxu0 0.0
    %1543 = vmatpush2.msra.mxu0 0.0
    %1544 = vmatprep.subr.mxu0 0.0
    %1545 = vmatpush2.msra.mxu0 0.0
    %1546 = vmatprep.subr.mxu0 0.0
    %1547 = vmatpush2.msra.mxu0 0.0
    %1548 = vmatprep.subr.mxu0 0.0
    %1549 = vmatpush2.msra.mxu0 0.0
    %1550 = vmatprep.subr.mxu0 0.0
    %1551 = vmatpush2.msra.mxu0 0.0
    %1552 = vmatprep.subr.mxu0 0.0
    %1553 = vmatpush2.msra.mxu0 0.0
    %1554 = vmatprep.subr.mxu0 0.0
    %1555 = vmatpush2.msra.mxu0 0.0
    %1556 = vmatprep.subr.mxu0 0.0
    %1557 = vmatpush2.msra.mxu0 0.0
    %1558 = vmatprep.subr.mxu0 0.0
    %1559 = vmatpush2.msra.mxu0 0.0
    %1560 = vmatprep.subr.mxu0 0.0
    %1561 = vmatpush2.msra.mxu0 0.0
    %1562 = vmatprep.mubr.f32.mxu0 0.0
    %1563 = vmatmul.mubr.f32.gmra.mxu0 %v1493
    %v1564 = vpop.f32.mrf.mxu0
    %v1565 = vadd.f32 0.0, %v1564
    %v1566 = vpop.f32.mrf.mxu0
    %1567 = vmatprep.mubr.f32.mxu0 0.0
    %1568 = vmatmul.mubr.f32.gmra.mxu0 %v1496
    %v1569 = vpop.f32.mrf.mxu0
    %v1570 = vadd.f32 0.0, %v1569
    %v1571 = vpop.f32.mrf.mxu0
    %1572 = vdwg.mxu0
    %1573 = vrot.lane.b32.xlu0 %v1362, 112
    %v1574 = vpop.permute.xlu0 %1573
    %1575 = vrot.lane.b32.xlu0 %v1367, 112
    %v1576 = vpop.permute.xlu0 %1575
    %1577 = vrot.lane.b32.xlu0 %v1362, 80
    %v1578 = vpop.permute.xlu0 %1577
    %1579 = vrot.lane.b32.xlu0 %v1367, 80
    %v1580 = vpop.permute.xlu0 %1579
    %v1581 = vsel %vm413, %v1574, 0
    %v1583 = vsel %vm413, %v1576, 0
    %v1585 = vsel %vm413, %v1578, 0
    %v1587 = vsel %vm413, %v1580, 0
    %1589 = vmatprep.subr.mxu0 0.0
    %1590 = vmatpush1.xpose.msra.mxu0 0.0
    %1591 = vmatprep.subr.mxu0 0.0
    %1592 = vmatpush1.xpose.msra.mxu0 0.0
    %1593 = vmatprep.subr.mxu0 0.0
    %1594 = vmatpush1.xpose.msra.mxu0 0.0
    %1595 = vmatprep.subr.mxu0 0.0
    %1596 = vmatpush1.xpose.msra.mxu0 0.0
    %1597 = vmatprep.subr.mxu0 0.0
    %1598 = vmatpush1.xpose.msra.mxu0 0.0
    %1599 = vmatprep.subr.mxu0 0.0
    %1600 = vmatpush1.xpose.msra.mxu0 0.0
    %1601 = vmatprep.subr.mxu0 0.0
    %1602 = vmatpush1.xpose.msra.mxu0 0.0
    %1603 = vmatprep.subr.mxu0 0.0
    %1604 = vmatpush1.xpose.msra.mxu0 0.0
    %1605 = vmatprep.subr.mxu0 0.0
    %1606 = vmatpush1.xpose.msra.mxu0 0.0
    %1607 = vmatprep.subr.mxu0 0.0
    %1608 = vmatpush1.xpose.msra.mxu0 0.0
    %1609 = vmatprep.subr.mxu0 0.0
    %1610 = vmatpush1.xpose.msra.mxu0 0.0
    %1611 = vmatprep.subr.mxu0 0.0
    %1612 = vmatpush1.xpose.msra.mxu0 0.0
    %1613 = vmatprep.subr.mxu0 0.0
    %1614 = vmatpush1.xpose.msra.mxu0 0.0
    %1615 = vmatprep.subr.mxu0 0.0
    %1616 = vmatpush1.xpose.msra.mxu0 0.0
    %1617 = vmatprep.subr.mxu0 0.0
    %1618 = vmatpush1.xpose.msra.mxu0 %v1587
    %1619 = vmatprep.subr.mxu0 0.0
    %1620 = vmatpush1.xpose.msra.mxu0 %v1585
    %1621 = vmatprep.subr.mxu0 0.0
    %1622 = vmatpush2.xpose.msra.mxu0 0.0
    %1623 = vmatprep.subr.mxu0 0.0
    %1624 = vmatpush2.xpose.msra.mxu0 0.0
    %1625 = vmatprep.subr.mxu0 0.0
    %1626 = vmatpush2.xpose.msra.mxu0 0.0
    %1627 = vmatprep.subr.mxu0 0.0
    %1628 = vmatpush2.xpose.msra.mxu0 0.0
    %1629 = vmatprep.subr.mxu0 0.0
    %1630 = vmatpush2.xpose.msra.mxu0 0.0
    %1631 = vmatprep.subr.mxu0 0.0
    %1632 = vmatpush2.xpose.msra.mxu0 0.0
    %1633 = vmatprep.subr.mxu0 0.0
    %1634 = vmatpush2.xpose.msra.mxu0 0.0
    %1635 = vmatprep.subr.mxu0 0.0
    %1636 = vmatpush2.xpose.msra.mxu0 0.0
    %1637 = vmatprep.subr.mxu0 0.0
    %1638 = vmatpush2.xpose.msra.mxu0 0.0
    %1639 = vmatprep.subr.mxu0 0.0
    %1640 = vmatpush2.xpose.msra.mxu0 0.0
    %1641 = vmatprep.subr.mxu0 0.0
    %1642 = vmatpush2.xpose.msra.mxu0 0.0
    %1643 = vmatprep.subr.mxu0 0.0
    %1644 = vmatpush2.xpose.msra.mxu0 0.0
    %1645 = vmatprep.subr.mxu0 0.0
    %1646 = vmatpush2.xpose.msra.mxu0 0.0
    %1647 = vmatprep.subr.mxu0 0.0
    %1648 = vmatpush2.xpose.msra.mxu0 0.0
    %1649 = vmatprep.subr.mxu0 0.0
    %1650 = vmatpush2.xpose.msra.mxu0 0.0
    %1651 = vmatprep.subr.mxu0 0.0
    %1652 = vmatpush2.xpose.msra.mxu0 0.0
    %1653 = vmatprep.mubr.f32.mxu0 0.0
    %1654 = vmatmul.mubr.f32.gmra.mxu0 %v1581
    %v1655 = vpop.f32.mrf.mxu0
    %v1656 = vadd.f32 %v309, %v1655
    %v1657 = vpop.f32.mrf.mxu0
    %1658 = vmatprep.mubr.f32.mxu0 0.0
    %1659 = vmatmul.mubr.f32.gmra.mxu0 %v1583
    %v1660 = vpop.f32.mrf.mxu0
    %v1661 = vadd.f32 %v310, %v1660
    %v1662 = vpop.f32.mrf.mxu0
    %1663 = vdwg.mxu0
    %v1664 = vsel %vm413, %v1656, -inf
    %1665 = vmax.xlane.f32.xlu0 %v1664
    %v1666 = vpop.xlane.xlu0 %1665
    %v1667 = vsel %vm413, %v1661, -inf
    %1668 = vmax.xlane.f32.xlu0 %v1667
    %v1669 = vpop.xlane.xlu0 %1668
    %v1670 = vsub.f32 %v1656, %v1666
    %v1671 = vsub.f32 %v1661, %v1669
    %v1672 = vmul.f32 %v1670, 1.442695
    %v1673 = vpow.pop %v1672
    %v1674 = vmul.f32 %v1671, 1.442695
    %v1675 = vpow.pop %v1674
    %v1676 = vsel %vm413, %v1673, 0.0
    %1677 = vadd.xlane.f32.xlu0 %v1676
    %v1678 = vpop.xlane.xlu0 %1677
    %v1679 = vsel %vm413, %v1675, 0.0
    %1680 = vadd.xlane.f32.xlu0 %v1679
    %v1681 = vpop.xlane.xlu0 %1680
    %v1682 = vrcp.pop %v1678
    %v1683 = vrcp.pop %v1681
    %v1684 = vmul.f32 %v1673, %v1682
    %v1685 = vmul.f32 %v1675, %v1683
    %1686 = vrot.lane.b32.xlu0 %v1362, 48
    %v1687 = vpop.permute.xlu0 %1686
    %1688 = vrot.lane.b32.xlu0 %v1367, 48
    %v1689 = vpop.permute.xlu0 %1688
    %v1693 = vsel %vm413, %v1684, 0
    %v1696 = vsel %vm413, %v1685, 0
    %1698 = vmatprep.subr.mxu0 0.0
    %1699 = vmatpush1.msra.mxu0 0.0
    %1700 = vmatprep.subr.mxu0 0.0
    %1701 = vmatpush1.msra.mxu0 0.0
    %1702 = vmatprep.subr.mxu0 0.0
    %1703 = vmatpush1.msra.mxu0 0.0
    %1704 = vmatprep.subr.mxu0 0.0
    %1705 = vmatpush1.msra.mxu0 0.0
    %1706 = vmatprep.subr.mxu0 0.0
    %1707 = vmatpush1.msra.mxu0 0.0
    %1708 = vmatprep.subr.mxu0 0.0
    %1709 = vmatpush1.msra.mxu0 0.0
    %1710 = vmatprep.subr.mxu0 0.0
    %1711 = vmatpush1.msra.mxu0 0.0
    %1712 = vmatprep.subr.mxu0 0.0
    %1713 = vmatpush1.msra.mxu0 0.0
    %1714 = vmatprep.subr.mxu0 0.0
    %1715 = vmatpush1.msra.mxu0 0.0
    %1716 = vmatprep.subr.mxu0 0.0
    %1717 = vmatpush1.msra.mxu0 0.0
    %1718 = vmatprep.subr.mxu0 0.0
    %1719 = vmatpush1.msra.mxu0 0.0
    %1720 = vmatprep.subr.mxu0 0.0
    %1721 = vmatpush1.msra.mxu0 0.0
    %1722 = vmatprep.subr.mxu0 0.0
    %1723 = vmatpush1.msra.mxu0 0.0
    %1724 = vmatprep.subr.mxu0 0.0
    %1725 = vmatpush1.msra.mxu0 0.0
    %1726 = vmatprep.subr.mxu0 0.0
    %1727 = vmatpush1.msra.mxu0 %v1689
    %1728 = vmatprep.subr.mxu0 0.0
    %1729 = vmatpush1.msra.mxu0 %v1687
    %1730 = vmatprep.subr.mxu0 0.0
    %1731 = vmatpush2.msra.mxu0 0.0
    %1732 = vmatprep.subr.mxu0 0.0
    %1733 = vmatpush2.msra.mxu0 0.0
    %1734 = vmatprep.subr.mxu0 0.0
    %1735 = vmatpush2.msra.mxu0 0.0
    %1736 = vmatprep.subr.mxu0 0.0
    %1737 = vmatpush2.msra.mxu0 0.0
    %1738 = vmatprep.subr.mxu0 0.0
    %1739 = vmatpush2.msra.mxu0 0.0
    %1740 = vmatprep.subr.mxu0 0.0
    %1741 = vmatpush2.msra.mxu0 0.0
    %1742 = vmatprep.subr.mxu0 0.0
    %1743 = vmatpush2.msra.mxu0 0.0
    %1744 = vmatprep.subr.mxu0 0.0
    %1745 = vmatpush2.msra.mxu0 0.0
    %1746 = vmatprep.subr.mxu0 0.0
    %1747 = vmatpush2.msra.mxu0 0.0
    %1748 = vmatprep.subr.mxu0 0.0
    %1749 = vmatpush2.msra.mxu0 0.0
    %1750 = vmatprep.subr.mxu0 0.0
    %1751 = vmatpush2.msra.mxu0 0.0
    %1752 = vmatprep.subr.mxu0 0.0
    %1753 = vmatpush2.msra.mxu0 0.0
    %1754 = vmatprep.subr.mxu0 0.0
    %1755 = vmatpush2.msra.mxu0 0.0
    %1756 = vmatprep.subr.mxu0 0.0
    %1757 = vmatpush2.msra.mxu0 0.0
    %1758 = vmatprep.subr.mxu0 0.0
    %1759 = vmatpush2.msra.mxu0 0.0
    %1760 = vmatprep.subr.mxu0 0.0
    %1761 = vmatpush2.msra.mxu0 0.0
    %1762 = vmatprep.mubr.f32.mxu0 0.0
    %1763 = vmatmul.mubr.f32.gmra.mxu0 %v1693
    %v1764 = vpop.f32.mrf.mxu0
    %v1765 = vadd.f32 0.0, %v1764
    %v1766 = vpop.f32.mrf.mxu0
    %1767 = vmatprep.mubr.f32.mxu0 0.0
    %1768 = vmatmul.mubr.f32.gmra.mxu0 %v1696
    %v1769 = vpop.f32.mrf.mxu0
    %v1770 = vadd.f32 0.0, %v1769
    %v1771 = vpop.f32.mrf.mxu0
    %1772 = vdwg.mxu0
    %v1774 = vsel %vm413, %v1765, 0
    %v1777 = vsel %vm413, %v1770, 0
    %1779 = vmatprep.subr.mxu0 0.0
    %1780 = vmatpush1.msra.mxu0 0.0
    %1781 = vmatprep.subr.mxu0 0.0
    %1782 = vmatpush1.msra.mxu0 0.0
    %1783 = vmatprep.subr.mxu0 0.0
    %1784 = vmatpush1.msra.mxu0 0.0
    %1785 = vmatprep.subr.mxu0 0.0
    %1786 = vmatpush1.msra.mxu0 0.0
    %1787 = vmatprep.subr.mxu0 0.0
    %1788 = vmatpush1.msra.mxu0 0.0
    %1789 = vmatprep.subr.mxu0 0.0
    %1790 = vmatpush1.msra.mxu0 0.0
    %1791 = vmatprep.subr.mxu0 0.0
    %1792 = vmatpush1.msra.mxu0 0.0
    %1793 = vmatprep.subr.mxu0 0.0
    %1794 = vmatpush1.msra.mxu0 0.0
    %1795 = vmatprep.subr.mxu0 0.0
    %1796 = vmatpush1.msra.mxu0 0.0
    %1797 = vmatprep.subr.mxu0 0.0
    %1798 = vmatpush1.msra.mxu0 0.0
    %1799 = vmatprep.subr.mxu0 0.0
    %1800 = vmatpush1.msra.mxu0 0.0
    %1801 = vmatprep.subr.mxu0 0.0
    %1802 = vmatpush1.msra.mxu0 0.0
    %1803 = vmatprep.subr.mxu0 0.0
    %1804 = vmatpush1.msra.mxu0 0.0
    %1805 = vmatprep.subr.mxu0 0.0
    %1806 = vmatpush1.msra.mxu0 0.0
    %1807 = vmatprep.subr.mxu0 0.0
    %1808 = vmatpush1.msra.mxu0 %v1374
    %1809 = vmatprep.subr.mxu0 0.0
    %1810 = vmatpush1.msra.mxu0 %v1373
    %1811 = vmatprep.subr.mxu0 0.0
    %1812 = vmatpush2.msra.mxu0 0.0
    %1813 = vmatprep.subr.mxu0 0.0
    %1814 = vmatpush2.msra.mxu0 0.0
    %1815 = vmatprep.subr.mxu0 0.0
    %1816 = vmatpush2.msra.mxu0 0.0
    %1817 = vmatprep.subr.mxu0 0.0
    %1818 = vmatpush2.msra.mxu0 0.0
    %1819 = vmatprep.subr.mxu0 0.0
    %1820 = vmatpush2.msra.mxu0 0.0
    %1821 = vmatprep.subr.mxu0 0.0
    %1822 = vmatpush2.msra.mxu0 0.0
    %1823 = vmatprep.subr.mxu0 0.0
    %1824 = vmatpush2.msra.mxu0 0.0
    %1825 = vmatprep.subr.mxu0 0.0
    %1826 = vmatpush2.msra.mxu0 0.0
    %1827 = vmatprep.subr.mxu0 0.0
    %1828 = vmatpush2.msra.mxu0 0.0
    %1829 = vmatprep.subr.mxu0 0.0
    %1830 = vmatpush2.msra.mxu0 0.0
    %1831 = vmatprep.subr.mxu0 0.0
    %1832 = vmatpush2.msra.mxu0 0.0
    %1833 = vmatprep.subr.mxu0 0.0
    %1834 = vmatpush2.msra.mxu0 0.0
    %1835 = vmatprep.subr.mxu0 0.0
    %1836 = vmatpush2.msra.mxu0 0.0
    %1837 = vmatprep.subr.mxu0 0.0
    %1838 = vmatpush2.msra.mxu0 0.0
    %1839 = vmatprep.subr.mxu0 0.0
    %1840 = vmatpush2.msra.mxu0 0.0
    %1841 = vmatprep.subr.mxu0 0.0
    %1842 = vmatpush2.msra.mxu0 0.0
    %1843 = vmatprep.mubr.f32.mxu0 0.0
    %1844 = vmatmul.mubr.f32.gmra.mxu0 %v1774
    %v1845 = vpop.f32.mrf.mxu0
    %v1846 = vadd.f32 0.0, %v1845
    %v1847 = vpop.f32.mrf.mxu0
    %1848 = vmatprep.mubr.f32.mxu0 0.0
    %1849 = vmatmul.mubr.f32.gmra.mxu0 %v1777
    %v1850 = vpop.f32.mrf.mxu0
    %v1851 = vadd.f32 0.0, %v1850
    %v1852 = vpop.f32.mrf.mxu0
    %1853 = vdwg.mxu0
    %v1855 = vsel %vm413, %v1565, 0
    %v1858 = vsel %vm413, %v1570, 0
    %1860 = vmatprep.subr.mxu0 0.0
    %1861 = vmatpush1.msra.mxu0 0.0
    %1862 = vmatprep.subr.mxu0 0.0
    %1863 = vmatpush1.msra.mxu0 0.0
    %1864 = vmatprep.subr.mxu0 0.0
    %1865 = vmatpush1.msra.mxu0 0.0
    %1866 = vmatprep.subr.mxu0 0.0
    %1867 = vmatpush1.msra.mxu0 0.0
    %1868 = vmatprep.subr.mxu0 0.0
    %1869 = vmatpush1.msra.mxu0 0.0
    %1870 = vmatprep.subr.mxu0 0.0
    %1871 = vmatpush1.msra.mxu0 0.0
    %1872 = vmatprep.subr.mxu0 0.0
    %1873 = vmatpush1.msra.mxu0 0.0
    %1874 = vmatprep.subr.mxu0 0.0
    %1875 = vmatpush1.msra.mxu0 0.0
    %1876 = vmatprep.subr.mxu0 0.0
    %1877 = vmatpush1.msra.mxu0 0.0
    %1878 = vmatprep.subr.mxu0 0.0
    %1879 = vmatpush1.msra.mxu0 0.0
    %1880 = vmatprep.subr.mxu0 0.0
    %1881 = vmatpush1.msra.mxu0 0.0
    %1882 = vmatprep.subr.mxu0 0.0
    %1883 = vmatpush1.msra.mxu0 0.0
    %1884 = vmatprep.subr.mxu0 0.0
    %1885 = vmatpush1.msra.mxu0 0.0
    %1886 = vmatprep.subr.mxu0 0.0
    %1887 = vmatpush1.msra.mxu0 0.0
    %1888 = vmatprep.subr.mxu0 0.0
    %1889 = vmatpush1.msra.mxu0 %v1372
    %1890 = vmatprep.subr.mxu0 0.0
    %1891 = vmatpush1.msra.mxu0 %v1371
    %1892 = vmatprep.subr.mxu0 0.0
    %1893 = vmatpush2.msra.mxu0 0.0
    %1894 = vmatprep.subr.mxu0 0.0
    %1895 = vmatpush2.msra.mxu0 0.0
    %1896 = vmatprep.subr.mxu0 0.0
    %1897 = vmatpush2.msra.mxu0 0.0
    %1898 = vmatprep.subr.mxu0 0.0
    %1899 = vmatpush2.msra.mxu0 0.0
    %1900 = vmatprep.subr.mxu0 0.0
    %1901 = vmatpush2.msra.mxu0 0.0
    %1902 = vmatprep.subr.mxu0 0.0
    %1903 = vmatpush2.msra.mxu0 0.0
    %1904 = vmatprep.subr.mxu0 0.0
    %1905 = vmatpush2.msra.mxu0 0.0
    %1906 = vmatprep.subr.mxu0 0.0
    %1907 = vmatpush2.msra.mxu0 0.0
    %1908 = vmatprep.subr.mxu0 0.0
    %1909 = vmatpush2.msra.mxu0 0.0
    %1910 = vmatprep.subr.mxu0 0.0
    %1911 = vmatpush2.msra.mxu0 0.0
    %1912 = vmatprep.subr.mxu0 0.0
    %1913 = vmatpush2.msra.mxu0 0.0
    %1914 = vmatprep.subr.mxu0 0.0
    %1915 = vmatpush2.msra.mxu0 0.0
    %1916 = vmatprep.subr.mxu0 0.0
    %1917 = vmatpush2.msra.mxu0 0.0
    %1918 = vmatprep.subr.mxu0 0.0
    %1919 = vmatpush2.msra.mxu0 0.0
    %1920 = vmatprep.subr.mxu0 0.0
    %1921 = vmatpush2.msra.mxu0 0.0
    %1922 = vmatprep.subr.mxu0 0.0
    %1923 = vmatpush2.msra.mxu0 0.0
    %1924 = vmatprep.mubr.f32.mxu0 0.0
    %1925 = vmatmul.mubr.f32.gmra.mxu0 %v1855
    %v1926 = vpop.f32.mrf.mxu0
    %v1927 = vadd.f32 %v1846, %v1926
    %v1928 = vpop.f32.mrf.mxu0
    %1929 = vmatprep.mubr.f32.mxu0 0.0
    %1930 = vmatmul.mubr.f32.gmra.mxu0 %v1858
    %v1931 = vpop.f32.mrf.mxu0
    %v1932 = vadd.f32 %v1851, %v1931
    %v1933 = vpop.f32.mrf.mxu0
    %1934 = vdwg.mxu0
    %s1935 = scalar_lea.vmem %s11, 1
    %v1936 = vld [vmem:[%s1935] sm:$0x1]
    %v1938 = vlaneseq
    %v1939 = vshrl.u32 %v1938, 7
    %v1940 = vsub.s32 0, %v1939
    %v1941 = vrot.slane %v1936, %v1940
    %v1943 = vadd.f32 %v1927, %v1941
    %v1944 = vadd.f32 %v1932, %v1941
    %v1945 = vadd.f32 %v1943, %v1274
    %v1946 = vadd.f32 %v1944, %v1275
    %s1947 = scalar_lea.vmem %s12, 1
    %v1948 = vld [vmem:[%s1947] sm:$0x1]
    %s1949 = scalar_lea.vmem %s13, 1
    %v1950 = vld [vmem:[%s1949] sm:$0x1]
    %v1951 = vsel %vm265, %v1945, 0.0
    %1952 = vadd.xlane.f32.xlu0 %v1951
    %v1953 = vpop.xlane.xlu0 %1952
    %v1954 = vsel %vm265, %v1946, 0.0
    %1955 = vadd.xlane.f32.xlu0 %v1954
    %v1956 = vpop.xlane.xlu0 %1955
    %v1957 = vmul.f32 %v1953, %v272
    %v1958 = vmul.f32 %v1956, %v272
    %v1959 = vsub.f32 %v1945, %v1957
    %v1960 = vsub.f32 %v1946, %v1958
    %v1961 = vmul.f32 %v1959, %v1959
    %v1962 = vmul.f32 %v1960, %v1960
    %v1963 = vsel %vm265, %v1961, 0.0
    %1964 = vadd.xlane.f32.xlu0 %v1963
    %v1965 = vpop.xlane.xlu0 %1964
    %v1966 = vsel %vm265, %v1962, 0.0
    %1967 = vadd.xlane.f32.xlu0 %v1966
    %v1968 = vpop.xlane.xlu0 %1967
    %v1969 = vmul.f32 %v1965, %v272
    %v1970 = vmul.f32 %v1968, %v272
    %v1971 = vadd.f32 %v1969, 1e-12
    %v1972 = vadd.f32 %v1970, 1e-12
    %v1973 = vrsqrt.pop %v1971
    %v1974 = vrsqrt.pop %v1972
    %v1975 = vmul.f32 %v1959, %v1973
    %v1976 = vmul.f32 %v1960, %v1974
    %v1978 = vlaneseq
    %v1979 = vshrl.u32 %v1978, 7
    %v1980 = vsub.s32 0, %v1979
    %v1981 = vrot.slane %v1948, %v1980
    %v1983 = vmul.f32 %v1975, %v1981
    %v1984 = vmul.f32 %v1976, %v1981
    %v1986 = vlaneseq
    %v1987 = vshrl.u32 %v1986, 7
    %v1988 = vsub.s32 0, %v1987
    %v1989 = vrot.slane %v1950, %v1988
    %v1991 = vadd.f32 %v1983, %v1989
    %v1992 = vadd.f32 %v1984, %v1989
    %s1993 = scalar_lea.vmem %s14, 32
    %v1994 = vld [vmem:[%s1993] sm:$0xff]
    %v1995 = vld [vmem:[%s1993 + $0x8] sm:$0xff]
    %v1996 = vld [vmem:[%s1993 + $0x10] sm:$0xff]
    %v1997 = vld [vmem:[%s1993 + $0x18] sm:$0xff]
    %s1998 = scalar_lea.vmem %s15, 1
    %v1999 = vld [vmem:[%s1998] sm:$0x1]
    %v2001 = vlaneseq
    %v2002 = vshrl.u32 %v2001, 7
    %v2003 = vsub.s32 0, %v2002
    %v2004 = vrot.slane %v1999, %v2003
    %v2007 = vsel %vm265, %v1991, 0
    %v2010 = vsel %vm265, %v1992, 0
    %2012 = vmatprep.subr.mxu0 0.0
    %2013 = vmatpush1.msra.mxu0 0.0
    %2014 = vmatprep.subr.mxu0 0.0
    %2015 = vmatpush1.msra.mxu0 0.0
    %2016 = vmatprep.subr.mxu0 0.0
    %2017 = vmatpush1.msra.mxu0 0.0
    %2018 = vmatprep.subr.mxu0 0.0
    %2019 = vmatpush1.msra.mxu0 0.0
    %2020 = vmatprep.subr.mxu0 0.0
    %2021 = vmatpush1.msra.mxu0 0.0
    %2022 = vmatprep.subr.mxu0 0.0
    %2023 = vmatpush1.msra.mxu0 0.0
    %2024 = vmatprep.subr.mxu0 0.0
    %2025 = vmatpush1.msra.mxu0 0.0
    %2026 = vmatprep.subr.mxu0 0.0
    %2027 = vmatpush1.msra.mxu0 0.0
    %2028 = vmatprep.subr.mxu0 0.0
    %2029 = vmatpush1.msra.mxu0 0.0
    %2030 = vmatprep.subr.mxu0 0.0
    %2031 = vmatpush1.msra.mxu0 0.0
    %2032 = vmatprep.subr.mxu0 0.0
    %2033 = vmatpush1.msra.mxu0 0.0
    %2034 = vmatprep.subr.mxu0 0.0
    %2035 = vmatpush1.msra.mxu0 0.0
    %2036 = vmatprep.subr.mxu0 0.0
    %2037 = vmatpush1.msra.mxu0 %v1997
    %2038 = vmatprep.subr.mxu0 0.0
    %2039 = vmatpush1.msra.mxu0 %v1996
    %2040 = vmatprep.subr.mxu0 0.0
    %2041 = vmatpush1.msra.mxu0 %v1995
    %2042 = vmatprep.subr.mxu0 0.0
    %2043 = vmatpush1.msra.mxu0 %v1994
    %2044 = vmatprep.subr.mxu0 0.0
    %2045 = vmatpush2.msra.mxu0 0.0
    %2046 = vmatprep.subr.mxu0 0.0
    %2047 = vmatpush2.msra.mxu0 0.0
    %2048 = vmatprep.subr.mxu0 0.0
    %2049 = vmatpush2.msra.mxu0 0.0
    %2050 = vmatprep.subr.mxu0 0.0
    %2051 = vmatpush2.msra.mxu0 0.0
    %2052 = vmatprep.subr.mxu0 0.0
    %2053 = vmatpush2.msra.mxu0 0.0
    %2054 = vmatprep.subr.mxu0 0.0
    %2055 = vmatpush2.msra.mxu0 0.0
    %2056 = vmatprep.subr.mxu0 0.0
    %2057 = vmatpush2.msra.mxu0 0.0
    %2058 = vmatprep.subr.mxu0 0.0
    %2059 = vmatpush2.msra.mxu0 0.0
    %2060 = vmatprep.subr.mxu0 0.0
    %2061 = vmatpush2.msra.mxu0 0.0
    %2062 = vmatprep.subr.mxu0 0.0
    %2063 = vmatpush2.msra.mxu0 0.0
    %2064 = vmatprep.subr.mxu0 0.0
    %2065 = vmatpush2.msra.mxu0 0.0
    %2066 = vmatprep.subr.mxu0 0.0
    %2067 = vmatpush2.msra.mxu0 0.0
    %2068 = vmatprep.subr.mxu0 0.0
    %2069 = vmatpush2.msra.mxu0 0.0
    %2070 = vmatprep.subr.mxu0 0.0
    %2071 = vmatpush2.msra.mxu0 0.0
    %2072 = vmatprep.subr.mxu0 0.0
    %2073 = vmatpush2.msra.mxu0 0.0
    %2074 = vmatprep.subr.mxu0 0.0
    %2075 = vmatpush2.msra.mxu0 0.0
    %2076 = vmatprep.mubr.f32.mxu0 0.0
    %2077 = vmatmul.mubr.f32.gmra.mxu0 %v2007
    %v2078 = vpop.f32.mrf.mxu0
    %v2079 = vadd.f32 %v2004, %v2078
    %v2080 = vpop.f32.mrf.mxu0
    %2081 = vmatprep.mubr.f32.mxu0 0.0
    %2082 = vmatmul.mubr.f32.gmra.mxu0 %v2010
    %v2083 = vpop.f32.mrf.mxu0
    %v2084 = vadd.f32 %v2004, %v2083
    %v2085 = vpop.f32.mrf.mxu0
    %2086 = vdwg.mxu0
    %v2087 = vmul.f32 %v2079, 0.5
    %v2088 = vmul.f32 %v2084, 0.5
    %v2089 = vmul.f32 %v2079, 0.044715
    %v2090 = vmul.f32 %v2084, 0.044715
    %v2091 = vmul.f32 %v2089, %v2079
    %v2092 = vmul.f32 %v2090, %v2084
    %v2093 = vmul.f32 %v2091, %v2079
    %v2094 = vmul.f32 %v2092, %v2084
    %v2095 = vadd.f32 %v2079, %v2093
    %v2096 = vadd.f32 %v2084, %v2094
    %v2097 = vmul.f32 %v2095, 0.7978846
    %v2098 = vmul.f32 %v2096, 0.7978846
    %v2099 = vtanh.pop %v2097
    %v2100 = vtanh.pop %v2098
    %v2101 = vadd.f32 %v2099, 1.0
    %v2102 = vadd.f32 %v2100, 1.0
    %v2103 = vmul.f32 %v2087, %v2101
    %v2104 = vmul.f32 %v2088, %v2102
    %s2105 = scalar_lea.vmem %s16, 64
    %v2106 = vld [vmem:[%s2105] sm:$0xff]
    %v2107 = vld [vmem:[%s2105 + $0x8] sm:$0xff]
    %v2108 = vld [vmem:[%s2105 + $0x10] sm:$0xff]
    %v2109 = vld [vmem:[%s2105 + $0x18] sm:$0xff]
    %v2110 = vld [vmem:[%s2105 + $0x20] sm:$0xff]
    %v2111 = vld [vmem:[%s2105 + $0x28] sm:$0xff]
    %v2112 = vld [vmem:[%s2105 + $0x30] sm:$0xff]
    %v2113 = vld [vmem:[%s2105 + $0x38] sm:$0xff]
    %s2114 = scalar_lea.vmem %s17, 1
    %v2115 = vld [vmem:[%s2114] sm:$0x1]
    %v2117 = vlaneseq
    %v2118 = vshrl.u32 %v2117, 7
    %v2119 = vsub.s32 0, %v2118
    %v2120 = vrot.slane %v2115, %v2119
    %v2123 = vsel %vm1148, %v2103, 0
    %v2126 = vsel %vm1148, %v2104, 0
    %2128 = vmatprep.subr.mxu0 0.0
    %2129 = vmatpush1.msra.mxu0 0.0
    %2130 = vmatprep.subr.mxu0 0.0
    %2131 = vmatpush1.msra.mxu0 0.0
    %2132 = vmatprep.subr.mxu0 0.0
    %2133 = vmatpush1.msra.mxu0 0.0
    %2134 = vmatprep.subr.mxu0 0.0
    %2135 = vmatpush1.msra.mxu0 0.0
    %2136 = vmatprep.subr.mxu0 0.0
    %2137 = vmatpush1.msra.mxu0 0.0
    %2138 = vmatprep.subr.mxu0 0.0
    %2139 = vmatpush1.msra.mxu0 0.0
    %2140 = vmatprep.subr.mxu0 0.0
    %2141 = vmatpush1.msra.mxu0 0.0
    %2142 = vmatprep.subr.mxu0 0.0
    %2143 = vmatpush1.msra.mxu0 0.0
    %2144 = vmatprep.subr.mxu0 0.0
    %2145 = vmatpush1.msra.mxu0 %v2113
    %2146 = vmatprep.subr.mxu0 0.0
    %2147 = vmatpush1.msra.mxu0 %v2112
    %2148 = vmatprep.subr.mxu0 0.0
    %2149 = vmatpush1.msra.mxu0 %v2111
    %2150 = vmatprep.subr.mxu0 0.0
    %2151 = vmatpush1.msra.mxu0 %v2110
    %2152 = vmatprep.subr.mxu0 0.0
    %2153 = vmatpush1.msra.mxu0 %v2109
    %2154 = vmatprep.subr.mxu0 0.0
    %2155 = vmatpush1.msra.mxu0 %v2108
    %2156 = vmatprep.subr.mxu0 0.0
    %2157 = vmatpush1.msra.mxu0 %v2107
    %2158 = vmatprep.subr.mxu0 0.0
    %2159 = vmatpush1.msra.mxu0 %v2106
    %2160 = vmatprep.subr.mxu0 0.0
    %2161 = vmatpush2.msra.mxu0 0.0
    %2162 = vmatprep.subr.mxu0 0.0
    %2163 = vmatpush2.msra.mxu0 0.0
    %2164 = vmatprep.subr.mxu0 0.0
    %2165 = vmatpush2.msra.mxu0 0.0
    %2166 = vmatprep.subr.mxu0 0.0
    %2167 = vmatpush2.msra.mxu0 0.0
    %2168 = vmatprep.subr.mxu0 0.0
    %2169 = vmatpush2.msra.mxu0 0.0
    %2170 = vmatprep.subr.mxu0 0.0
    %2171 = vmatpush2.msra.mxu0 0.0
    %2172 = vmatprep.subr.mxu0 0.0
    %2173 = vmatpush2.msra.mxu0 0.0
    %2174 = vmatprep.subr.mxu0 0.0
    %2175 = vmatpush2.msra.mxu0 0.0
    %2176 = vmatprep.subr.mxu0 0.0
    %2177 = vmatpush2.msra.mxu0 0.0
    %2178 = vmatprep.subr.mxu0 0.0
    %2179 = vmatpush2.msra.mxu0 0.0
    %2180 = vmatprep.subr.mxu0 0.0
    %2181 = vmatpush2.msra.mxu0 0.0
    %2182 = vmatprep.subr.mxu0 0.0
    %2183 = vmatpush2.msra.mxu0 0.0
    %2184 = vmatprep.subr.mxu0 0.0
    %2185 = vmatpush2.msra.mxu0 0.0
    %2186 = vmatprep.subr.mxu0 0.0
    %2187 = vmatpush2.msra.mxu0 0.0
    %2188 = vmatprep.subr.mxu0 0.0
    %2189 = vmatpush2.msra.mxu0 0.0
    %2190 = vmatprep.subr.mxu0 0.0
    %2191 = vmatpush2.msra.mxu0 0.0
    %2192 = vmatprep.mubr.f32.mxu0 0.0
    %2193 = vmatmul.mubr.f32.gmra.mxu0 %v2123
    %v2194 = vpop.f32.mrf.mxu0
    %v2195 = vadd.f32 %v2120, %v2194
    %v2196 = vpop.f32.mrf.mxu0
    %2197 = vmatprep.mubr.f32.mxu0 0.0
    %2198 = vmatmul.mubr.f32.gmra.mxu0 %v2126
    %v2199 = vpop.f32.mrf.mxu0
    %v2200 = vadd.f32 %v2120, %v2199
    %v2201 = vpop.f32.mrf.mxu0
    %2202 = vdwg.mxu0
    %v2203 = vadd.f32 %v2195, %v1991
    %v2204 = vadd.f32 %v2200, %v1992
    %s2205 = scalar_lea.vmem %s18, 1
    %v2206 = vld [vmem:[%s2205] sm:$0x1]
    %s2207 = scalar_lea.vmem %s19, 1
    %v2208 = vld [vmem:[%s2207] sm:$0x1]
    %v2209 = vsel %vm265, %v2203, 0.0
    %2210 = vadd.xlane.f32.xlu0 %v2209
    %v2211 = vpop.xlane.xlu0 %2210
    %v2212 = vsel %vm265, %v2204, 0.0
    %2213 = vadd.xlane.f32.xlu0 %v2212
    %v2214 = vpop.xlane.xlu0 %2213
    %v2215 = vmul.f32 %v2211, %v272
    %v2216 = vmul.f32 %v2214, %v272
    %v2217 = vsub.f32 %v2203, %v2215
    %v2218 = vsub.f32 %v2204, %v2216
    %v2219 = vmul.f32 %v2217, %v2217
    %v2220 = vmul.f32 %v2218, %v2218
    %v2221 = vsel %vm265, %v2219, 0.0
    %2222 = vadd.xlane.f32.xlu0 %v2221
    %v2223 = vpop.xlane.xlu0 %2222
    %v2224 = vsel %vm265, %v2220, 0.0
    %2225 = vadd.xlane.f32.xlu0 %v2224
    %v2226 = vpop.xlane.xlu0 %2225
    %v2227 = vmul.f32 %v2223, %v272
    %v2228 = vmul.f32 %v2226, %v272
    %v2229 = vadd.f32 %v2227, 1e-12
    %v2230 = vadd.f32 %v2228, 1e-12
    %v2231 = vrsqrt.pop %v2229
    %v2232 = vrsqrt.pop %v2230
    %v2233 = vmul.f32 %v2217, %v2231
    %v2234 = vmul.f32 %v2218, %v2232
    %v2236 = vlaneseq
    %v2237 = vshrl.u32 %v2236, 7
    %v2238 = vsub.s32 0, %v2237
    %v2239 = vrot.slane %v2206, %v2238
    %v2241 = vmul.f32 %v2233, %v2239
    %v2242 = vmul.f32 %v2234, %v2239
    %v2244 = vlaneseq
    %v2245 = vshrl.u32 %v2244, 7
    %v2246 = vsub.s32 0, %v2245
    %v2247 = vrot.slane %v2208, %v2246
    %v2249 = vadd.f32 %v2241, %v2247
    %v2250 = vadd.f32 %v2242, %v2247
    %2251 = vst.msk [vmem:[#allocation7] sm:$0xff] %vm265, %v2249
    %2252 = vst.msk [vmem:[#allocation7 + $0x8] sm:$0xff] %vm265, %v2250
    %v2253 = vld [vmem:[#allocation7] ss:$8 sm:$0x3]
    %v2254 = vld [vmem:[%s20] sm:$0xff]
    %v2255 = vld [vmem:[%s20 + $0x8] sm:$0xff]
    %v2256 = vld [vmem:[%s20 + $0x10] sm:$0xff]
    %v2257 = vld [vmem:[%s20 + $0x18] sm:$0xff]
    %v2258 = vld [vmem:[%s21] sm:$0x1]
    %v2260 = vlaneseq
    %v2261 = vshrl.u32 %v2260, 7
    %v2262 = vsub.s32 0, %v2261
    %v2263 = vrot.slane %v2258, %v2262
    %v2266 = vsel %vm265, %v2253, 0
    %2268 = vmatprep.subr.mxu0 0.0
    %2269 = vmatpush1.msra.mxu0 0.0
    %2270 = vmatprep.subr.mxu0 0.0
    %2271 = vmatpush1.msra.mxu0 0.0
    %2272 = vmatprep.subr.mxu0 0.0
    %2273 = vmatpush1.msra.mxu0 0.0
    %2274 = vmatprep.subr.mxu0 0.0
    %2275 = vmatpush1.msra.mxu0 0.0
    %2276 = vmatprep.subr.mxu0 0.0
    %2277 = vmatpush1.msra.mxu0 0.0
    %2278 = vmatprep.subr.mxu0 0.0
    %2279 = vmatpush1.msra.mxu0 0.0
    %2280 = vmatprep.subr.mxu0 0.0
    %2281 = vmatpush1.msra.mxu0 0.0
    %2282 = vmatprep.subr.mxu0 0.0
    %2283 = vmatpush1.msra.mxu0 0.0
    %2284 = vmatprep.subr.mxu0 0.0
    %2285 = vmatpush1.msra.mxu0 0.0
    %2286 = vmatprep.subr.mxu0 0.0
    %2287 = vmatpush1.msra.mxu0 0.0
    %2288 = vmatprep.subr.mxu0 0.0
    %2289 = vmatpush1.msra.mxu0 0.0
    %2290 = vmatprep.subr.mxu0 0.0
    %2291 = vmatpush1.msra.mxu0 0.0
    %2292 = vmatprep.subr.mxu0 0.0
    %2293 = vmatpush1.msra.mxu0 %v2257
    %2294 = vmatprep.subr.mxu0 0.0
    %2295 = vmatpush1.msra.mxu0 %v2256
    %2296 = vmatprep.subr.mxu0 0.0
    %2297 = vmatpush1.msra.mxu0 %v2255
    %2298 = vmatprep.subr.mxu0 0.0
    %2299 = vmatpush1.msra.mxu0 %v2254
    %2300 = vmatprep.subr.mxu0 0.0
    %2301 = vmatpush2.msra.mxu0 0.0
    %2302 = vmatprep.subr.mxu0 0.0
    %2303 = vmatpush2.msra.mxu0 0.0
    %2304 = vmatprep.subr.mxu0 0.0
    %2305 = vmatpush2.msra.mxu0 0.0
    %2306 = vmatprep.subr.mxu0 0.0
    %2307 = vmatpush2.msra.mxu0 0.0
    %2308 = vmatprep.subr.mxu0 0.0
    %2309 = vmatpush2.msra.mxu0 0.0
    %2310 = vmatprep.subr.mxu0 0.0
    %2311 = vmatpush2.msra.mxu0 0.0
    %2312 = vmatprep.subr.mxu0 0.0
    %2313 = vmatpush2.msra.mxu0 0.0
    %2314 = vmatprep.subr.mxu0 0.0
    %2315 = vmatpush2.msra.mxu0 0.0
    %2316 = vmatprep.subr.mxu0 0.0
    %2317 = vmatpush2.msra.mxu0 0.0
    %2318 = vmatprep.subr.mxu0 0.0
    %2319 = vmatpush2.msra.mxu0 0.0
    %2320 = vmatprep.subr.mxu0 0.0
    %2321 = vmatpush2.msra.mxu0 0.0
    %2322 = vmatprep.subr.mxu0 0.0
    %2323 = vmatpush2.msra.mxu0 0.0
    %2324 = vmatprep.subr.mxu0 0.0
    %2325 = vmatpush2.msra.mxu0 0.0
    %2326 = vmatprep.subr.mxu0 0.0
    %2327 = vmatpush2.msra.mxu0 0.0
    %2328 = vmatprep.subr.mxu0 0.0
    %2329 = vmatpush2.msra.mxu0 0.0
    %2330 = vmatprep.subr.mxu0 0.0
    %2331 = vmatpush2.msra.mxu0 0.0
    %2332 = vmatprep.mubr.f32.mxu0 0.0
    %2333 = vmatmul.mubr.f32.gmra.mxu0 %v2266
    %v2334 = vpop.f32.mrf.mxu0
    %v2335 = vadd.f32 %v2263, %v2334
    %v2336 = vpop.f32.mrf.mxu0
    %2337 = vdwg.mxu0
    %v2338 = vtanh.pop %v2335
    %vm2339 = vcmask 254976
    %2340 = vst.msk [vmem:[#allocation8] sm:$0x3] %vm2339, %v2338
    // Predicated region
    $region98: #{text_encoder_forward.1} parent=1 // pred_check
      _
    $region99: #{text_encoder_forward.1} parent=1 // pred_check_branch
      %2342 = sbr.rel (0) target = $region101
    $region100: #{text_encoder_forward.1} parent=1 // pred_region
      %s2344 = ssub.s32 256, 256
      %2345 = vsyncadd [#allocation3], %s2344
      %s2346 = sshll.u32 [#allocation7], 4
      %s2347 = int_to_ptr.vmem [resolvable:$true] %s2346
      %2352 = dma.vmem_to_hbm [thread:$0]  %s2347, 256, %s22, [#allocation3], 128, 128, 8
    $region101: #{text_encoder_forward.1} parent=1 // pred_fallthru
      _
    // Predicated region
    $region102: #{text_encoder_forward.1} parent=1 // pred_check
      _
    $region103: #{text_encoder_forward.1} parent=1 // pred_check_branch
      %2354 = sbr.rel (0) target = $region105
    $region104: #{text_encoder_forward.1} parent=1 // pred_region
      %s2356 = ssub.s32 32, 32
      %2357 = vsyncadd [#allocation9], %s2356
      %s2359 = sshll.u32 [#allocation8], 4
      %s2360 = int_to_ptr.vmem [resolvable:$true] %s2359
      %2362 = dma.vmem_to_hbm [thread:$0]  %s2360, 32, %s23, [#allocation9]
    $region105: #{text_encoder_forward.1} parent=1 // pred_fallthru
      _
    // Predicated region
    $region106: #{text_encoder_forward.1} parent=1 // pred_check
      _
    $region107: #{text_encoder_forward.1} parent=1 // pred_check_branch
      %2364 = sbr.rel (0) target = $region109
    $region108: #{text_encoder_forward.1} parent=1 // pred_region
      %2365 = dma.done [#allocation3], 256
    $region109: #{text_encoder_forward.1} parent=1 // pred_fallthru
      _
    // Predicated region
    $region110: #{text_encoder_forward.1} parent=1 // pred_check
      _
    $region111: #{text_encoder_forward.1} parent=1 // pred_check_branch
      %2367 = sbr.rel (0) target = $region113
    $region112: #{text_encoder_forward.1} parent=1 // pred_region
      %2368 = dma.done [#allocation9], 32
    $region113: #{text_encoder_forward.1} parent=1 // pred_fallthru
      _
    %2369 = vsyncpa [#allocation3], 1
    %2370 = vsyncpa [#allocation9], 1
    %2371 = vsyncpa [#allocation4], 1
    %2372 = vsyncpa [#allocation6], 1

</llo_original>
